<compile_context>
chip_gen: v6e
topology: v6e:2x2x1
jax: 0.10.0
libtpu: 0.0.40
codegen_flags: <defaults>
</compile_context>

<pallas_src>
import functools

import jax
import jax.numpy as jnp
from jax.experimental import pallas as pl
from jax.experimental.pallas import tpu as pltpu

EPS = 1e-5


def basic_block_kernel(x_ref, w1_ref, w2_ref, g1_ref, b1_ref, g2_ref, b2_ref,
                       out_ref, wb1_ref, wb2_ref, *, img_h, ch, inv_count):
    """Whole BasicBlock (stride=1, no downsample) in one grid step.

    x_ref   : (M, WC)    lane-dense input rows, M = N*H, WC = W*C (also the residual)
    w*_ref  : (9*C, WC)  raw 3x3 weights, lane-tiled over the W output groups:
                         row (kh*3+kw)*C + ci, col wo*C + co  ->  w[kh, kw, ci, co]
    g*/b*   : (1, WC)    BN gamma/beta, tiled lane-dense
    out_ref : (M, WC)    lane-dense output
    wb*_ref : VMEM (3*WC, WC) scratch for the fused W-banded conv weights
    """
    f32 = jnp.float32
    M, WC = x_ref.shape
    C = ch
    W = WC // C
    H = img_h
    n_img = M // H

    # ---------- shared index machinery (built once, vreg-resident) ----------
    # Per-row image-height index h(m), via broadcast + merge-leading-dims reshape
    # (no integer division needed, no constraint on H).
    h_col = jax.lax.broadcasted_iota(jnp.int32, (H, WC), 0)                 # (H, WC)
    h_idx = jnp.broadcast_to(h_col[None], (n_img, H, WC)).reshape(M, WC)    # (M, WC)
    # Heights of the two cyclic row-neighbours of every row (XLU sublane rolls,
    # non-negative shifts only).
    h_nb_a = pltpu.roll(h_idx, 1, axis=0)
    h_nb_b = pltpu.roll(h_idx, M - 1, axis=0)

    def h_shift(v, want):
        """Rows of v taken from the neighbouring row whose height == want, else 0.

        Comparing the rolled height index against the wanted height makes the
        result independent of the roll direction convention and folds both the
        per-image zero padding along H and the cross-image wrap into one select."""
        a = pltpu.roll(v, 1, axis=0)
        b = pltpu.roll(v, M - 1, axis=0)
        return (jnp.where(h_nb_a == want, a, 0.0) +
                jnp.where(h_nb_b == want, b, 0.0))

    # W-band masks for the in-kernel banded-weight construction (shared by both convs).
    log2c = C.bit_length() - 1                      # C is a power of two (asserted)
    wi = jnp.right_shift(jax.lax.broadcasted_iota(jnp.int32, (WC, WC), 0), log2c)
    wo = jnp.right_shift(jax.lax.broadcasted_iota(jnp.int32, (1, WC), 1), log2c)
    bands = [(wi == wo + (kw - 1)).astype(f32) for kw in range(3)]          # (WC, WC)

    def build_banded(w_ref, wbuf_ref):
        """(9*C, WC) lane-tiled raw weights -> (3*WC, WC) fused banded weights in VMEM.

        wbuf[kh*WC + wi*C + ci, wo*C + co] = w[kh, kw, ci, co] with kw = wi - wo + 1;
        zero outside the +-1 band, which also encodes the zero padding along W."""
        for kh in range(3):
            slab = None
            for kw in range(3):
                base = (kh * 3 + kw) * C
                wt = w_ref[base:base + C, :]                                # (C, WC)
                tiled = jnp.broadcast_to(wt[None], (W, C, WC)).reshape(WC, WC)
                term = bands[kw] * tiled
                slab = term if slab is None else slab + term
            wbuf_ref[kh * WC:(kh + 1) * WC, :] = slab

    def conv3x3(inp, wbuf_ref):
        """3x3 same-padding conv as ONE MXU matmul with K = 3*WC (kh taps fused)."""
        up = h_shift(inp, h_idx - 1)                  # input rows h-1 (kernel row 0)
        dn = h_shift(inp, h_idx + 1)                  # input rows h+1 (kernel row 2)
        slab = jnp.concatenate([up, inp, dn], axis=-1)                      # (M, 3*WC)
        return jnp.dot(slab, wbuf_ref[...], preferred_element_type=f32)    # (M, WC)

    def group_sum(row):
        """(1, WC): per-channel sum across the W lane groups, broadcast to all lanes.

        log2(W) lane-rolls + adds; the result is the same for either roll direction."""
        shift = C
        while shift < WC:
            row = row + pltpu.roll(row, shift, axis=1)
            shift *= 2
        return row

    def batch_norm(acc, g_ref, b_ref, relu):
        # One-pass batch stats (training-mode BatchNorm, biased variance).
        # TODO(synk): switch to a two-pass / Welford reduction when this is tiled
        # over a grid for real ResNet shapes (E[x^2]-mean^2 is cancellation-prone).
        mean = group_sum(jnp.sum(acc, axis=0, keepdims=True)) * inv_count
        ex2 = group_sum(jnp.sum(acc * acc, axis=0, keepdims=True)) * inv_count
        var = ex2 - mean * mean
        scale = g_ref[...] * jax.lax.rsqrt(var + EPS)
        y = (acc - mean) * scale + b_ref[...]
        return jnp.maximum(y, 0.0) if relu else y

    # ---------- the block ----------
    build_banded(w1_ref, wb1_ref)
    build_banded(w2_ref, wb2_ref)

    x = x_ref[...]                                    # (M, WC); also the residual
    y1 = batch_norm(conv3x3(x, wb1_ref), g1_ref, b1_ref, relu=True)
    y2 = batch_norm(conv3x3(y1, wb2_ref), g2_ref, b2_ref, relu=False)
    out_ref[...] = jnp.maximum(y2 + x, 0.0).astype(out_ref.dtype)


def _lane_tiled_weights(w_oihw, width):
    """OIHW (Cout, Cin, 3, 3) -> (9*Cin, width*Cout) lane-tiled raw 3x3 weights.

    Row (kh*3+kw)*Cin + ci, col wo*Cout + co  =  w[co, ci, kh, kw]."""
    cout, cin, kh, kw = w_oihw.shape
    w = jnp.transpose(w_oihw, (2, 3, 1, 0)).astype(jnp.float32)   # (kh, kw, Cin, Cout)
    w = jnp.tile(w, (1, 1, 1, width))                             # [..., wo*Cout+co] = w[..., co]
    return w.reshape(kh * kw * cin, width * cout)


@jax.jit
def basic_block(x_nchw, w1_oihw, g1, b1, w2_oihw, g2, b2):
    """Wrapper: NCHW in / NCHW out, params in PyTorch layouts (stride=1, no downsample)."""
    N, Cin, H, W = x_nchw.shape
    C = w1_oihw.shape[0]
    assert Cin == C, "BasicBlock with downsample=None requires inplanes == planes"
    assert (C & (C - 1)) == 0 and (W & (W - 1)) == 0, "C and W must be powers of two"
    assert H >= 3, "3x3 conv with same padding assumes H >= 3"
    WC = W * C
    M = N * H

    # Lane-dense activations: row n*H + h, lane w*C + c.  No H padding needed.
    x_ld = jnp.transpose(x_nchw, (0, 2, 3, 1)).reshape(M, WC).astype(jnp.float32)

    w1f = _lane_tiled_weights(w1_oihw, W)             # (9*C, WC) ~36 KiB per conv
    w2f = _lane_tiled_weights(w2_oihw, W)
    g1t = jnp.tile(g1.reshape(1, C).astype(jnp.float32), (1, W))
    b1t = jnp.tile(b1.reshape(1, C).astype(jnp.float32), (1, W))
    g2t = jnp.tile(g2.reshape(1, C).astype(jnp.float32), (1, W))
    b2t = jnp.tile(b2.reshape(1, C).astype(jnp.float32), (1, W))

    kernel = functools.partial(basic_block_kernel, img_h=H, ch=C,
                               inv_count=1.0 / float(N * H * W))

    # TODO(synk): for real ResNet shapes, tile the N*H rows over a leading "parallel"
    # grid axis (to use both v7x TensorCores) with a two-pass BN (stats pass + apply
    # pass), cast the conv matmul operands to bf16 for v5e/v6e MXU throughput, and
    # re-derive block sizes against v7x's 64 MiB VMEM.  At these toy shapes a single
    # invocation uses well under 1 MiB of VMEM, so the default scoped limit is kept.
    out_ld = pl.pallas_call(
        kernel,
        out_shape=jax.ShapeDtypeStruct((M, WC), jnp.float32),
        grid=(1,),
        in_specs=[
            pl.BlockSpec((M, WC), lambda i: (0, 0)),
            pl.BlockSpec((9 * C, WC), lambda i: (0, 0)),
            pl.BlockSpec((9 * C, WC), lambda i: (0, 0)),
            pl.BlockSpec((1, WC), lambda i: (0, 0)),
            pl.BlockSpec((1, WC), lambda i: (0, 0)),
            pl.BlockSpec((1, WC), lambda i: (0, 0)),
            pl.BlockSpec((1, WC), lambda i: (0, 0)),
        ],
        out_specs=pl.BlockSpec((M, WC), lambda i: (0, 0)),
        scratch_shapes=[pltpu.VMEM((3 * WC, WC), jnp.float32),
                        pltpu.VMEM((3 * WC, WC), jnp.float32)],
        compiler_params=pltpu.CompilerParams(
            dimension_semantics=("arbitrary",)),
    )(x_ld, w1f, w2f, g1t, b1t, g2t, b2t)

    out_nhwc = out_ld.reshape(N, H, W, C)
    return jnp.transpose(out_nhwc, (0, 3, 1, 2))


def basic_block_reference(x_nchw, w1_oihw, g1, b1, w2_oihw, g2, b2):
    """Pure-JAX (XLA) reference for numerical validation."""
    x = jnp.transpose(x_nchw, (0, 2, 3, 1))
    w1 = jnp.transpose(w1_oihw, (2, 3, 1, 0))
    w2 = jnp.transpose(w2_oihw, (2, 3, 1, 0))

    def conv(x, w):
        return jax.lax.conv_general_dilated(
            x, w, window_strides=(1, 1), padding=((1, 1), (1, 1)),
            dimension_numbers=("NHWC", "HWIO", "NHWC"))

    def bn(x, g, b):
        m = x.mean(axis=(0, 1, 2))
        v = ((x - m) ** 2).mean(axis=(0, 1, 2))
        return (x - m) * jax.lax.rsqrt(v + EPS) * g + b

    o = jnp.maximum(bn(conv(x, w1), g1, b1), 0.0)
    o = bn(conv(o, w2), g2, b2)
    o = jnp.maximum(o + x, 0.0)
    return jnp.transpose(o, (0, 3, 1, 2))


if __name__ == "__main__":
    # Shapes consistent with BasicBlock(inplanes=8, planes=8, stride=1); W*C = 128 lanes.
    N, C, H, W = 2, 8, 16, 16
    key = jax.random.PRNGKey(0)
    kx, kw1, kw2, kg1, kb1, kg2, kb2 = jax.random.split(key, 7)

    x = jax.random.normal(kx, (N, C, H, W), jnp.float32)          # NCHW input
    w1 = 0.1 * jax.random.normal(kw1, (C, C, 3, 3), jnp.float32)  # conv1 OIHW
    w2 = 0.1 * jax.random.normal(kw2, (C, C, 3, 3), jnp.float32)  # conv2 OIHW
    g1 = 1.0 + 0.1 * jax.random.normal(kg1, (C,), jnp.float32)    # bn1 gamma
    b1 = 0.1 * jax.random.normal(kb1, (C,), jnp.float32)          # bn1 beta
    g2 = 1.0 + 0.1 * jax.random.normal(kg2, (C,), jnp.float32)    # bn2 gamma
    b2 = 0.1 * jax.random.normal(kb2, (C,), jnp.float32)          # bn2 beta

    out = jax.block_until_ready(basic_block(x, w1, g1, b1, w2, g2, b2))
    ref = jax.block_until_ready(basic_block_reference(x, w1, g1, b1, w2, g2, b2))

    assert out.shape == (N, C, H, W)
    assert jnp.allclose(out, ref, atol=2e-4, rtol=2e-4), \
        f"max abs err {jnp.max(jnp.abs(out - ref))}"
    print("KERNEL_OK")
</pallas_src>

<mosaic_0001>
module attributes {stable_mosaic.version = 11 : i64} {
  func.func @basic_block_kernel(%arg0: i32, %arg1: memref<32x128xf32, #tpu.memory_space<vmem>>, %arg2: memref<72x128xf32, #tpu.memory_space<vmem>>, %arg3: memref<72x128xf32, #tpu.memory_space<vmem>>, %arg4: memref<1x128xf32, #tpu.memory_space<vmem>>, %arg5: memref<1x128xf32, #tpu.memory_space<vmem>>, %arg6: memref<1x128xf32, #tpu.memory_space<vmem>>, %arg7: memref<1x128xf32, #tpu.memory_space<vmem>>, %arg8: memref<32x128xf32, #tpu.memory_space<vmem>>, %arg9: memref<384x128xf32, #tpu.memory_space<vmem>>, %arg10: memref<384x128xf32, #tpu.memory_space<vmem>>) attributes {dimension_semantics = [#tpu.dimension_semantics<arbitrary>], iteration_bounds = array<i64: 1>, scalar_prefetch = 0 : i64, scratch_operands = 2 : i64, tpu.core_type = #tpu.core_type<tc>, window_params = [{pipeline_mode = #tpu.pipeline_mode<synchronous>, transform_indices = @transform_0, window_bounds = array<i64: 32, 128>}, {pipeline_mode = #tpu.pipeline_mode<synchronous>, transform_indices = @transform_1, window_bounds = array<i64: 72, 128>}, {pipeline_mode = #tpu.pipeline_mode<synchronous>, transform_indices = @transform_2, window_bounds = array<i64: 72, 128>}, {pipeline_mode = #tpu.pipeline_mode<synchronous>, transform_indices = @transform_3, window_bounds = array<i64: 1, 128>}, {pipeline_mode = #tpu.pipeline_mode<synchronous>, transform_indices = @transform_4, window_bounds = array<i64: 1, 128>}, {pipeline_mode = #tpu.pipeline_mode<synchronous>, transform_indices = @transform_5, window_bounds = array<i64: 1, 128>}, {pipeline_mode = #tpu.pipeline_mode<synchronous>, transform_indices = @transform_6, window_bounds = array<i64: 1, 128>}, {pipeline_mode = #tpu.pipeline_mode<synchronous>, transform_indices = @transform_7, window_bounds = array<i64: 32, 128>}]} {
    %0 = tpu.iota {dimensions = array<i32: 0>} : vector<16x128xi32>
    %1 = vector.shape_cast %0 : vector<16x128xi32> to vector<1x16x128xi32>
    %2 = vector.shape_cast %1 : vector<1x16x128xi32> to vector<1x16x128xi32>
    %3 = vector.broadcast %2 : vector<1x16x128xi32> to vector<2x16x128xi32>
    %4 = vector.shape_cast %3 : vector<2x16x128xi32> to vector<32x128xi32>
    %c1_i32 = arith.constant 1 : i32
    %5 = tpu.dynamic_rotate %4 by %c1_i32 dim 0 : vector<32x128xi32>, i32 -> vector<32x128xi32>
    %c31_i32 = arith.constant 31 : i32
    %6 = tpu.dynamic_rotate %4 by %c31_i32 dim 0 : vector<32x128xi32>, i32 -> vector<32x128xi32>
    %7 = tpu.iota {dimensions = array<i32: 0>} : vector<128x128xi32>
    %c3_i32 = arith.constant 3 : i32
    %8 = vector.broadcast %c3_i32 : i32 to vector<128x128xi32>
    %9 = arith.shrsi %7, %8 : vector<128x128xi32>
    %10 = tpu.iota {dimensions = array<i32: 1>} : vector<1x128xi32>
    %c3_i32_0 = arith.constant 3 : i32
    %11 = vector.broadcast %c3_i32_0 : i32 to vector<1x128xi32>
    %12 = arith.shrsi %10, %11 : vector<1x128xi32>
    %c-1_i32 = arith.constant -1 : i32
    %13 = vector.broadcast %c-1_i32 : i32 to vector<1x128xi32>
    %14 = arith.addi %12, %13 : vector<1x128xi32>
    %15 = vector.broadcast %14 : vector<1x128xi32> to vector<128x128xi32>
    %16 = arith.cmpi eq, %9, %15 : vector<128x128xi32>
    %17 = arith.extui %16 : vector<128x128xi1> to vector<128x128xi32>
    %18 = arith.sitofp %17 : vector<128x128xi32> to vector<128x128xf32>
    %c0_i32 = arith.constant 0 : i32
    %19 = vector.broadcast %c0_i32 : i32 to vector<1x128xi32>
    %20 = arith.addi %12, %19 : vector<1x128xi32>
    %21 = vector.broadcast %20 : vector<1x128xi32> to vector<128x128xi32>
    %22 = arith.cmpi eq, %9, %21 : vector<128x128xi32>
    %23 = arith.extui %22 : vector<128x128xi1> to vector<128x128xi32>
    %24 = arith.sitofp %23 : vector<128x128xi32> to vector<128x128xf32>
    %c1_i32_1 = arith.constant 1 : i32
    %25 = vector.broadcast %c1_i32_1 : i32 to vector<1x128xi32>
    %26 = arith.addi %12, %25 : vector<1x128xi32>
    %27 = vector.broadcast %26 : vector<1x128xi32> to vector<128x128xi32>
    %28 = arith.cmpi eq, %9, %27 : vector<128x128xi32>
    %29 = arith.extui %28 : vector<128x128xi1> to vector<128x128xi32>
    %30 = arith.sitofp %29 : vector<128x128xi32> to vector<128x128xf32>
    %c0 = arith.constant 0 : index
    %c0_2 = arith.constant 0 : index
    %31 = vector.load %arg2[%c0, %c0_2] : memref<72x128xf32, #tpu.memory_space<vmem>>, vector<8x128xf32>
    %32 = vector.shape_cast %31 : vector<8x128xf32> to vector<1x8x128xf32>
    %33 = vector.shape_cast %32 : vector<1x8x128xf32> to vector<1x8x128xf32>
    %34 = vector.broadcast %33 : vector<1x8x128xf32> to vector<16x8x128xf32>
    %35 = vector.shape_cast %34 : vector<16x8x128xf32> to vector<128x128xf32>
    %36 = arith.mulf %18, %35 : vector<128x128xf32>
    %c8 = arith.constant 8 : index
    %c0_3 = arith.constant 0 : index
    %37 = vector.load %arg2[%c8, %c0_3] : memref<72x128xf32, #tpu.memory_space<vmem>>, vector<8x128xf32>
    %38 = vector.shape_cast %37 : vector<8x128xf32> to vector<1x8x128xf32>
    %39 = vector.shape_cast %38 : vector<1x8x128xf32> to vector<1x8x128xf32>
    %40 = vector.broadcast %39 : vector<1x8x128xf32> to vector<16x8x128xf32>
    %41 = vector.shape_cast %40 : vector<16x8x128xf32> to vector<128x128xf32>
    %42 = arith.mulf %24, %41 : vector<128x128xf32>
    %43 = arith.addf %36, %42 : vector<128x128xf32>
    %c16 = arith.constant 16 : index
    %c0_4 = arith.constant 0 : index
    %44 = vector.load %arg2[%c16, %c0_4] : memref<72x128xf32, #tpu.memory_space<vmem>>, vector<8x128xf32>
    %45 = vector.shape_cast %44 : vector<8x128xf32> to vector<1x8x128xf32>
    %46 = vector.shape_cast %45 : vector<1x8x128xf32> to vector<1x8x128xf32>
    %47 = vector.broadcast %46 : vector<1x8x128xf32> to vector<16x8x128xf32>
    %48 = vector.shape_cast %47 : vector<16x8x128xf32> to vector<128x128xf32>
    %49 = arith.mulf %30, %48 : vector<128x128xf32>
    %50 = arith.addf %43, %49 : vector<128x128xf32>
    %c0_5 = arith.constant 0 : index
    %c0_6 = arith.constant 0 : index
    %51 = vector.load %arg9[%c0_5, %c0_6] : memref<384x128xf32, #tpu.memory_space<vmem>>, vector<128x128xf32>
    tpu.vector_store %arg9[%c0_5, %c0_6], %50 {strides = array<i32>} : memref<384x128xf32, #tpu.memory_space<vmem>>, vector<128x128xf32>,
    %c24 = arith.constant 24 : index
    %c0_7 = arith.constant 0 : index
    %52 = vector.load %arg2[%c24, %c0_7] : memref<72x128xf32, #tpu.memory_space<vmem>>, vector<8x128xf32>
    %53 = vector.shape_cast %52 : vector<8x128xf32> to vector<1x8x128xf32>
    %54 = vector.shape_cast %53 : vector<1x8x128xf32> to vector<1x8x128xf32>
    %55 = vector.broadcast %54 : vector<1x8x128xf32> to vector<16x8x128xf32>
    %56 = vector.shape_cast %55 : vector<16x8x128xf32> to vector<128x128xf32>
    %57 = arith.mulf %18, %56 : vector<128x128xf32>
    %c32 = arith.constant 32 : index
    %c0_8 = arith.constant 0 : index
    %58 = vector.load %arg2[%c32, %c0_8] : memref<72x128xf32, #tpu.memory_space<vmem>>, vector<8x128xf32>
    %59 = vector.shape_cast %58 : vector<8x128xf32> to vector<1x8x128xf32>
    %60 = vector.shape_cast %59 : vector<1x8x128xf32> to vector<1x8x128xf32>
    %61 = vector.broadcast %60 : vector<1x8x128xf32> to vector<16x8x128xf32>
    %62 = vector.shape_cast %61 : vector<16x8x128xf32> to vector<128x128xf32>
    %63 = arith.mulf %24, %62 : vector<128x128xf32>
    %64 = arith.addf %57, %63 : vector<128x128xf32>
    %c40 = arith.constant 40 : index
    %c0_9 = arith.constant 0 : index
    %65 = vector.load %arg2[%c40, %c0_9] : memref<72x128xf32, #tpu.memory_space<vmem>>, vector<8x128xf32>
    %66 = vector.shape_cast %65 : vector<8x128xf32> to vector<1x8x128xf32>
    %67 = vector.shape_cast %66 : vector<1x8x128xf32> to vector<1x8x128xf32>
    %68 = vector.broadcast %67 : vector<1x8x128xf32> to vector<16x8x128xf32>
    %69 = vector.shape_cast %68 : vector<16x8x128xf32> to vector<128x128xf32>
    %70 = arith.mulf %30, %69 : vector<128x128xf32>
    %71 = arith.addf %64, %70 : vector<128x128xf32>
    %c128 = arith.constant 128 : index
    %c0_10 = arith.constant 0 : index
    %72 = vector.load %arg9[%c128, %c0_10] : memref<384x128xf32, #tpu.memory_space<vmem>>, vector<128x128xf32>
    tpu.vector_store %arg9[%c128, %c0_10], %71 {strides = array<i32>} : memref<384x128xf32, #tpu.memory_space<vmem>>, vector<128x128xf32>,
    %c48 = arith.constant 48 : index
    %c0_11 = arith.constant 0 : index
    %73 = vector.load %arg2[%c48, %c0_11] : memref<72x128xf32, #tpu.memory_space<vmem>>, vector<8x128xf32>
    %74 = vector.shape_cast %73 : vector<8x128xf32> to vector<1x8x128xf32>
    %75 = vector.shape_cast %74 : vector<1x8x128xf32> to vector<1x8x128xf32>
    %76 = vector.broadcast %75 : vector<1x8x128xf32> to vector<16x8x128xf32>
    %77 = vector.shape_cast %76 : vector<16x8x128xf32> to vector<128x128xf32>
    %78 = arith.mulf %18, %77 : vector<128x128xf32>
    %c56 = arith.constant 56 : index
    %c0_12 = arith.constant 0 : index
    %79 = vector.load %arg2[%c56, %c0_12] : memref<72x128xf32, #tpu.memory_space<vmem>>, vector<8x128xf32>
    %80 = vector.shape_cast %79 : vector<8x128xf32> to vector<1x8x128xf32>
    %81 = vector.shape_cast %80 : vector<1x8x128xf32> to vector<1x8x128xf32>
    %82 = vector.broadcast %81 : vector<1x8x128xf32> to vector<16x8x128xf32>
    %83 = vector.shape_cast %82 : vector<16x8x128xf32> to vector<128x128xf32>
    %84 = arith.mulf %24, %83 : vector<128x128xf32>
    %85 = arith.addf %78, %84 : vector<128x128xf32>
    %c64 = arith.constant 64 : index
    %c0_13 = arith.constant 0 : index
    %86 = vector.load %arg2[%c64, %c0_13] : memref<72x128xf32, #tpu.memory_space<vmem>>, vector<8x128xf32>
    %87 = vector.shape_cast %86 : vector<8x128xf32> to vector<1x8x128xf32>
    %88 = vector.shape_cast %87 : vector<1x8x128xf32> to vector<1x8x128xf32>
    %89 = vector.broadcast %88 : vector<1x8x128xf32> to vector<16x8x128xf32>
    %90 = vector.shape_cast %89 : vector<16x8x128xf32> to vector<128x128xf32>
    %91 = arith.mulf %30, %90 : vector<128x128xf32>
    %92 = arith.addf %85, %91 : vector<128x128xf32>
    %c256 = arith.constant 256 : index
    %c0_14 = arith.constant 0 : index
    %93 = vector.load %arg9[%c256, %c0_14] : memref<384x128xf32, #tpu.memory_space<vmem>>, vector<128x128xf32>
    tpu.vector_store %arg9[%c256, %c0_14], %92 {strides = array<i32>} : memref<384x128xf32, #tpu.memory_space<vmem>>, vector<128x128xf32>,
    %c0_15 = arith.constant 0 : index
    %c0_16 = arith.constant 0 : index
    %94 = vector.load %arg3[%c0_15, %c0_16] : memref<72x128xf32, #tpu.memory_space<vmem>>, vector<8x128xf32>
    %95 = vector.shape_cast %94 : vector<8x128xf32> to vector<1x8x128xf32>
    %96 = vector.shape_cast %95 : vector<1x8x128xf32> to vector<1x8x128xf32>
    %97 = vector.broadcast %96 : vector<1x8x128xf32> to vector<16x8x128xf32>
    %98 = vector.shape_cast %97 : vector<16x8x128xf32> to vector<128x128xf32>
    %99 = arith.mulf %18, %98 : vector<128x128xf32>
    %c8_17 = arith.constant 8 : index
    %c0_18 = arith.constant 0 : index
    %100 = vector.load %arg3[%c8_17, %c0_18] : memref<72x128xf32, #tpu.memory_space<vmem>>, vector<8x128xf32>
    %101 = vector.shape_cast %100 : vector<8x128xf32> to vector<1x8x128xf32>
    %102 = vector.shape_cast %101 : vector<1x8x128xf32> to vector<1x8x128xf32>
    %103 = vector.broadcast %102 : vector<1x8x128xf32> to vector<16x8x128xf32>
    %104 = vector.shape_cast %103 : vector<16x8x128xf32> to vector<128x128xf32>
    %105 = arith.mulf %24, %104 : vector<128x128xf32>
    %106 = arith.addf %99, %105 : vector<128x128xf32>
    %c16_19 = arith.constant 16 : index
    %c0_20 = arith.constant 0 : index
    %107 = vector.load %arg3[%c16_19, %c0_20] : memref<72x128xf32, #tpu.memory_space<vmem>>, vector<8x128xf32>
    %108 = vector.shape_cast %107 : vector<8x128xf32> to vector<1x8x128xf32>
    %109 = vector.shape_cast %108 : vector<1x8x128xf32> to vector<1x8x128xf32>
    %110 = vector.broadcast %109 : vector<1x8x128xf32> to vector<16x8x128xf32>
    %111 = vector.shape_cast %110 : vector<16x8x128xf32> to vector<128x128xf32>
    %112 = arith.mulf %30, %111 : vector<128x128xf32>
    %113 = arith.addf %106, %112 : vector<128x128xf32>
    %c0_21 = arith.constant 0 : index
    %c0_22 = arith.constant 0 : index
    %114 = vector.load %arg10[%c0_21, %c0_22] : memref<384x128xf32, #tpu.memory_space<vmem>>, vector<128x128xf32>
    tpu.vector_store %arg10[%c0_21, %c0_22], %113 {strides = array<i32>} : memref<384x128xf32, #tpu.memory_space<vmem>>, vector<128x128xf32>,
    %c24_23 = arith.constant 24 : index
    %c0_24 = arith.constant 0 : index
    %115 = vector.load %arg3[%c24_23, %c0_24] : memref<72x128xf32, #tpu.memory_space<vmem>>, vector<8x128xf32>
    %116 = vector.shape_cast %115 : vector<8x128xf32> to vector<1x8x128xf32>
    %117 = vector.shape_cast %116 : vector<1x8x128xf32> to vector<1x8x128xf32>
    %118 = vector.broadcast %117 : vector<1x8x128xf32> to vector<16x8x128xf32>
    %119 = vector.shape_cast %118 : vector<16x8x128xf32> to vector<128x128xf32>
    %120 = arith.mulf %18, %119 : vector<128x128xf32>
    %c32_25 = arith.constant 32 : index
    %c0_26 = arith.constant 0 : index
    %121 = vector.load %arg3[%c32_25, %c0_26] : memref<72x128xf32, #tpu.memory_space<vmem>>, vector<8x128xf32>
    %122 = vector.shape_cast %121 : vector<8x128xf32> to vector<1x8x128xf32>
    %123 = vector.shape_cast %122 : vector<1x8x128xf32> to vector<1x8x128xf32>
    %124 = vector.broadcast %123 : vector<1x8x128xf32> to vector<16x8x128xf32>
    %125 = vector.shape_cast %124 : vector<16x8x128xf32> to vector<128x128xf32>
    %126 = arith.mulf %24, %125 : vector<128x128xf32>
    %127 = arith.addf %120, %126 : vector<128x128xf32>
    %c40_27 = arith.constant 40 : index
    %c0_28 = arith.constant 0 : index
    %128 = vector.load %arg3[%c40_27, %c0_28] : memref<72x128xf32, #tpu.memory_space<vmem>>, vector<8x128xf32>
    %129 = vector.shape_cast %128 : vector<8x128xf32> to vector<1x8x128xf32>
    %130 = vector.shape_cast %129 : vector<1x8x128xf32> to vector<1x8x128xf32>
    %131 = vector.broadcast %130 : vector<1x8x128xf32> to vector<16x8x128xf32>
    %132 = vector.shape_cast %131 : vector<16x8x128xf32> to vector<128x128xf32>
    %133 = arith.mulf %30, %132 : vector<128x128xf32>
    %134 = arith.addf %127, %133 : vector<128x128xf32>
    %c128_29 = arith.constant 128 : index
    %c0_30 = arith.constant 0 : index
    %135 = vector.load %arg10[%c128_29, %c0_30] : memref<384x128xf32, #tpu.memory_space<vmem>>, vector<128x128xf32>
    tpu.vector_store %arg10[%c128_29, %c0_30], %134 {strides = array<i32>} : memref<384x128xf32, #tpu.memory_space<vmem>>, vector<128x128xf32>,
    %c48_31 = arith.constant 48 : index
    %c0_32 = arith.constant 0 : index
    %136 = vector.load %arg3[%c48_31, %c0_32] : memref<72x128xf32, #tpu.memory_space<vmem>>, vector<8x128xf32>
    %137 = vector.shape_cast %136 : vector<8x128xf32> to vector<1x8x128xf32>
    %138 = vector.shape_cast %137 : vector<1x8x128xf32> to vector<1x8x128xf32>
    %139 = vector.broadcast %138 : vector<1x8x128xf32> to vector<16x8x128xf32>
    %140 = vector.shape_cast %139 : vector<16x8x128xf32> to vector<128x128xf32>
    %141 = arith.mulf %18, %140 : vector<128x128xf32>
    %c56_33 = arith.constant 56 : index
    %c0_34 = arith.constant 0 : index
    %142 = vector.load %arg3[%c56_33, %c0_34] : memref<72x128xf32, #tpu.memory_space<vmem>>, vector<8x128xf32>
    %143 = vector.shape_cast %142 : vector<8x128xf32> to vector<1x8x128xf32>
    %144 = vector.shape_cast %143 : vector<1x8x128xf32> to vector<1x8x128xf32>
    %145 = vector.broadcast %144 : vector<1x8x128xf32> to vector<16x8x128xf32>
    %146 = vector.shape_cast %145 : vector<16x8x128xf32> to vector<128x128xf32>
    %147 = arith.mulf %24, %146 : vector<128x128xf32>
    %148 = arith.addf %141, %147 : vector<128x128xf32>
    %c64_35 = arith.constant 64 : index
    %c0_36 = arith.constant 0 : index
    %149 = vector.load %arg3[%c64_35, %c0_36] : memref<72x128xf32, #tpu.memory_space<vmem>>, vector<8x128xf32>
    %150 = vector.shape_cast %149 : vector<8x128xf32> to vector<1x8x128xf32>
    %151 = vector.shape_cast %150 : vector<1x8x128xf32> to vector<1x8x128xf32>
    %152 = vector.broadcast %151 : vector<1x8x128xf32> to vector<16x8x128xf32>
    %153 = vector.shape_cast %152 : vector<16x8x128xf32> to vector<128x128xf32>
    %154 = arith.mulf %30, %153 : vector<128x128xf32>
    %155 = arith.addf %148, %154 : vector<128x128xf32>
    %c256_37 = arith.constant 256 : index
    %c0_38 = arith.constant 0 : index
    %156 = vector.load %arg10[%c256_37, %c0_38] : memref<384x128xf32, #tpu.memory_space<vmem>>, vector<128x128xf32>
    tpu.vector_store %arg10[%c256_37, %c0_38], %155 {strides = array<i32>} : memref<384x128xf32, #tpu.memory_space<vmem>>, vector<128x128xf32>,
    %c0_39 = arith.constant 0 : index
    %c0_40 = arith.constant 0 : index
    %157 = vector.load %arg1[%c0_39, %c0_40] : memref<32x128xf32, #tpu.memory_space<vmem>>, vector<32x128xf32>
    %c1_i32_41 = arith.constant 1 : i32
    %158 = vector.broadcast %c1_i32_41 : i32 to vector<32x128xi32>
    %159 = arith.subi %4, %158 : vector<32x128xi32>
    %c1_i32_42 = arith.constant 1 : i32
    %160 = tpu.dynamic_rotate %157 by %c1_i32_42 dim 0 : vector<32x128xf32>, i32 -> vector<32x128xf32>
    %c31_i32_43 = arith.constant 31 : i32
    %161 = tpu.dynamic_rotate %157 by %c31_i32_43 dim 0 : vector<32x128xf32>, i32 -> vector<32x128xf32>
    %162 = arith.cmpi eq, %5, %159 : vector<32x128xi32>
    %cst = arith.constant 0.000000e+00 : f32
    %163 = vector.broadcast %cst : f32 to vector<32x128xf32>
    %164 = arith.select %162, %160, %163 : vector<32x128xi1>, vector<32x128xf32>
    %165 = arith.cmpi eq, %6, %159 : vector<32x128xi32>
    %cst_44 = arith.constant 0.000000e+00 : f32
    %166 = vector.broadcast %cst_44 : f32 to vector<32x128xf32>
    %167 = arith.select %165, %161, %166 : vector<32x128xi1>, vector<32x128xf32>
    %168 = arith.addf %164, %167 : vector<32x128xf32>
    %c1_i32_45 = arith.constant 1 : i32
    %169 = vector.broadcast %c1_i32_45 : i32 to vector<32x128xi32>
    %170 = arith.addi %4, %169 : vector<32x128xi32>
    %c1_i32_46 = arith.constant 1 : i32
    %171 = tpu.dynamic_rotate %157 by %c1_i32_46 dim 0 : vector<32x128xf32>, i32 -> vector<32x128xf32>
    %c31_i32_47 = arith.constant 31 : i32
    %172 = tpu.dynamic_rotate %157 by %c31_i32_47 dim 0 : vector<32x128xf32>, i32 -> vector<32x128xf32>
    %173 = arith.cmpi eq, %5, %170 : vector<32x128xi32>
    %cst_48 = arith.constant 0.000000e+00 : f32
    %174 = vector.broadcast %cst_48 : f32 to vector<32x128xf32>
    %175 = arith.select %173, %171, %174 : vector<32x128xi1>, vector<32x128xf32>
    %176 = arith.cmpi eq, %6, %170 : vector<32x128xi32>
    %cst_49 = arith.constant 0.000000e+00 : f32
    %177 = vector.broadcast %cst_49 : f32 to vector<32x128xf32>
    %178 = arith.select %176, %172, %177 : vector<32x128xi1>, vector<32x128xf32>
    %179 = arith.addf %175, %178 : vector<32x128xf32>
    %180 = tpu.concatenate %168, %157, %179 in 1 : vector<32x128xf32>, vector<32x128xf32>, vector<32x128xf32> -> vector<32x384xf32>
    %c0_50 = arith.constant 0 : index
    %c0_51 = arith.constant 0 : index
    %181 = vector.load %arg9[%c0_50, %c0_51] : memref<384x128xf32, #tpu.memory_space<vmem>>, vector<384x128xf32>
    %cst_52 = arith.constant dense<0.000000e+00> : vector<32x128xf32>
    %182 = tpu.matmul %180, %181, %cst_52 {dimension_numbers = #tpu.dot_dimension_numbers<[1], [0], [0], [1], [0, 0, 1, 1], [], []>} : vector<32x384xf32>, vector<384x128xf32>, vector<32x128xf32> -> vector<32x128xf32>
    %cst_53 = arith.constant dense<0.000000e+00> : vector<128xf32>
    %183 = vector.multi_reduction <add>, %182, %cst_53 [0] : vector<32x128xf32> to vector<128xf32>
    %184 = vector.shape_cast %183 : vector<128xf32> to vector<1x128xf32>
    %c8_i32 = arith.constant 8 : i32
    %185 = tpu.dynamic_rotate %184 by %c8_i32 dim 1 : vector<1x128xf32>, i32 -> vector<1x128xf32>
    %186 = arith.addf %184, %185 : vector<1x128xf32>
    %c16_i32 = arith.constant 16 : i32
    %187 = tpu.dynamic_rotate %186 by %c16_i32 dim 1 : vector<1x128xf32>, i32 -> vector<1x128xf32>
    %188 = arith.addf %186, %187 : vector<1x128xf32>
    %c32_i32 = arith.constant 32 : i32
    %189 = tpu.dynamic_rotate %188 by %c32_i32 dim 1 : vector<1x128xf32>, i32 -> vector<1x128xf32>
    %190 = arith.addf %188, %189 : vector<1x128xf32>
    %c64_i32 = arith.constant 64 : i32
    %191 = tpu.dynamic_rotate %190 by %c64_i32 dim 1 : vector<1x128xf32>, i32 -> vector<1x128xf32>
    %192 = arith.addf %190, %191 : vector<1x128xf32>
    %cst_54 = arith.constant 0.001953125 : f32
    %193 = vector.broadcast %cst_54 : f32 to vector<1x128xf32>
    %194 = arith.mulf %192, %193 : vector<1x128xf32>
    %195 = arith.mulf %182, %182 : vector<32x128xf32>
    %cst_55 = arith.constant dense<0.000000e+00> : vector<128xf32>
    %196 = vector.multi_reduction <add>, %195, %cst_55 [0] : vector<32x128xf32> to vector<128xf32>
    %197 = vector.shape_cast %196 : vector<128xf32> to vector<1x128xf32>
    %c8_i32_56 = arith.constant 8 : i32
    %198 = tpu.dynamic_rotate %197 by %c8_i32_56 dim 1 : vector<1x128xf32>, i32 -> vector<1x128xf32>
    %199 = arith.addf %197, %198 : vector<1x128xf32>
    %c16_i32_57 = arith.constant 16 : i32
    %200 = tpu.dynamic_rotate %199 by %c16_i32_57 dim 1 : vector<1x128xf32>, i32 -> vector<1x128xf32>
    %201 = arith.addf %199, %200 : vector<1x128xf32>
    %c32_i32_58 = arith.constant 32 : i32
    %202 = tpu.dynamic_rotate %201 by %c32_i32_58 dim 1 : vector<1x128xf32>, i32 -> vector<1x128xf32>
    %203 = arith.addf %201, %202 : vector<1x128xf32>
    %c64_i32_59 = arith.constant 64 : i32
    %204 = tpu.dynamic_rotate %203 by %c64_i32_59 dim 1 : vector<1x128xf32>, i32 -> vector<1x128xf32>
    %205 = arith.addf %203, %204 : vector<1x128xf32>
    %cst_60 = arith.constant 0.001953125 : f32
    %206 = vector.broadcast %cst_60 : f32 to vector<1x128xf32>
    %207 = arith.mulf %205, %206 : vector<1x128xf32>
    %208 = arith.mulf %194, %194 : vector<1x128xf32>
    %209 = arith.subf %207, %208 : vector<1x128xf32>
    %c0_61 = arith.constant 0 : index
    %c0_62 = arith.constant 0 : index
    %210 = vector.load %arg4[%c0_61, %c0_62] : memref<1x128xf32, #tpu.memory_space<vmem>>, vector<1x128xf32>
    %cst_63 = arith.constant 9.99999974E-6 : f32
    %211 = vector.broadcast %cst_63 : f32 to vector<1x128xf32>
    %212 = arith.addf %209, %211 : vector<1x128xf32>
    %213 = math.rsqrt %212 : vector<1x128xf32>
    %214 = arith.mulf %210, %213 : vector<1x128xf32>
    %215 = vector.broadcast %194 : vector<1x128xf32> to vector<32x128xf32>
    %216 = arith.subf %182, %215 : vector<32x128xf32>
    %217 = vector.broadcast %214 : vector<1x128xf32> to vector<32x128xf32>
    %218 = arith.mulf %216, %217 : vector<32x128xf32>
    %c0_64 = arith.constant 0 : index
    %c0_65 = arith.constant 0 : index
    %219 = vector.load %arg5[%c0_64, %c0_65] : memref<1x128xf32, #tpu.memory_space<vmem>>, vector<1x128xf32>
    %220 = vector.broadcast %219 : vector<1x128xf32> to vector<32x128xf32>
    %221 = arith.addf %218, %220 : vector<32x128xf32>
    %cst_66 = arith.constant 0.000000e+00 : f32
    %222 = vector.broadcast %cst_66 : f32 to vector<32x128xf32>
    %223 = arith.maximumf %221, %222 : vector<32x128xf32>
    %c1_i32_67 = arith.constant 1 : i32
    %224 = vector.broadcast %c1_i32_67 : i32 to vector<32x128xi32>
    %225 = arith.subi %4, %224 : vector<32x128xi32>
    %c1_i32_68 = arith.constant 1 : i32
    %226 = tpu.dynamic_rotate %223 by %c1_i32_68 dim 0 : vector<32x128xf32>, i32 -> vector<32x128xf32>
    %c31_i32_69 = arith.constant 31 : i32
    %227 = tpu.dynamic_rotate %223 by %c31_i32_69 dim 0 : vector<32x128xf32>, i32 -> vector<32x128xf32>
    %228 = arith.cmpi eq, %5, %225 : vector<32x128xi32>
    %cst_70 = arith.constant 0.000000e+00 : f32
    %229 = vector.broadcast %cst_70 : f32 to vector<32x128xf32>
    %230 = arith.select %228, %226, %229 : vector<32x128xi1>, vector<32x128xf32>
    %231 = arith.cmpi eq, %6, %225 : vector<32x128xi32>
    %cst_71 = arith.constant 0.000000e+00 : f32
    %232 = vector.broadcast %cst_71 : f32 to vector<32x128xf32>
    %233 = arith.select %231, %227, %232 : vector<32x128xi1>, vector<32x128xf32>
    %234 = arith.addf %230, %233 : vector<32x128xf32>
    %c1_i32_72 = arith.constant 1 : i32
    %235 = vector.broadcast %c1_i32_72 : i32 to vector<32x128xi32>
    %236 = arith.addi %4, %235 : vector<32x128xi32>
    %c1_i32_73 = arith.constant 1 : i32
    %237 = tpu.dynamic_rotate %223 by %c1_i32_73 dim 0 : vector<32x128xf32>, i32 -> vector<32x128xf32>
    %c31_i32_74 = arith.constant 31 : i32
    %238 = tpu.dynamic_rotate %223 by %c31_i32_74 dim 0 : vector<32x128xf32>, i32 -> vector<32x128xf32>
    %239 = arith.cmpi eq, %5, %236 : vector<32x128xi32>
    %cst_75 = arith.constant 0.000000e+00 : f32
    %240 = vector.broadcast %cst_75 : f32 to vector<32x128xf32>
    %241 = arith.select %239, %237, %240 : vector<32x128xi1>, vector<32x128xf32>
    %242 = arith.cmpi eq, %6, %236 : vector<32x128xi32>
    %cst_76 = arith.constant 0.000000e+00 : f32
    %243 = vector.broadcast %cst_76 : f32 to vector<32x128xf32>
    %244 = arith.select %242, %238, %243 : vector<32x128xi1>, vector<32x128xf32>
    %245 = arith.addf %241, %244 : vector<32x128xf32>
    %246 = tpu.concatenate %234, %223, %245 in 1 : vector<32x128xf32>, vector<32x128xf32>, vector<32x128xf32> -> vector<32x384xf32>
    %c0_77 = arith.constant 0 : index
    %c0_78 = arith.constant 0 : index
    %247 = vector.load %arg10[%c0_77, %c0_78] : memref<384x128xf32, #tpu.memory_space<vmem>>, vector<384x128xf32>
    %cst_79 = arith.constant dense<0.000000e+00> : vector<32x128xf32>
    %248 = tpu.matmul %246, %247, %cst_79 {dimension_numbers = #tpu.dot_dimension_numbers<[1], [0], [0], [1], [0, 0, 1, 1], [], []>} : vector<32x384xf32>, vector<384x128xf32>, vector<32x128xf32> -> vector<32x128xf32>
    %cst_80 = arith.constant dense<0.000000e+00> : vector<128xf32>
    %249 = vector.multi_reduction <add>, %248, %cst_80 [0] : vector<32x128xf32> to vector<128xf32>
    %250 = vector.shape_cast %249 : vector<128xf32> to vector<1x128xf32>
    %c8_i32_81 = arith.constant 8 : i32
    %251 = tpu.dynamic_rotate %250 by %c8_i32_81 dim 1 : vector<1x128xf32>, i32 -> vector<1x128xf32>
    %252 = arith.addf %250, %251 : vector<1x128xf32>
    %c16_i32_82 = arith.constant 16 : i32
    %253 = tpu.dynamic_rotate %252 by %c16_i32_82 dim 1 : vector<1x128xf32>, i32 -> vector<1x128xf32>
    %254 = arith.addf %252, %253 : vector<1x128xf32>
    %c32_i32_83 = arith.constant 32 : i32
    %255 = tpu.dynamic_rotate %254 by %c32_i32_83 dim 1 : vector<1x128xf32>, i32 -> vector<1x128xf32>
    %256 = arith.addf %254, %255 : vector<1x128xf32>
    %c64_i32_84 = arith.constant 64 : i32
    %257 = tpu.dynamic_rotate %256 by %c64_i32_84 dim 1 : vector<1x128xf32>, i32 -> vector<1x128xf32>
    %258 = arith.addf %256, %257 : vector<1x128xf32>
    %cst_85 = arith.constant 0.001953125 : f32
    %259 = vector.broadcast %cst_85 : f32 to vector<1x128xf32>
    %260 = arith.mulf %258, %259 : vector<1x128xf32>
    %261 = arith.mulf %248, %248 : vector<32x128xf32>
    %cst_86 = arith.constant dense<0.000000e+00> : vector<128xf32>
    %262 = vector.multi_reduction <add>, %261, %cst_86 [0] : vector<32x128xf32> to vector<128xf32>
    %263 = vector.shape_cast %262 : vector<128xf32> to vector<1x128xf32>
    %c8_i32_87 = arith.constant 8 : i32
    %264 = tpu.dynamic_rotate %263 by %c8_i32_87 dim 1 : vector<1x128xf32>, i32 -> vector<1x128xf32>
    %265 = arith.addf %263, %264 : vector<1x128xf32>
    %c16_i32_88 = arith.constant 16 : i32
    %266 = tpu.dynamic_rotate %265 by %c16_i32_88 dim 1 : vector<1x128xf32>, i32 -> vector<1x128xf32>
    %267 = arith.addf %265, %266 : vector<1x128xf32>
    %c32_i32_89 = arith.constant 32 : i32
    %268 = tpu.dynamic_rotate %267 by %c32_i32_89 dim 1 : vector<1x128xf32>, i32 -> vector<1x128xf32>
    %269 = arith.addf %267, %268 : vector<1x128xf32>
    %c64_i32_90 = arith.constant 64 : i32
    %270 = tpu.dynamic_rotate %269 by %c64_i32_90 dim 1 : vector<1x128xf32>, i32 -> vector<1x128xf32>
    %271 = arith.addf %269, %270 : vector<1x128xf32>
    %cst_91 = arith.constant 0.001953125 : f32
    %272 = vector.broadcast %cst_91 : f32 to vector<1x128xf32>
    %273 = arith.mulf %271, %272 : vector<1x128xf32>
    %274 = arith.mulf %260, %260 : vector<1x128xf32>
    %275 = arith.subf %273, %274 : vector<1x128xf32>
    %c0_92 = arith.constant 0 : index
    %c0_93 = arith.constant 0 : index
    %276 = vector.load %arg6[%c0_92, %c0_93] : memref<1x128xf32, #tpu.memory_space<vmem>>, vector<1x128xf32>
    %cst_94 = arith.constant 9.99999974E-6 : f32
    %277 = vector.broadcast %cst_94 : f32 to vector<1x128xf32>
    %278 = arith.addf %275, %277 : vector<1x128xf32>
    %279 = math.rsqrt %278 : vector<1x128xf32>
    %280 = arith.mulf %276, %279 : vector<1x128xf32>
    %281 = vector.broadcast %260 : vector<1x128xf32> to vector<32x128xf32>
    %282 = arith.subf %248, %281 : vector<32x128xf32>
    %283 = vector.broadcast %280 : vector<1x128xf32> to vector<32x128xf32>
    %284 = arith.mulf %282, %283 : vector<32x128xf32>
    %c0_95 = arith.constant 0 : index
    %c0_96 = arith.constant 0 : index
    %285 = vector.load %arg7[%c0_95, %c0_96] : memref<1x128xf32, #tpu.memory_space<vmem>>, vector<1x128xf32>
    %286 = vector.broadcast %285 : vector<1x128xf32> to vector<32x128xf32>
    %287 = arith.addf %284, %286 : vector<32x128xf32>
    %288 = arith.addf %287, %157 : vector<32x128xf32>
    %cst_97 = arith.constant 0.000000e+00 : f32
    %289 = vector.broadcast %cst_97 : f32 to vector<32x128xf32>
    %290 = arith.maximumf %288, %289 : vector<32x128xf32>
    %c0_98 = arith.constant 0 : index
    %c0_99 = arith.constant 0 : index
    %291 = vector.load %arg8[%c0_98, %c0_99] : memref<32x128xf32, #tpu.memory_space<vmem>>, vector<32x128xf32>
    tpu.vector_store %arg8[%c0_98, %c0_99], %290 {strides = array<i32>} : memref<32x128xf32, #tpu.memory_space<vmem>>, vector<32x128xf32>,
    return
  }
  func.func @transform_0(%arg0: i32) -> (i32, i32) {
    %c0_i32 = arith.constant 0 : i32
    %c0_i32_0 = arith.constant 0 : i32
    %c0_i32_1 = arith.constant 0 : i32
    return %c0_i32, %c0_i32_0 : i32, i32
  }
  func.func @transform_1(%arg0: i32) -> (i32, i32) {
    %c0_i32 = arith.constant 0 : i32
    %c0_i32_0 = arith.constant 0 : i32
    %c0_i32_1 = arith.constant 0 : i32
    return %c0_i32, %c0_i32_0 : i32, i32
  }
  func.func @transform_2(%arg0: i32) -> (i32, i32) {
    %c0_i32 = arith.constant 0 : i32
    %c0_i32_0 = arith.constant 0 : i32
    %c0_i32_1 = arith.constant 0 : i32
    return %c0_i32, %c0_i32_0 : i32, i32
  }
  func.func @transform_3(%arg0: i32) -> (i32, i32) {
    %c0_i32 = arith.constant 0 : i32
    %c0_i32_0 = arith.constant 0 : i32
    %c0_i32_1 = arith.constant 0 : i32
    return %c0_i32, %c0_i32_0 : i32, i32
  }
  func.func @transform_4(%arg0: i32) -> (i32, i32) {
    %c0_i32 = arith.constant 0 : i32
    %c0_i32_0 = arith.constant 0 : i32
    %c0_i32_1 = arith.constant 0 : i32
    return %c0_i32, %c0_i32_0 : i32, i32
  }
  func.func @transform_5(%arg0: i32) -> (i32, i32) {
    %c0_i32 = arith.constant 0 : i32
    %c0_i32_0 = arith.constant 0 : i32
    %c0_i32_1 = arith.constant 0 : i32
    return %c0_i32, %c0_i32_0 : i32, i32
  }
  func.func @transform_6(%arg0: i32) -> (i32, i32) {
    %c0_i32 = arith.constant 0 : i32
    %c0_i32_0 = arith.constant 0 : i32
    %c0_i32_1 = arith.constant 0 : i32
    return %c0_i32, %c0_i32_0 : i32, i32
  }
  func.func @transform_7(%arg0: i32) -> (i32, i32) {
    %c0_i32 = arith.constant 0 : i32
    %c0_i32_0 = arith.constant 0 : i32
    %c0_i32_1 = arith.constant 0 : i32
    return %c0_i32, %c0_i32_0 : i32, i32
  }
}

</mosaic_0001>

<llo_original>
// kernel: tile.30
$region0: #{tile.30}
  %s0 = inlined_call_operand.vmem [shape: f32[3,1,3,1,8,16,8], index: 0, kind: input, shape index: {}]
  %s1 = inlined_call_operand.vmem [shape: f32[72,128], index: 1, kind: output, shape index: {}]
  %s2 = smov 3
  %v3 = vld [vmem:[%s0] ss:$16 sm:%s2]
  %s4 = smov 12
  %v5 = vld [vmem:[%s0] ss:$16 sm:%s4]
  %vm6 = vcmask 1043458
  %v7 = vsel %vm6, %v5, %v3
  %s8 = smov 48
  %v9 = vld [vmem:[%s0] ss:$16 sm:%s8]
  %vm10 = vcmask 1045508
  %v11 = vsel %vm10, %v9, %v7
  %s12 = smov 192
  %v13 = vld [vmem:[%s0] ss:$16 sm:%s12]
  %vm14 = vcmask 1047558
  %v15 = vsel %vm14, %v13, %v11
  %vm16 = vcmask 64512
  %17 = vst.msk [vmem:[%s1] sm:$0xff] %vm16, %v15
  %s18 = scalar_lea.vmem %s0, 128
  %s19 = smov 3
  %v20 = vld [vmem:[%s18] ss:$16 sm:%s19]
  %s21 = scalar_lea.vmem %s0, 128
  %s22 = smov 12
  %v23 = vld [vmem:[%s21] ss:$16 sm:%s22]
  %vm24 = vcmask 1043458
  %v25 = vsel %vm24, %v23, %v20
  %s26 = scalar_lea.vmem %s0, 128
  %s27 = smov 48
  %v28 = vld [vmem:[%s26] ss:$16 sm:%s27]
  %vm29 = vcmask 1045508
  %v30 = vsel %vm29, %v28, %v25
  %s31 = scalar_lea.vmem %s0, 128
  %s32 = smov 192
  %v33 = vld [vmem:[%s31] ss:$16 sm:%s32]
  %vm34 = vcmask 1047558
  %v35 = vsel %vm34, %v33, %v30
  %vm36 = vcmask 64512
  %s37 = scalar_lea.vmem %s1, 8
  %38 = vst.msk [vmem:[%s37] sm:$0xff] %vm36, %v35
  %s39 = scalar_lea.vmem %s0, 256
  %s40 = smov 3
  %v41 = vld [vmem:[%s39] ss:$16 sm:%s40]
  %s42 = scalar_lea.vmem %s0, 256
  %s43 = smov 12
  %v44 = vld [vmem:[%s42] ss:$16 sm:%s43]
  %vm45 = vcmask 1043458
  %v46 = vsel %vm45, %v44, %v41
  %s47 = scalar_lea.vmem %s0, 256
  %s48 = smov 48
  %v49 = vld [vmem:[%s47] ss:$16 sm:%s48]
  %vm50 = vcmask 1045508
  %v51 = vsel %vm50, %v49, %v46
  %s52 = scalar_lea.vmem %s0, 256
  %s53 = smov 192
  %v54 = vld [vmem:[%s52] ss:$16 sm:%s53]
  %vm55 = vcmask 1047558
  %v56 = vsel %vm55, %v54, %v51
  %vm57 = vcmask 64512
  %s58 = scalar_lea.vmem %s1, 16
  %59 = vst.msk [vmem:[%s58] sm:$0xff] %vm57, %v56
  %s60 = scalar_lea.vmem %s0, 384
  %s61 = smov 3
  %v62 = vld [vmem:[%s60] ss:$16 sm:%s61]
  %s63 = scalar_lea.vmem %s0, 384
  %s64 = smov 12
  %v65 = vld [vmem:[%s63] ss:$16 sm:%s64]
  %vm66 = vcmask 1043458
  %v67 = vsel %vm66, %v65, %v62
  %s68 = scalar_lea.vmem %s0, 384
  %s69 = smov 48
  %v70 = vld [vmem:[%s68] ss:$16 sm:%s69]
  %vm71 = vcmask 1045508
  %v72 = vsel %vm71, %v70, %v67
  %s73 = scalar_lea.vmem %s0, 384
  %s74 = smov 192
  %v75 = vld [vmem:[%s73] ss:$16 sm:%s74]
  %vm76 = vcmask 1047558
  %v77 = vsel %vm76, %v75, %v72
  %vm78 = vcmask 64512
  %s79 = scalar_lea.vmem %s1, 24
  %80 = vst.msk [vmem:[%s79] sm:$0xff] %vm78, %v77
  %s81 = scalar_lea.vmem %s0, 512
  %s82 = smov 3
  %v83 = vld [vmem:[%s81] ss:$16 sm:%s82]
  %s84 = scalar_lea.vmem %s0, 512
  %s85 = smov 12
  %v86 = vld [vmem:[%s84] ss:$16 sm:%s85]
  %vm87 = vcmask 1043458
  %v88 = vsel %vm87, %v86, %v83
  %s89 = scalar_lea.vmem %s0, 512
  %s90 = smov 48
  %v91 = vld [vmem:[%s89] ss:$16 sm:%s90]
  %vm92 = vcmask 1045508
  %v93 = vsel %vm92, %v91, %v88
  %s94 = scalar_lea.vmem %s0, 512
  %s95 = smov 192
  %v96 = vld [vmem:[%s94] ss:$16 sm:%s95]
  %vm97 = vcmask 1047558
  %v98 = vsel %vm97, %v96, %v93
  %vm99 = vcmask 64512
  %s100 = scalar_lea.vmem %s1, 32
  %101 = vst.msk [vmem:[%s100] sm:$0xff] %vm99, %v98
  %s102 = scalar_lea.vmem %s0, 640
  %s103 = smov 3
  %v104 = vld [vmem:[%s102] ss:$16 sm:%s103]
  %s105 = scalar_lea.vmem %s0, 640
  %s106 = smov 12
  %v107 = vld [vmem:[%s105] ss:$16 sm:%s106]
  %vm108 = vcmask 1043458
  %v109 = vsel %vm108, %v107, %v104
  %s110 = scalar_lea.vmem %s0, 640
  %s111 = smov 48
  %v112 = vld [vmem:[%s110] ss:$16 sm:%s111]
  %vm113 = vcmask 1045508
  %v114 = vsel %vm113, %v112, %v109
  %s115 = scalar_lea.vmem %s0, 640
  %s116 = smov 192
  %v117 = vld [vmem:[%s115] ss:$16 sm:%s116]
  %vm118 = vcmask 1047558
  %v119 = vsel %vm118, %v117, %v114
  %vm120 = vcmask 64512
  %s121 = scalar_lea.vmem %s1, 40
  %122 = vst.msk [vmem:[%s121] sm:$0xff] %vm120, %v119
  %s123 = scalar_lea.vmem %s0, 768
  %s124 = smov 3
  %v125 = vld [vmem:[%s123] ss:$16 sm:%s124]
  %s126 = scalar_lea.vmem %s0, 768
  %s127 = smov 12
  %v128 = vld [vmem:[%s126] ss:$16 sm:%s127]
  %vm129 = vcmask 1043458
  %v130 = vsel %vm129, %v128, %v125
  %s131 = scalar_lea.vmem %s0, 768
  %s132 = smov 48
  %v133 = vld [vmem:[%s131] ss:$16 sm:%s132]
  %vm134 = vcmask 1045508
  %v135 = vsel %vm134, %v133, %v130
  %s136 = scalar_lea.vmem %s0, 768
  %s137 = smov 192
  %v138 = vld [vmem:[%s136] ss:$16 sm:%s137]
  %vm139 = vcmask 1047558
  %v140 = vsel %vm139, %v138, %v135
  %vm141 = vcmask 64512
  %s142 = scalar_lea.vmem %s1, 48
  %143 = vst.msk [vmem:[%s142] sm:$0xff] %vm141, %v140
  %s144 = scalar_lea.vmem %s0, 896
  %s145 = smov 3
  %v146 = vld [vmem:[%s144] ss:$16 sm:%s145]
  %s147 = scalar_lea.vmem %s0, 896
  %s148 = smov 12
  %v149 = vld [vmem:[%s147] ss:$16 sm:%s148]
  %vm150 = vcmask 1043458
  %v151 = vsel %vm150, %v149, %v146
  %s152 = scalar_lea.vmem %s0, 896
  %s153 = smov 48
  %v154 = vld [vmem:[%s152] ss:$16 sm:%s153]
  %vm155 = vcmask 1045508
  %v156 = vsel %vm155, %v154, %v151
  %s157 = scalar_lea.vmem %s0, 896
  %s158 = smov 192
  %v159 = vld [vmem:[%s157] ss:$16 sm:%s158]
  %vm160 = vcmask 1047558
  %v161 = vsel %vm160, %v159, %v156
  %vm162 = vcmask 64512
  %s163 = scalar_lea.vmem %s1, 56
  %164 = vst.msk [vmem:[%s163] sm:$0xff] %vm162, %v161
  %s165 = scalar_lea.vmem %s0, 1024
  %s166 = smov 3
  %v167 = vld [vmem:[%s165] ss:$16 sm:%s166]
  %s168 = scalar_lea.vmem %s0, 1024
  %s169 = smov 12
  %v170 = vld [vmem:[%s168] ss:$16 sm:%s169]
  %vm171 = vcmask 1043458
  %v172 = vsel %vm171, %v170, %v167
  %s173 = scalar_lea.vmem %s0, 1024
  %s174 = smov 48
  %v175 = vld [vmem:[%s173] ss:$16 sm:%s174]
  %vm176 = vcmask 1045508
  %v177 = vsel %vm176, %v175, %v172
  %s178 = scalar_lea.vmem %s0, 1024
  %s179 = smov 192
  %v180 = vld [vmem:[%s178] ss:$16 sm:%s179]
  %vm181 = vcmask 1047558
  %v182 = vsel %vm181, %v180, %v177
  %vm183 = vcmask 64512
  %s184 = scalar_lea.vmem %s1, 64
  %185 = vst.msk [vmem:[%s184] sm:$0xff] %vm183, %v182
  %s186 = scalar_lea.vmem %s0, 15
  %s187 = smov 3
  %v188 = vld [vmem:[%s186] ss:$16 sm:%s187]
  %s189 = scalar_lea.vmem %s0, 15
  %s190 = smov 12
  %v191 = vld [vmem:[%s189] ss:$16 sm:%s190]
  %vm192 = vcmask 1043458
  %v193 = vsel %vm192, %v191, %v188
  %s194 = scalar_lea.vmem %s0, 15
  %s195 = smov 48
  %v196 = vld [vmem:[%s194] ss:$16 sm:%s195]
  %vm197 = vcmask 1045508
  %v198 = vsel %vm197, %v196, %v193
  %s199 = scalar_lea.vmem %s0, 15
  %s200 = smov 192
  %v201 = vld [vmem:[%s199] ss:$16 sm:%s200]
  %vm202 = vcmask 1047558
  %v203 = vsel %vm202, %v201, %v198
  %204 = vrot.lane.b32.xlu0 %v203, 120
  %v205 = vpop.permute.xlu0 %204
  %vm206 = vcmask 1048512
  %207 = vst.msk [vmem:[%s1] sm:$0xff] %vm206, %v205
  %s208 = scalar_lea.vmem %s0, 527
  %s209 = smov 3
  %v210 = vld [vmem:[%s208] ss:$16 sm:%s209]
  %s211 = scalar_lea.vmem %s0, 527
  %s212 = smov 12
  %v213 = vld [vmem:[%s211] ss:$16 sm:%s212]
  %vm214 = vcmask 1043458
  %v215 = vsel %vm214, %v213, %v210
  %s216 = scalar_lea.vmem %s0, 527
  %s217 = smov 48
  %v218 = vld [vmem:[%s216] ss:$16 sm:%s217]
  %vm219 = vcmask 1045508
  %v220 = vsel %vm219, %v218, %v215
  %s221 = scalar_lea.vmem %s0, 527
  %s222 = smov 192
  %v223 = vld [vmem:[%s221] ss:$16 sm:%s222]
  %vm224 = vcmask 1047558
  %v225 = vsel %vm224, %v223, %v220
  %226 = vrot.lane.b32.xlu0 %v225, 120
  %v227 = vpop.permute.xlu0 %226
  %vm228 = vcmask 1048512
  %s229 = scalar_lea.vmem %s1, 32
  %230 = vst.msk [vmem:[%s229] sm:$0xff] %vm228, %v227
  %s231 = scalar_lea.vmem %s0, 1039
  %s232 = smov 3
  %v233 = vld [vmem:[%s231] ss:$16 sm:%s232]
  %s234 = scalar_lea.vmem %s0, 1039
  %s235 = smov 12
  %v236 = vld [vmem:[%s234] ss:$16 sm:%s235]
  %vm237 = vcmask 1043458
  %v238 = vsel %vm237, %v236, %v233
  %s239 = scalar_lea.vmem %s0, 1039
  %s240 = smov 48
  %v241 = vld [vmem:[%s239] ss:$16 sm:%s240]
  %vm242 = vcmask 1045508
  %v243 = vsel %vm242, %v241, %v238
  %s244 = scalar_lea.vmem %s0, 1039
  %s245 = smov 192
  %v246 = vld [vmem:[%s244] ss:$16 sm:%s245]
  %vm247 = vcmask 1047558
  %v248 = vsel %vm247, %v246, %v243
  %249 = vrot.lane.b32.xlu0 %v248, 120
  %v250 = vpop.permute.xlu0 %249
  %vm251 = vcmask 1048512
  %s252 = scalar_lea.vmem %s1, 64
  %253 = vst.msk [vmem:[%s252] sm:$0xff] %vm251, %v250
  %s254 = scalar_lea.vmem %s0, 143
  %s255 = smov 3
  %v256 = vld [vmem:[%s254] ss:$16 sm:%s255]
  %s257 = scalar_lea.vmem %s0, 143
  %s258 = smov 12
  %v259 = vld [vmem:[%s257] ss:$16 sm:%s258]
  %vm260 = vcmask 1043458
  %v261 = vsel %vm260, %v259, %v256
  %s262 = scalar_lea.vmem %s0, 143
  %s263 = smov 48
  %v264 = vld [vmem:[%s262] ss:$16 sm:%s263]
  %vm265 = vcmask 1045508
  %v266 = vsel %vm265, %v264, %v261
  %s267 = scalar_lea.vmem %s0, 143
  %s268 = smov 192
  %v269 = vld [vmem:[%s267] ss:$16 sm:%s268]
  %vm270 = vcmask 1047558
  %v271 = vsel %vm270, %v269, %v266
  %272 = vrot.lane.b32.xlu0 %v271, 120
  %v273 = vpop.permute.xlu0 %272
  %vm274 = vcmask 1048512
  %s275 = scalar_lea.vmem %s1, 8
  %276 = vst.msk [vmem:[%s275] sm:$0xff] %vm274, %v273
  %s277 = scalar_lea.vmem %s0, 655
  %s278 = smov 3
  %v279 = vld [vmem:[%s277] ss:$16 sm:%s278]
  %s280 = scalar_lea.vmem %s0, 655
  %s281 = smov 12
  %v282 = vld [vmem:[%s280] ss:$16 sm:%s281]
  %vm283 = vcmask 1043458
  %v284 = vsel %vm283, %v282, %v279
  %s285 = scalar_lea.vmem %s0, 655
  %s286 = smov 48
  %v287 = vld [vmem:[%s285] ss:$16 sm:%s286]
  %vm288 = vcmask 1045508
  %v289 = vsel %vm288, %v287, %v284
  %s290 = scalar_lea.vmem %s0, 655
  %s291 = smov 192
  %v292 = vld [vmem:[%s290] ss:$16 sm:%s291]
  %vm293 = vcmask 1047558
  %v294 = vsel %vm293, %v292, %v289
  %295 = vrot.lane.b32.xlu0 %v294, 120
  %v296 = vpop.permute.xlu0 %295
  %vm297 = vcmask 1048512
  %s298 = scalar_lea.vmem %s1, 40
  %299 = vst.msk [vmem:[%s298] sm:$0xff] %vm297, %v296
  %s300 = scalar_lea.vmem %s0, 271
  %s301 = smov 3
  %v302 = vld [vmem:[%s300] ss:$16 sm:%s301]
  %s303 = scalar_lea.vmem %s0, 271
  %s304 = smov 12
  %v305 = vld [vmem:[%s303] ss:$16 sm:%s304]
  %vm306 = vcmask 1043458
  %v307 = vsel %vm306, %v305, %v302
  %s308 = scalar_lea.vmem %s0, 271
  %s309 = smov 48
  %v310 = vld [vmem:[%s308] ss:$16 sm:%s309]
  %vm311 = vcmask 1045508
  %v312 = vsel %vm311, %v310, %v307
  %s313 = scalar_lea.vmem %s0, 271
  %s314 = smov 192
  %v315 = vld [vmem:[%s313] ss:$16 sm:%s314]
  %vm316 = vcmask 1047558
  %v317 = vsel %vm316, %v315, %v312
  %318 = vrot.lane.b32.xlu0 %v317, 120
  %v319 = vpop.permute.xlu0 %318
  %vm320 = vcmask 1048512
  %s321 = scalar_lea.vmem %s1, 16
  %322 = vst.msk [vmem:[%s321] sm:$0xff] %vm320, %v319
  %s323 = scalar_lea.vmem %s0, 783
  %s324 = smov 3
  %v325 = vld [vmem:[%s323] ss:$16 sm:%s324]
  %s326 = scalar_lea.vmem %s0, 783
  %s327 = smov 12
  %v328 = vld [vmem:[%s326] ss:$16 sm:%s327]
  %vm329 = vcmask 1043458
  %v330 = vsel %vm329, %v328, %v325
  %s331 = scalar_lea.vmem %s0, 783
  %s332 = smov 48
  %v333 = vld [vmem:[%s331] ss:$16 sm:%s332]
  %vm334 = vcmask 1045508
  %v335 = vsel %vm334, %v333, %v330
  %s336 = scalar_lea.vmem %s0, 783
  %s337 = smov 192
  %v338 = vld [vmem:[%s336] ss:$16 sm:%s337]
  %vm339 = vcmask 1047558
  %v340 = vsel %vm339, %v338, %v335
  %341 = vrot.lane.b32.xlu0 %v340, 120
  %v342 = vpop.permute.xlu0 %341
  %vm343 = vcmask 1048512
  %s344 = scalar_lea.vmem %s1, 48
  %345 = vst.msk [vmem:[%s344] sm:$0xff] %vm343, %v342
  %s346 = scalar_lea.vmem %s0, 399
  %s347 = smov 3
  %v348 = vld [vmem:[%s346] ss:$16 sm:%s347]
  %s349 = scalar_lea.vmem %s0, 399
  %s350 = smov 12
  %v351 = vld [vmem:[%s349] ss:$16 sm:%s350]
  %vm352 = vcmask 1043458
  %v353 = vsel %vm352, %v351, %v348
  %s354 = scalar_lea.vmem %s0, 399
  %s355 = smov 48
  %v356 = vld [vmem:[%s354] ss:$16 sm:%s355]
  %vm357 = vcmask 1045508
  %v358 = vsel %vm357, %v356, %v353
  %s359 = scalar_lea.vmem %s0, 399
  %s360 = smov 192
  %v361 = vld [vmem:[%s359] ss:$16 sm:%s360]
  %vm362 = vcmask 1047558
  %v363 = vsel %vm362, %v361, %v358
  %364 = vrot.lane.b32.xlu0 %v363, 120
  %v365 = vpop.permute.xlu0 %364
  %vm366 = vcmask 1048512
  %s367 = scalar_lea.vmem %s1, 24
  %368 = vst.msk [vmem:[%s367] sm:$0xff] %vm366, %v365
  %s369 = scalar_lea.vmem %s0, 911
  %s370 = smov 3
  %v371 = vld [vmem:[%s369] ss:$16 sm:%s370]
  %s372 = scalar_lea.vmem %s0, 911
  %s373 = smov 12
  %v374 = vld [vmem:[%s372] ss:$16 sm:%s373]
  %vm375 = vcmask 1043458
  %v376 = vsel %vm375, %v374, %v371
  %s377 = scalar_lea.vmem %s0, 911
  %s378 = smov 48
  %v379 = vld [vmem:[%s377] ss:$16 sm:%s378]
  %vm380 = vcmask 1045508
  %v381 = vsel %vm380, %v379, %v376
  %s382 = scalar_lea.vmem %s0, 911
  %s383 = smov 192
  %v384 = vld [vmem:[%s382] ss:$16 sm:%s383]
  %vm385 = vcmask 1047558
  %v386 = vsel %vm385, %v384, %v381
  %387 = vrot.lane.b32.xlu0 %v386, 120
  %v388 = vpop.permute.xlu0 %387
  %vm389 = vcmask 1048512
  %s390 = scalar_lea.vmem %s1, 56
  %391 = vst.msk [vmem:[%s390] sm:$0xff] %vm389, %v388
  %s392 = scalar_lea.vmem %s0, 14
  %s393 = smov 3
  %v394 = vld [vmem:[%s392] ss:$16 sm:%s393]
  %s395 = scalar_lea.vmem %s0, 14
  %s396 = smov 12
  %v397 = vld [vmem:[%s395] ss:$16 sm:%s396]
  %vm398 = vcmask 1043458
  %v399 = vsel %vm398, %v397, %v394
  %s400 = scalar_lea.vmem %s0, 14
  %s401 = smov 48
  %v402 = vld [vmem:[%s400] ss:$16 sm:%s401]
  %vm403 = vcmask 1045508
  %v404 = vsel %vm403, %v402, %v399
  %s405 = scalar_lea.vmem %s0, 14
  %s406 = smov 192
  %v407 = vld [vmem:[%s405] ss:$16 sm:%s406]
  %vm408 = vcmask 1047558
  %v409 = vsel %vm408, %v407, %v404
  %410 = vrot.lane.b32.xlu0 %v409, 112
  %v411 = vpop.permute.xlu0 %410
  %vm412 = vcmask 982912
  %413 = vst.msk [vmem:[%s1] sm:$0xff] %vm412, %v411
  %s414 = scalar_lea.vmem %s0, 526
  %s415 = smov 3
  %v416 = vld [vmem:[%s414] ss:$16 sm:%s415]
  %s417 = scalar_lea.vmem %s0, 526
  %s418 = smov 12
  %v419 = vld [vmem:[%s417] ss:$16 sm:%s418]
  %vm420 = vcmask 1043458
  %v421 = vsel %vm420, %v419, %v416
  %s422 = scalar_lea.vmem %s0, 526
  %s423 = smov 48
  %v424 = vld [vmem:[%s422] ss:$16 sm:%s423]
  %vm425 = vcmask 1045508
  %v426 = vsel %vm425, %v424, %v421
  %s427 = scalar_lea.vmem %s0, 526
  %s428 = smov 192
  %v429 = vld [vmem:[%s427] ss:$16 sm:%s428]
  %vm430 = vcmask 1047558
  %v431 = vsel %vm430, %v429, %v426
  %432 = vrot.lane.b32.xlu0 %v431, 112
  %v433 = vpop.permute.xlu0 %432
  %vm434 = vcmask 982912
  %s435 = scalar_lea.vmem %s1, 32
  %436 = vst.msk [vmem:[%s435] sm:$0xff] %vm434, %v433
  %s437 = scalar_lea.vmem %s0, 1038
  %s438 = smov 3
  %v439 = vld [vmem:[%s437] ss:$16 sm:%s438]
  %s440 = scalar_lea.vmem %s0, 1038
  %s441 = smov 12
  %v442 = vld [vmem:[%s440] ss:$16 sm:%s441]
  %vm443 = vcmask 1043458
  %v444 = vsel %vm443, %v442, %v439
  %s445 = scalar_lea.vmem %s0, 1038
  %s446 = smov 48
  %v447 = vld [vmem:[%s445] ss:$16 sm:%s446]
  %vm448 = vcmask 1045508
  %v449 = vsel %vm448, %v447, %v444
  %s450 = scalar_lea.vmem %s0, 1038
  %s451 = smov 192
  %v452 = vld [vmem:[%s450] ss:$16 sm:%s451]
  %vm453 = vcmask 1047558
  %v454 = vsel %vm453, %v452, %v449
  %455 = vrot.lane.b32.xlu0 %v454, 112
  %v456 = vpop.permute.xlu0 %455
  %vm457 = vcmask 982912
  %s458 = scalar_lea.vmem %s1, 64
  %459 = vst.msk [vmem:[%s458] sm:$0xff] %vm457, %v456
  %s460 = scalar_lea.vmem %s0, 142
  %s461 = smov 3
  %v462 = vld [vmem:[%s460] ss:$16 sm:%s461]
  %s463 = scalar_lea.vmem %s0, 142
  %s464 = smov 12
  %v465 = vld [vmem:[%s463] ss:$16 sm:%s464]
  %vm466 = vcmask 1043458
  %v467 = vsel %vm466, %v465, %v462
  %s468 = scalar_lea.vmem %s0, 142
  %s469 = smov 48
  %v470 = vld [vmem:[%s468] ss:$16 sm:%s469]
  %vm471 = vcmask 1045508
  %v472 = vsel %vm471, %v470, %v467
  %s473 = scalar_lea.vmem %s0, 142
  %s474 = smov 192
  %v475 = vld [vmem:[%s473] ss:$16 sm:%s474]
  %vm476 = vcmask 1047558
  %v477 = vsel %vm476, %v475, %v472
  %478 = vrot.lane.b32.xlu0 %v477, 112
  %v479 = vpop.permute.xlu0 %478
  %vm480 = vcmask 982912
  %s481 = scalar_lea.vmem %s1, 8
  %482 = vst.msk [vmem:[%s481] sm:$0xff] %vm480, %v479
  %s483 = scalar_lea.vmem %s0, 654
  %s484 = smov 3
  %v485 = vld [vmem:[%s483] ss:$16 sm:%s484]
  %s486 = scalar_lea.vmem %s0, 654
  %s487 = smov 12
  %v488 = vld [vmem:[%s486] ss:$16 sm:%s487]
  %vm489 = vcmask 1043458
  %v490 = vsel %vm489, %v488, %v485
  %s491 = scalar_lea.vmem %s0, 654
  %s492 = smov 48
  %v493 = vld [vmem:[%s491] ss:$16 sm:%s492]
  %vm494 = vcmask 1045508
  %v495 = vsel %vm494, %v493, %v490
  %s496 = scalar_lea.vmem %s0, 654
  %s497 = smov 192
  %v498 = vld [vmem:[%s496] ss:$16 sm:%s497]
  %vm499 = vcmask 1047558
  %v500 = vsel %vm499, %v498, %v495
  %501 = vrot.lane.b32.xlu0 %v500, 112
  %v502 = vpop.permute.xlu0 %501
  %vm503 = vcmask 982912
  %s504 = scalar_lea.vmem %s1, 40
  %505 = vst.msk [vmem:[%s504] sm:$0xff] %vm503, %v502
  %s506 = scalar_lea.vmem %s0, 270
  %s507 = smov 3
  %v508 = vld [vmem:[%s506] ss:$16 sm:%s507]
  %s509 = scalar_lea.vmem %s0, 270
  %s510 = smov 12
  %v511 = vld [vmem:[%s509] ss:$16 sm:%s510]
  %vm512 = vcmask 1043458
  %v513 = vsel %vm512, %v511, %v508
  %s514 = scalar_lea.vmem %s0, 270
  %s515 = smov 48
  %v516 = vld [vmem:[%s514] ss:$16 sm:%s515]
  %vm517 = vcmask 1045508
  %v518 = vsel %vm517, %v516, %v513
  %s519 = scalar_lea.vmem %s0, 270
  %s520 = smov 192
  %v521 = vld [vmem:[%s519] ss:$16 sm:%s520]
  %vm522 = vcmask 1047558
  %v523 = vsel %vm522, %v521, %v518
  %524 = vrot.lane.b32.xlu0 %v523, 112
  %v525 = vpop.permute.xlu0 %524
  %vm526 = vcmask 982912
  %s527 = scalar_lea.vmem %s1, 16
  %528 = vst.msk [vmem:[%s527] sm:$0xff] %vm526, %v525
  %s529 = scalar_lea.vmem %s0, 782
  %s530 = smov 3
  %v531 = vld [vmem:[%s529] ss:$16 sm:%s530]
  %s532 = scalar_lea.vmem %s0, 782
  %s533 = smov 12
  %v534 = vld [vmem:[%s532] ss:$16 sm:%s533]
  %vm535 = vcmask 1043458
  %v536 = vsel %vm535, %v534, %v531
  %s537 = scalar_lea.vmem %s0, 782
  %s538 = smov 48
  %v539 = vld [vmem:[%s537] ss:$16 sm:%s538]
  %vm540 = vcmask 1045508
  %v541 = vsel %vm540, %v539, %v536
  %s542 = scalar_lea.vmem %s0, 782
  %s543 = smov 192
  %v544 = vld [vmem:[%s542] ss:$16 sm:%s543]
  %vm545 = vcmask 1047558
  %v546 = vsel %vm545, %v544, %v541
  %547 = vrot.lane.b32.xlu0 %v546, 112
  %v548 = vpop.permute.xlu0 %547
  %vm549 = vcmask 982912
  %s550 = scalar_lea.vmem %s1, 48
  %551 = vst.msk [vmem:[%s550] sm:$0xff] %vm549, %v548
  %s552 = scalar_lea.vmem %s0, 398
  %s553 = smov 3
  %v554 = vld [vmem:[%s552] ss:$16 sm:%s553]
  %s555 = scalar_lea.vmem %s0, 398
  %s556 = smov 12
  %v557 = vld [vmem:[%s555] ss:$16 sm:%s556]
  %vm558 = vcmask 1043458
  %v559 = vsel %vm558, %v557, %v554
  %s560 = scalar_lea.vmem %s0, 398
  %s561 = smov 48
  %v562 = vld [vmem:[%s560] ss:$16 sm:%s561]
  %vm563 = vcmask 1045508
  %v564 = vsel %vm563, %v562, %v559
  %s565 = scalar_lea.vmem %s0, 398
  %s566 = smov 192
  %v567 = vld [vmem:[%s565] ss:$16 sm:%s566]
  %vm568 = vcmask 1047558
  %v569 = vsel %vm568, %v567, %v564
  %570 = vrot.lane.b32.xlu0 %v569, 112
  %v571 = vpop.permute.xlu0 %570
  %vm572 = vcmask 982912
  %s573 = scalar_lea.vmem %s1, 24
  %574 = vst.msk [vmem:[%s573] sm:$0xff] %vm572, %v571
  %s575 = scalar_lea.vmem %s0, 910
  %s576 = smov 3
  %v577 = vld [vmem:[%s575] ss:$16 sm:%s576]
  %s578 = scalar_lea.vmem %s0, 910
  %s579 = smov 12
  %v580 = vld [vmem:[%s578] ss:$16 sm:%s579]
  %vm581 = vcmask 1043458
  %v582 = vsel %vm581, %v580, %v577
  %s583 = scalar_lea.vmem %s0, 910
  %s584 = smov 48
  %v585 = vld [vmem:[%s583] ss:$16 sm:%s584]
  %vm586 = vcmask 1045508
  %v587 = vsel %vm586, %v585, %v582
  %s588 = scalar_lea.vmem %s0, 910
  %s589 = smov 192
  %v590 = vld [vmem:[%s588] ss:$16 sm:%s589]
  %vm591 = vcmask 1047558
  %v592 = vsel %vm591, %v590, %v587
  %593 = vrot.lane.b32.xlu0 %v592, 112
  %v594 = vpop.permute.xlu0 %593
  %vm595 = vcmask 982912
  %s596 = scalar_lea.vmem %s1, 56
  %597 = vst.msk [vmem:[%s596] sm:$0xff] %vm595, %v594
  %s598 = scalar_lea.vmem %s0, 13
  %s599 = smov 3
  %v600 = vld [vmem:[%s598] ss:$16 sm:%s599]
  %s601 = scalar_lea.vmem %s0, 13
  %s602 = smov 12
  %v603 = vld [vmem:[%s601] ss:$16 sm:%s602]
  %vm604 = vcmask 1043458
  %v605 = vsel %vm604, %v603, %v600
  %s606 = scalar_lea.vmem %s0, 13
  %s607 = smov 48
  %v608 = vld [vmem:[%s606] ss:$16 sm:%s607]
  %vm609 = vcmask 1045508
  %v610 = vsel %vm609, %v608, %v605
  %s611 = scalar_lea.vmem %s0, 13
  %s612 = smov 192
  %v613 = vld [vmem:[%s611] ss:$16 sm:%s612]
  %vm614 = vcmask 1047558
  %v615 = vsel %vm614, %v613, %v610
  %616 = vrot.lane.b32.xlu0 %v615, 104
  %v617 = vpop.permute.xlu0 %616
  %vm618 = vcmask 917312
  %619 = vst.msk [vmem:[%s1] sm:$0xff] %vm618, %v617
  %s620 = scalar_lea.vmem %s0, 525
  %s621 = smov 3
  %v622 = vld [vmem:[%s620] ss:$16 sm:%s621]
  %s623 = scalar_lea.vmem %s0, 525
  %s624 = smov 12
  %v625 = vld [vmem:[%s623] ss:$16 sm:%s624]
  %vm626 = vcmask 1043458
  %v627 = vsel %vm626, %v625, %v622
  %s628 = scalar_lea.vmem %s0, 525
  %s629 = smov 48
  %v630 = vld [vmem:[%s628] ss:$16 sm:%s629]
  %vm631 = vcmask 1045508
  %v632 = vsel %vm631, %v630, %v627
  %s633 = scalar_lea.vmem %s0, 525
  %s634 = smov 192
  %v635 = vld [vmem:[%s633] ss:$16 sm:%s634]
  %vm636 = vcmask 1047558
  %v637 = vsel %vm636, %v635, %v632
  %638 = vrot.lane.b32.xlu0 %v637, 104
  %v639 = vpop.permute.xlu0 %638
  %vm640 = vcmask 917312
  %s641 = scalar_lea.vmem %s1, 32
  %642 = vst.msk [vmem:[%s641] sm:$0xff] %vm640, %v639
  %s643 = scalar_lea.vmem %s0, 1037
  %s644 = smov 3
  %v645 = vld [vmem:[%s643] ss:$16 sm:%s644]
  %s646 = scalar_lea.vmem %s0, 1037
  %s647 = smov 12
  %v648 = vld [vmem:[%s646] ss:$16 sm:%s647]
  %vm649 = vcmask 1043458
  %v650 = vsel %vm649, %v648, %v645
  %s651 = scalar_lea.vmem %s0, 1037
  %s652 = smov 48
  %v653 = vld [vmem:[%s651] ss:$16 sm:%s652]
  %vm654 = vcmask 1045508
  %v655 = vsel %vm654, %v653, %v650
  %s656 = scalar_lea.vmem %s0, 1037
  %s657 = smov 192
  %v658 = vld [vmem:[%s656] ss:$16 sm:%s657]
  %vm659 = vcmask 1047558
  %v660 = vsel %vm659, %v658, %v655
  %661 = vrot.lane.b32.xlu0 %v660, 104
  %v662 = vpop.permute.xlu0 %661
  %vm663 = vcmask 917312
  %s664 = scalar_lea.vmem %s1, 64
  %665 = vst.msk [vmem:[%s664] sm:$0xff] %vm663, %v662
  %s666 = scalar_lea.vmem %s0, 141
  %s667 = smov 3
  %v668 = vld [vmem:[%s666] ss:$16 sm:%s667]
  %s669 = scalar_lea.vmem %s0, 141
  %s670 = smov 12
  %v671 = vld [vmem:[%s669] ss:$16 sm:%s670]
  %vm672 = vcmask 1043458
  %v673 = vsel %vm672, %v671, %v668
  %s674 = scalar_lea.vmem %s0, 141
  %s675 = smov 48
  %v676 = vld [vmem:[%s674] ss:$16 sm:%s675]
  %vm677 = vcmask 1045508
  %v678 = vsel %vm677, %v676, %v673
  %s679 = scalar_lea.vmem %s0, 141
  %s680 = smov 192
  %v681 = vld [vmem:[%s679] ss:$16 sm:%s680]
  %vm682 = vcmask 1047558
  %v683 = vsel %vm682, %v681, %v678
  %684 = vrot.lane.b32.xlu0 %v683, 104
  %v685 = vpop.permute.xlu0 %684
  %vm686 = vcmask 917312
  %s687 = scalar_lea.vmem %s1, 8
  %688 = vst.msk [vmem:[%s687] sm:$0xff] %vm686, %v685
  %s689 = scalar_lea.vmem %s0, 653
  %s690 = smov 3
  %v691 = vld [vmem:[%s689] ss:$16 sm:%s690]
  %s692 = scalar_lea.vmem %s0, 653
  %s693 = smov 12
  %v694 = vld [vmem:[%s692] ss:$16 sm:%s693]
  %vm695 = vcmask 1043458
  %v696 = vsel %vm695, %v694, %v691
  %s697 = scalar_lea.vmem %s0, 653
  %s698 = smov 48
  %v699 = vld [vmem:[%s697] ss:$16 sm:%s698]
  %vm700 = vcmask 1045508
  %v701 = vsel %vm700, %v699, %v696
  %s702 = scalar_lea.vmem %s0, 653
  %s703 = smov 192
  %v704 = vld [vmem:[%s702] ss:$16 sm:%s703]
  %vm705 = vcmask 1047558
  %v706 = vsel %vm705, %v704, %v701
  %707 = vrot.lane.b32.xlu0 %v706, 104
  %v708 = vpop.permute.xlu0 %707
  %vm709 = vcmask 917312
  %s710 = scalar_lea.vmem %s1, 40
  %711 = vst.msk [vmem:[%s710] sm:$0xff] %vm709, %v708
  %s712 = scalar_lea.vmem %s0, 269
  %s713 = smov 3
  %v714 = vld [vmem:[%s712] ss:$16 sm:%s713]
  %s715 = scalar_lea.vmem %s0, 269
  %s716 = smov 12
  %v717 = vld [vmem:[%s715] ss:$16 sm:%s716]
  %vm718 = vcmask 1043458
  %v719 = vsel %vm718, %v717, %v714
  %s720 = scalar_lea.vmem %s0, 269
  %s721 = smov 48
  %v722 = vld [vmem:[%s720] ss:$16 sm:%s721]
  %vm723 = vcmask 1045508
  %v724 = vsel %vm723, %v722, %v719
  %s725 = scalar_lea.vmem %s0, 269
  %s726 = smov 192
  %v727 = vld [vmem:[%s725] ss:$16 sm:%s726]
  %vm728 = vcmask 1047558
  %v729 = vsel %vm728, %v727, %v724
  %730 = vrot.lane.b32.xlu0 %v729, 104
  %v731 = vpop.permute.xlu0 %730
  %vm732 = vcmask 917312
  %s733 = scalar_lea.vmem %s1, 16
  %734 = vst.msk [vmem:[%s733] sm:$0xff] %vm732, %v731
  %s735 = scalar_lea.vmem %s0, 781
  %s736 = smov 3
  %v737 = vld [vmem:[%s735] ss:$16 sm:%s736]
  %s738 = scalar_lea.vmem %s0, 781
  %s739 = smov 12
  %v740 = vld [vmem:[%s738] ss:$16 sm:%s739]
  %vm741 = vcmask 1043458
  %v742 = vsel %vm741, %v740, %v737
  %s743 = scalar_lea.vmem %s0, 781
  %s744 = smov 48
  %v745 = vld [vmem:[%s743] ss:$16 sm:%s744]
  %vm746 = vcmask 1045508
  %v747 = vsel %vm746, %v745, %v742
  %s748 = scalar_lea.vmem %s0, 781
  %s749 = smov 192
  %v750 = vld [vmem:[%s748] ss:$16 sm:%s749]
  %vm751 = vcmask 1047558
  %v752 = vsel %vm751, %v750, %v747
  %753 = vrot.lane.b32.xlu0 %v752, 104
  %v754 = vpop.permute.xlu0 %753
  %vm755 = vcmask 917312
  %s756 = scalar_lea.vmem %s1, 48
  %757 = vst.msk [vmem:[%s756] sm:$0xff] %vm755, %v754
  %s758 = scalar_lea.vmem %s0, 397
  %s759 = smov 3
  %v760 = vld [vmem:[%s758] ss:$16 sm:%s759]
  %s761 = scalar_lea.vmem %s0, 397
  %s762 = smov 12
  %v763 = vld [vmem:[%s761] ss:$16 sm:%s762]
  %vm764 = vcmask 1043458
  %v765 = vsel %vm764, %v763, %v760
  %s766 = scalar_lea.vmem %s0, 397
  %s767 = smov 48
  %v768 = vld [vmem:[%s766] ss:$16 sm:%s767]
  %vm769 = vcmask 1045508
  %v770 = vsel %vm769, %v768, %v765
  %s771 = scalar_lea.vmem %s0, 397
  %s772 = smov 192
  %v773 = vld [vmem:[%s771] ss:$16 sm:%s772]
  %vm774 = vcmask 1047558
  %v775 = vsel %vm774, %v773, %v770
  %776 = vrot.lane.b32.xlu0 %v775, 104
  %v777 = vpop.permute.xlu0 %776
  %vm778 = vcmask 917312
  %s779 = scalar_lea.vmem %s1, 24
  %780 = vst.msk [vmem:[%s779] sm:$0xff] %vm778, %v777
  %s781 = scalar_lea.vmem %s0, 909
  %s782 = smov 3
  %v783 = vld [vmem:[%s781] ss:$16 sm:%s782]
  %s784 = scalar_lea.vmem %s0, 909
  %s785 = smov 12
  %v786 = vld [vmem:[%s784] ss:$16 sm:%s785]
  %vm787 = vcmask 1043458
  %v788 = vsel %vm787, %v786, %v783
  %s789 = scalar_lea.vmem %s0, 909
  %s790 = smov 48
  %v791 = vld [vmem:[%s789] ss:$16 sm:%s790]
  %vm792 = vcmask 1045508
  %v793 = vsel %vm792, %v791, %v788
  %s794 = scalar_lea.vmem %s0, 909
  %s795 = smov 192
  %v796 = vld [vmem:[%s794] ss:$16 sm:%s795]
  %vm797 = vcmask 1047558
  %v798 = vsel %vm797, %v796, %v793
  %799 = vrot.lane.b32.xlu0 %v798, 104
  %v800 = vpop.permute.xlu0 %799
  %vm801 = vcmask 917312
  %s802 = scalar_lea.vmem %s1, 56
  %803 = vst.msk [vmem:[%s802] sm:$0xff] %vm801, %v800
  %s804 = scalar_lea.vmem %s0, 12
  %s805 = smov 3
  %v806 = vld [vmem:[%s804] ss:$16 sm:%s805]
  %s807 = scalar_lea.vmem %s0, 12
  %s808 = smov 12
  %v809 = vld [vmem:[%s807] ss:$16 sm:%s808]
  %vm810 = vcmask 1043458
  %v811 = vsel %vm810, %v809, %v806
  %s812 = scalar_lea.vmem %s0, 12
  %s813 = smov 48
  %v814 = vld [vmem:[%s812] ss:$16 sm:%s813]
  %vm815 = vcmask 1045508
  %v816 = vsel %vm815, %v814, %v811
  %s817 = scalar_lea.vmem %s0, 12
  %s818 = smov 192
  %v819 = vld [vmem:[%s817] ss:$16 sm:%s818]
  %vm820 = vcmask 1047558
  %v821 = vsel %vm820, %v819, %v816
  %822 = vrot.lane.b32.xlu0 %v821, 96
  %v823 = vpop.permute.xlu0 %822
  %vm824 = vcmask 851712
  %825 = vst.msk [vmem:[%s1] sm:$0xff] %vm824, %v823
  %s826 = scalar_lea.vmem %s0, 524
  %s827 = smov 3
  %v828 = vld [vmem:[%s826] ss:$16 sm:%s827]
  %s829 = scalar_lea.vmem %s0, 524
  %s830 = smov 12
  %v831 = vld [vmem:[%s829] ss:$16 sm:%s830]
  %vm832 = vcmask 1043458
  %v833 = vsel %vm832, %v831, %v828
  %s834 = scalar_lea.vmem %s0, 524
  %s835 = smov 48
  %v836 = vld [vmem:[%s834] ss:$16 sm:%s835]
  %vm837 = vcmask 1045508
  %v838 = vsel %vm837, %v836, %v833
  %s839 = scalar_lea.vmem %s0, 524
  %s840 = smov 192
  %v841 = vld [vmem:[%s839] ss:$16 sm:%s840]
  %vm842 = vcmask 1047558
  %v843 = vsel %vm842, %v841, %v838
  %844 = vrot.lane.b32.xlu0 %v843, 96
  %v845 = vpop.permute.xlu0 %844
  %vm846 = vcmask 851712
  %s847 = scalar_lea.vmem %s1, 32
  %848 = vst.msk [vmem:[%s847] sm:$0xff] %vm846, %v845
  %s849 = scalar_lea.vmem %s0, 1036
  %s850 = smov 3
  %v851 = vld [vmem:[%s849] ss:$16 sm:%s850]
  %s852 = scalar_lea.vmem %s0, 1036
  %s853 = smov 12
  %v854 = vld [vmem:[%s852] ss:$16 sm:%s853]
  %vm855 = vcmask 1043458
  %v856 = vsel %vm855, %v854, %v851
  %s857 = scalar_lea.vmem %s0, 1036
  %s858 = smov 48
  %v859 = vld [vmem:[%s857] ss:$16 sm:%s858]
  %vm860 = vcmask 1045508
  %v861 = vsel %vm860, %v859, %v856
  %s862 = scalar_lea.vmem %s0, 1036
  %s863 = smov 192
  %v864 = vld [vmem:[%s862] ss:$16 sm:%s863]
  %vm865 = vcmask 1047558
  %v866 = vsel %vm865, %v864, %v861
  %867 = vrot.lane.b32.xlu0 %v866, 96
  %v868 = vpop.permute.xlu0 %867
  %vm869 = vcmask 851712
  %s870 = scalar_lea.vmem %s1, 64
  %871 = vst.msk [vmem:[%s870] sm:$0xff] %vm869, %v868
  %s872 = scalar_lea.vmem %s0, 140
  %s873 = smov 3
  %v874 = vld [vmem:[%s872] ss:$16 sm:%s873]
  %s875 = scalar_lea.vmem %s0, 140
  %s876 = smov 12
  %v877 = vld [vmem:[%s875] ss:$16 sm:%s876]
  %vm878 = vcmask 1043458
  %v879 = vsel %vm878, %v877, %v874
  %s880 = scalar_lea.vmem %s0, 140
  %s881 = smov 48
  %v882 = vld [vmem:[%s880] ss:$16 sm:%s881]
  %vm883 = vcmask 1045508
  %v884 = vsel %vm883, %v882, %v879
  %s885 = scalar_lea.vmem %s0, 140
  %s886 = smov 192
  %v887 = vld [vmem:[%s885] ss:$16 sm:%s886]
  %vm888 = vcmask 1047558
  %v889 = vsel %vm888, %v887, %v884
  %890 = vrot.lane.b32.xlu0 %v889, 96
  %v891 = vpop.permute.xlu0 %890
  %vm892 = vcmask 851712
  %s893 = scalar_lea.vmem %s1, 8
  %894 = vst.msk [vmem:[%s893] sm:$0xff] %vm892, %v891
  %s895 = scalar_lea.vmem %s0, 652
  %s896 = smov 3
  %v897 = vld [vmem:[%s895] ss:$16 sm:%s896]
  %s898 = scalar_lea.vmem %s0, 652
  %s899 = smov 12
  %v900 = vld [vmem:[%s898] ss:$16 sm:%s899]
  %vm901 = vcmask 1043458
  %v902 = vsel %vm901, %v900, %v897
  %s903 = scalar_lea.vmem %s0, 652
  %s904 = smov 48
  %v905 = vld [vmem:[%s903] ss:$16 sm:%s904]
  %vm906 = vcmask 1045508
  %v907 = vsel %vm906, %v905, %v902
  %s908 = scalar_lea.vmem %s0, 652
  %s909 = smov 192
  %v910 = vld [vmem:[%s908] ss:$16 sm:%s909]
  %vm911 = vcmask 1047558
  %v912 = vsel %vm911, %v910, %v907
  %913 = vrot.lane.b32.xlu0 %v912, 96
  %v914 = vpop.permute.xlu0 %913
  %vm915 = vcmask 851712
  %s916 = scalar_lea.vmem %s1, 40
  %917 = vst.msk [vmem:[%s916] sm:$0xff] %vm915, %v914
  %s918 = scalar_lea.vmem %s0, 268
  %s919 = smov 3
  %v920 = vld [vmem:[%s918] ss:$16 sm:%s919]
  %s921 = scalar_lea.vmem %s0, 268
  %s922 = smov 12
  %v923 = vld [vmem:[%s921] ss:$16 sm:%s922]
  %vm924 = vcmask 1043458
  %v925 = vsel %vm924, %v923, %v920
  %s926 = scalar_lea.vmem %s0, 268
  %s927 = smov 48
  %v928 = vld [vmem:[%s926] ss:$16 sm:%s927]
  %vm929 = vcmask 1045508
  %v930 = vsel %vm929, %v928, %v925
  %s931 = scalar_lea.vmem %s0, 268
  %s932 = smov 192
  %v933 = vld [vmem:[%s931] ss:$16 sm:%s932]
  %vm934 = vcmask 1047558
  %v935 = vsel %vm934, %v933, %v930
  %936 = vrot.lane.b32.xlu0 %v935, 96
  %v937 = vpop.permute.xlu0 %936
  %vm938 = vcmask 851712
  %s939 = scalar_lea.vmem %s1, 16
  %940 = vst.msk [vmem:[%s939] sm:$0xff] %vm938, %v937
  %s941 = scalar_lea.vmem %s0, 780
  %s942 = smov 3
  %v943 = vld [vmem:[%s941] ss:$16 sm:%s942]
  %s944 = scalar_lea.vmem %s0, 780
  %s945 = smov 12
  %v946 = vld [vmem:[%s944] ss:$16 sm:%s945]
  %vm947 = vcmask 1043458
  %v948 = vsel %vm947, %v946, %v943
  %s949 = scalar_lea.vmem %s0, 780
  %s950 = smov 48
  %v951 = vld [vmem:[%s949] ss:$16 sm:%s950]
  %vm952 = vcmask 1045508
  %v953 = vsel %vm952, %v951, %v948
  %s954 = scalar_lea.vmem %s0, 780
  %s955 = smov 192
  %v956 = vld [vmem:[%s954] ss:$16 sm:%s955]
  %vm957 = vcmask 1047558
  %v958 = vsel %vm957, %v956, %v953
  %959 = vrot.lane.b32.xlu0 %v958, 96
  %v960 = vpop.permute.xlu0 %959
  %vm961 = vcmask 851712
  %s962 = scalar_lea.vmem %s1, 48
  %963 = vst.msk [vmem:[%s962] sm:$0xff] %vm961, %v960
  %s964 = scalar_lea.vmem %s0, 396
  %s965 = smov 3
  %v966 = vld [vmem:[%s964] ss:$16 sm:%s965]
  %s967 = scalar_lea.vmem %s0, 396
  %s968 = smov 12
  %v969 = vld [vmem:[%s967] ss:$16 sm:%s968]
  %vm970 = vcmask 1043458
  %v971 = vsel %vm970, %v969, %v966
  %s972 = scalar_lea.vmem %s0, 396
  %s973 = smov 48
  %v974 = vld [vmem:[%s972] ss:$16 sm:%s973]
  %vm975 = vcmask 1045508
  %v976 = vsel %vm975, %v974, %v971
  %s977 = scalar_lea.vmem %s0, 396
  %s978 = smov 192
  %v979 = vld [vmem:[%s977] ss:$16 sm:%s978]
  %vm980 = vcmask 1047558
  %v981 = vsel %vm980, %v979, %v976
  %982 = vrot.lane.b32.xlu0 %v981, 96
  %v983 = vpop.permute.xlu0 %982
  %vm984 = vcmask 851712
  %s985 = scalar_lea.vmem %s1, 24
  %986 = vst.msk [vmem:[%s985] sm:$0xff] %vm984, %v983
  %s987 = scalar_lea.vmem %s0, 908
  %s988 = smov 3
  %v989 = vld [vmem:[%s987] ss:$16 sm:%s988]
  %s990 = scalar_lea.vmem %s0, 908
  %s991 = smov 12
  %v992 = vld [vmem:[%s990] ss:$16 sm:%s991]
  %vm993 = vcmask 1043458
  %v994 = vsel %vm993, %v992, %v989
  %s995 = scalar_lea.vmem %s0, 908
  %s996 = smov 48
  %v997 = vld [vmem:[%s995] ss:$16 sm:%s996]
  %vm998 = vcmask 1045508
  %v999 = vsel %vm998, %v997, %v994
  %s1000 = scalar_lea.vmem %s0, 908
  %s1001 = smov 192
  %v1002 = vld [vmem:[%s1000] ss:$16 sm:%s1001]
  %vm1003 = vcmask 1047558
  %v1004 = vsel %vm1003, %v1002, %v999
  %1005 = vrot.lane.b32.xlu0 %v1004, 96
  %v1006 = vpop.permute.xlu0 %1005
  %vm1007 = vcmask 851712
  %s1008 = scalar_lea.vmem %s1, 56
  %1009 = vst.msk [vmem:[%s1008] sm:$0xff] %vm1007, %v1006
  %s1010 = scalar_lea.vmem %s0, 11
  %s1011 = smov 3
  %v1012 = vld [vmem:[%s1010] ss:$16 sm:%s1011]
  %s1013 = scalar_lea.vmem %s0, 11
  %s1014 = smov 12
  %v1015 = vld [vmem:[%s1013] ss:$16 sm:%s1014]
  %vm1016 = vcmask 1043458
  %v1017 = vsel %vm1016, %v1015, %v1012
  %s1018 = scalar_lea.vmem %s0, 11
  %s1019 = smov 48
  %v1020 = vld [vmem:[%s1018] ss:$16 sm:%s1019]
  %vm1021 = vcmask 1045508
  %v1022 = vsel %vm1021, %v1020, %v1017
  %s1023 = scalar_lea.vmem %s0, 11
  %s1024 = smov 192
  %v1025 = vld [vmem:[%s1023] ss:$16 sm:%s1024]
  %vm1026 = vcmask 1047558
  %v1027 = vsel %vm1026, %v1025, %v1022
  %1028 = vrot.lane.b32.xlu0 %v1027, 88
  %v1029 = vpop.permute.xlu0 %1028
  %vm1030 = vcmask 786112
  %1031 = vst.msk [vmem:[%s1] sm:$0xff] %vm1030, %v1029
  %s1032 = scalar_lea.vmem %s0, 523
  %s1033 = smov 3
  %v1034 = vld [vmem:[%s1032] ss:$16 sm:%s1033]
  %s1035 = scalar_lea.vmem %s0, 523
  %s1036 = smov 12
  %v1037 = vld [vmem:[%s1035] ss:$16 sm:%s1036]
  %vm1038 = vcmask 1043458
  %v1039 = vsel %vm1038, %v1037, %v1034
  %s1040 = scalar_lea.vmem %s0, 523
  %s1041 = smov 48
  %v1042 = vld [vmem:[%s1040] ss:$16 sm:%s1041]
  %vm1043 = vcmask 1045508
  %v1044 = vsel %vm1043, %v1042, %v1039
  %s1045 = scalar_lea.vmem %s0, 523
  %s1046 = smov 192
  %v1047 = vld [vmem:[%s1045] ss:$16 sm:%s1046]
  %vm1048 = vcmask 1047558
  %v1049 = vsel %vm1048, %v1047, %v1044
  %1050 = vrot.lane.b32.xlu0 %v1049, 88
  %v1051 = vpop.permute.xlu0 %1050
  %vm1052 = vcmask 786112
  %s1053 = scalar_lea.vmem %s1, 32
  %1054 = vst.msk [vmem:[%s1053] sm:$0xff] %vm1052, %v1051
  %s1055 = scalar_lea.vmem %s0, 1035
  %s1056 = smov 3
  %v1057 = vld [vmem:[%s1055] ss:$16 sm:%s1056]
  %s1058 = scalar_lea.vmem %s0, 1035
  %s1059 = smov 12
  %v1060 = vld [vmem:[%s1058] ss:$16 sm:%s1059]
  %vm1061 = vcmask 1043458
  %v1062 = vsel %vm1061, %v1060, %v1057
  %s1063 = scalar_lea.vmem %s0, 1035
  %s1064 = smov 48
  %v1065 = vld [vmem:[%s1063] ss:$16 sm:%s1064]
  %vm1066 = vcmask 1045508
  %v1067 = vsel %vm1066, %v1065, %v1062
  %s1068 = scalar_lea.vmem %s0, 1035
  %s1069 = smov 192
  %v1070 = vld [vmem:[%s1068] ss:$16 sm:%s1069]
  %vm1071 = vcmask 1047558
  %v1072 = vsel %vm1071, %v1070, %v1067
  %1073 = vrot.lane.b32.xlu0 %v1072, 88
  %v1074 = vpop.permute.xlu0 %1073
  %vm1075 = vcmask 786112
  %s1076 = scalar_lea.vmem %s1, 64
  %1077 = vst.msk [vmem:[%s1076] sm:$0xff] %vm1075, %v1074
  %s1078 = scalar_lea.vmem %s0, 139
  %s1079 = smov 3
  %v1080 = vld [vmem:[%s1078] ss:$16 sm:%s1079]
  %s1081 = scalar_lea.vmem %s0, 139
  %s1082 = smov 12
  %v1083 = vld [vmem:[%s1081] ss:$16 sm:%s1082]
  %vm1084 = vcmask 1043458
  %v1085 = vsel %vm1084, %v1083, %v1080
  %s1086 = scalar_lea.vmem %s0, 139
  %s1087 = smov 48
  %v1088 = vld [vmem:[%s1086] ss:$16 sm:%s1087]
  %vm1089 = vcmask 1045508
  %v1090 = vsel %vm1089, %v1088, %v1085
  %s1091 = scalar_lea.vmem %s0, 139
  %s1092 = smov 192
  %v1093 = vld [vmem:[%s1091] ss:$16 sm:%s1092]
  %vm1094 = vcmask 1047558
  %v1095 = vsel %vm1094, %v1093, %v1090
  %1096 = vrot.lane.b32.xlu0 %v1095, 88
  %v1097 = vpop.permute.xlu0 %1096
  %vm1098 = vcmask 786112
  %s1099 = scalar_lea.vmem %s1, 8
  %1100 = vst.msk [vmem:[%s1099] sm:$0xff] %vm1098, %v1097
  %s1101 = scalar_lea.vmem %s0, 651
  %s1102 = smov 3
  %v1103 = vld [vmem:[%s1101] ss:$16 sm:%s1102]
  %s1104 = scalar_lea.vmem %s0, 651
  %s1105 = smov 12
  %v1106 = vld [vmem:[%s1104] ss:$16 sm:%s1105]
  %vm1107 = vcmask 1043458
  %v1108 = vsel %vm1107, %v1106, %v1103
  %s1109 = scalar_lea.vmem %s0, 651
  %s1110 = smov 48
  %v1111 = vld [vmem:[%s1109] ss:$16 sm:%s1110]
  %vm1112 = vcmask 1045508
  %v1113 = vsel %vm1112, %v1111, %v1108
  %s1114 = scalar_lea.vmem %s0, 651
  %s1115 = smov 192
  %v1116 = vld [vmem:[%s1114] ss:$16 sm:%s1115]
  %vm1117 = vcmask 1047558
  %v1118 = vsel %vm1117, %v1116, %v1113
  %1119 = vrot.lane.b32.xlu0 %v1118, 88
  %v1120 = vpop.permute.xlu0 %1119
  %vm1121 = vcmask 786112
  %s1122 = scalar_lea.vmem %s1, 40
  %1123 = vst.msk [vmem:[%s1122] sm:$0xff] %vm1121, %v1120
  %s1124 = scalar_lea.vmem %s0, 267
  %s1125 = smov 3
  %v1126 = vld [vmem:[%s1124] ss:$16 sm:%s1125]
  %s1127 = scalar_lea.vmem %s0, 267
  %s1128 = smov 12
  %v1129 = vld [vmem:[%s1127] ss:$16 sm:%s1128]
  %vm1130 = vcmask 1043458
  %v1131 = vsel %vm1130, %v1129, %v1126
  %s1132 = scalar_lea.vmem %s0, 267
  %s1133 = smov 48
  %v1134 = vld [vmem:[%s1132] ss:$16 sm:%s1133]
  %vm1135 = vcmask 1045508
  %v1136 = vsel %vm1135, %v1134, %v1131
  %s1137 = scalar_lea.vmem %s0, 267
  %s1138 = smov 192
  %v1139 = vld [vmem:[%s1137] ss:$16 sm:%s1138]
  %vm1140 = vcmask 1047558
  %v1141 = vsel %vm1140, %v1139, %v1136
  %1142 = vrot.lane.b32.xlu0 %v1141, 88
  %v1143 = vpop.permute.xlu0 %1142
  %vm1144 = vcmask 786112
  %s1145 = scalar_lea.vmem %s1, 16
  %1146 = vst.msk [vmem:[%s1145] sm:$0xff] %vm1144, %v1143
  %s1147 = scalar_lea.vmem %s0, 779
  %s1148 = smov 3
  %v1149 = vld [vmem:[%s1147] ss:$16 sm:%s1148]
  %s1150 = scalar_lea.vmem %s0, 779
  %s1151 = smov 12
  %v1152 = vld [vmem:[%s1150] ss:$16 sm:%s1151]
  %vm1153 = vcmask 1043458
  %v1154 = vsel %vm1153, %v1152, %v1149
  %s1155 = scalar_lea.vmem %s0, 779
  %s1156 = smov 48
  %v1157 = vld [vmem:[%s1155] ss:$16 sm:%s1156]
  %vm1158 = vcmask 1045508
  %v1159 = vsel %vm1158, %v1157, %v1154
  %s1160 = scalar_lea.vmem %s0, 779
  %s1161 = smov 192
  %v1162 = vld [vmem:[%s1160] ss:$16 sm:%s1161]
  %vm1163 = vcmask 1047558
  %v1164 = vsel %vm1163, %v1162, %v1159
  %1165 = vrot.lane.b32.xlu0 %v1164, 88
  %v1166 = vpop.permute.xlu0 %1165
  %vm1167 = vcmask 786112
  %s1168 = scalar_lea.vmem %s1, 48
  %1169 = vst.msk [vmem:[%s1168] sm:$0xff] %vm1167, %v1166
  %s1170 = scalar_lea.vmem %s0, 395
  %s1171 = smov 3
  %v1172 = vld [vmem:[%s1170] ss:$16 sm:%s1171]
  %s1173 = scalar_lea.vmem %s0, 395
  %s1174 = smov 12
  %v1175 = vld [vmem:[%s1173] ss:$16 sm:%s1174]
  %vm1176 = vcmask 1043458
  %v1177 = vsel %vm1176, %v1175, %v1172
  %s1178 = scalar_lea.vmem %s0, 395
  %s1179 = smov 48
  %v1180 = vld [vmem:[%s1178] ss:$16 sm:%s1179]
  %vm1181 = vcmask 1045508
  %v1182 = vsel %vm1181, %v1180, %v1177
  %s1183 = scalar_lea.vmem %s0, 395
  %s1184 = smov 192
  %v1185 = vld [vmem:[%s1183] ss:$16 sm:%s1184]
  %vm1186 = vcmask 1047558
  %v1187 = vsel %vm1186, %v1185, %v1182
  %1188 = vrot.lane.b32.xlu0 %v1187, 88
  %v1189 = vpop.permute.xlu0 %1188
  %vm1190 = vcmask 786112
  %s1191 = scalar_lea.vmem %s1, 24
  %1192 = vst.msk [vmem:[%s1191] sm:$0xff] %vm1190, %v1189
  %s1193 = scalar_lea.vmem %s0, 907
  %s1194 = smov 3
  %v1195 = vld [vmem:[%s1193] ss:$16 sm:%s1194]
  %s1196 = scalar_lea.vmem %s0, 907
  %s1197 = smov 12
  %v1198 = vld [vmem:[%s1196] ss:$16 sm:%s1197]
  %vm1199 = vcmask 1043458
  %v1200 = vsel %vm1199, %v1198, %v1195
  %s1201 = scalar_lea.vmem %s0, 907
  %s1202 = smov 48
  %v1203 = vld [vmem:[%s1201] ss:$16 sm:%s1202]
  %vm1204 = vcmask 1045508
  %v1205 = vsel %vm1204, %v1203, %v1200
  %s1206 = scalar_lea.vmem %s0, 907
  %s1207 = smov 192
  %v1208 = vld [vmem:[%s1206] ss:$16 sm:%s1207]
  %vm1209 = vcmask 1047558
  %v1210 = vsel %vm1209, %v1208, %v1205
  %1211 = vrot.lane.b32.xlu0 %v1210, 88
  %v1212 = vpop.permute.xlu0 %1211
  %vm1213 = vcmask 786112
  %s1214 = scalar_lea.vmem %s1, 56
  %1215 = vst.msk [vmem:[%s1214] sm:$0xff] %vm1213, %v1212
  %s1216 = scalar_lea.vmem %s0, 10
  %s1217 = smov 3
  %v1218 = vld [vmem:[%s1216] ss:$16 sm:%s1217]
  %s1219 = scalar_lea.vmem %s0, 10
  %s1220 = smov 12
  %v1221 = vld [vmem:[%s1219] ss:$16 sm:%s1220]
  %vm1222 = vcmask 1043458
  %v1223 = vsel %vm1222, %v1221, %v1218
  %s1224 = scalar_lea.vmem %s0, 10
  %s1225 = smov 48
  %v1226 = vld [vmem:[%s1224] ss:$16 sm:%s1225]
  %vm1227 = vcmask 1045508
  %v1228 = vsel %vm1227, %v1226, %v1223
  %s1229 = scalar_lea.vmem %s0, 10
  %s1230 = smov 192
  %v1231 = vld [vmem:[%s1229] ss:$16 sm:%s1230]
  %vm1232 = vcmask 1047558
  %v1233 = vsel %vm1232, %v1231, %v1228
  %1234 = vrot.lane.b32.xlu0 %v1233, 80
  %v1235 = vpop.permute.xlu0 %1234
  %vm1236 = vcmask 720512
  %1237 = vst.msk [vmem:[%s1] sm:$0xff] %vm1236, %v1235
  %s1238 = scalar_lea.vmem %s0, 522
  %s1239 = smov 3
  %v1240 = vld [vmem:[%s1238] ss:$16 sm:%s1239]
  %s1241 = scalar_lea.vmem %s0, 522
  %s1242 = smov 12
  %v1243 = vld [vmem:[%s1241] ss:$16 sm:%s1242]
  %vm1244 = vcmask 1043458
  %v1245 = vsel %vm1244, %v1243, %v1240
  %s1246 = scalar_lea.vmem %s0, 522
  %s1247 = smov 48
  %v1248 = vld [vmem:[%s1246] ss:$16 sm:%s1247]
  %vm1249 = vcmask 1045508
  %v1250 = vsel %vm1249, %v1248, %v1245
  %s1251 = scalar_lea.vmem %s0, 522
  %s1252 = smov 192
  %v1253 = vld [vmem:[%s1251] ss:$16 sm:%s1252]
  %vm1254 = vcmask 1047558
  %v1255 = vsel %vm1254, %v1253, %v1250
  %1256 = vrot.lane.b32.xlu0 %v1255, 80
  %v1257 = vpop.permute.xlu0 %1256
  %vm1258 = vcmask 720512
  %s1259 = scalar_lea.vmem %s1, 32
  %1260 = vst.msk [vmem:[%s1259] sm:$0xff] %vm1258, %v1257
  %s1261 = scalar_lea.vmem %s0, 1034
  %s1262 = smov 3
  %v1263 = vld [vmem:[%s1261] ss:$16 sm:%s1262]
  %s1264 = scalar_lea.vmem %s0, 1034
  %s1265 = smov 12
  %v1266 = vld [vmem:[%s1264] ss:$16 sm:%s1265]
  %vm1267 = vcmask 1043458
  %v1268 = vsel %vm1267, %v1266, %v1263
  %s1269 = scalar_lea.vmem %s0, 1034
  %s1270 = smov 48
  %v1271 = vld [vmem:[%s1269] ss:$16 sm:%s1270]
  %vm1272 = vcmask 1045508
  %v1273 = vsel %vm1272, %v1271, %v1268
  %s1274 = scalar_lea.vmem %s0, 1034
  %s1275 = smov 192
  %v1276 = vld [vmem:[%s1274] ss:$16 sm:%s1275]
  %vm1277 = vcmask 1047558
  %v1278 = vsel %vm1277, %v1276, %v1273
  %1279 = vrot.lane.b32.xlu0 %v1278, 80
  %v1280 = vpop.permute.xlu0 %1279
  %vm1281 = vcmask 720512
  %s1282 = scalar_lea.vmem %s1, 64
  %1283 = vst.msk [vmem:[%s1282] sm:$0xff] %vm1281, %v1280
  %s1284 = scalar_lea.vmem %s0, 138
  %s1285 = smov 3
  %v1286 = vld [vmem:[%s1284] ss:$16 sm:%s1285]
  %s1287 = scalar_lea.vmem %s0, 138
  %s1288 = smov 12
  %v1289 = vld [vmem:[%s1287] ss:$16 sm:%s1288]
  %vm1290 = vcmask 1043458
  %v1291 = vsel %vm1290, %v1289, %v1286
  %s1292 = scalar_lea.vmem %s0, 138
  %s1293 = smov 48
  %v1294 = vld [vmem:[%s1292] ss:$16 sm:%s1293]
  %vm1295 = vcmask 1045508
  %v1296 = vsel %vm1295, %v1294, %v1291
  %s1297 = scalar_lea.vmem %s0, 138
  %s1298 = smov 192
  %v1299 = vld [vmem:[%s1297] ss:$16 sm:%s1298]
  %vm1300 = vcmask 1047558
  %v1301 = vsel %vm1300, %v1299, %v1296
  %1302 = vrot.lane.b32.xlu0 %v1301, 80
  %v1303 = vpop.permute.xlu0 %1302
  %vm1304 = vcmask 720512
  %s1305 = scalar_lea.vmem %s1, 8
  %1306 = vst.msk [vmem:[%s1305] sm:$0xff] %vm1304, %v1303
  %s1307 = scalar_lea.vmem %s0, 650
  %s1308 = smov 3
  %v1309 = vld [vmem:[%s1307] ss:$16 sm:%s1308]
  %s1310 = scalar_lea.vmem %s0, 650
  %s1311 = smov 12
  %v1312 = vld [vmem:[%s1310] ss:$16 sm:%s1311]
  %vm1313 = vcmask 1043458
  %v1314 = vsel %vm1313, %v1312, %v1309
  %s1315 = scalar_lea.vmem %s0, 650
  %s1316 = smov 48
  %v1317 = vld [vmem:[%s1315] ss:$16 sm:%s1316]
  %vm1318 = vcmask 1045508
  %v1319 = vsel %vm1318, %v1317, %v1314
  %s1320 = scalar_lea.vmem %s0, 650
  %s1321 = smov 192
  %v1322 = vld [vmem:[%s1320] ss:$16 sm:%s1321]
  %vm1323 = vcmask 1047558
  %v1324 = vsel %vm1323, %v1322, %v1319
  %1325 = vrot.lane.b32.xlu0 %v1324, 80
  %v1326 = vpop.permute.xlu0 %1325
  %vm1327 = vcmask 720512
  %s1328 = scalar_lea.vmem %s1, 40
  %1329 = vst.msk [vmem:[%s1328] sm:$0xff] %vm1327, %v1326
  %s1330 = scalar_lea.vmem %s0, 266
  %s1331 = smov 3
  %v1332 = vld [vmem:[%s1330] ss:$16 sm:%s1331]
  %s1333 = scalar_lea.vmem %s0, 266
  %s1334 = smov 12
  %v1335 = vld [vmem:[%s1333] ss:$16 sm:%s1334]
  %vm1336 = vcmask 1043458
  %v1337 = vsel %vm1336, %v1335, %v1332
  %s1338 = scalar_lea.vmem %s0, 266
  %s1339 = smov 48
  %v1340 = vld [vmem:[%s1338] ss:$16 sm:%s1339]
  %vm1341 = vcmask 1045508
  %v1342 = vsel %vm1341, %v1340, %v1337
  %s1343 = scalar_lea.vmem %s0, 266
  %s1344 = smov 192
  %v1345 = vld [vmem:[%s1343] ss:$16 sm:%s1344]
  %vm1346 = vcmask 1047558
  %v1347 = vsel %vm1346, %v1345, %v1342
  %1348 = vrot.lane.b32.xlu0 %v1347, 80
  %v1349 = vpop.permute.xlu0 %1348
  %vm1350 = vcmask 720512
  %s1351 = scalar_lea.vmem %s1, 16
  %1352 = vst.msk [vmem:[%s1351] sm:$0xff] %vm1350, %v1349
  %s1353 = scalar_lea.vmem %s0, 778
  %s1354 = smov 3
  %v1355 = vld [vmem:[%s1353] ss:$16 sm:%s1354]
  %s1356 = scalar_lea.vmem %s0, 778
  %s1357 = smov 12
  %v1358 = vld [vmem:[%s1356] ss:$16 sm:%s1357]
  %vm1359 = vcmask 1043458
  %v1360 = vsel %vm1359, %v1358, %v1355
  %s1361 = scalar_lea.vmem %s0, 778
  %s1362 = smov 48
  %v1363 = vld [vmem:[%s1361] ss:$16 sm:%s1362]
  %vm1364 = vcmask 1045508
  %v1365 = vsel %vm1364, %v1363, %v1360
  %s1366 = scalar_lea.vmem %s0, 778
  %s1367 = smov 192
  %v1368 = vld [vmem:[%s1366] ss:$16 sm:%s1367]
  %vm1369 = vcmask 1047558
  %v1370 = vsel %vm1369, %v1368, %v1365
  %1371 = vrot.lane.b32.xlu0 %v1370, 80
  %v1372 = vpop.permute.xlu0 %1371
  %vm1373 = vcmask 720512
  %s1374 = scalar_lea.vmem %s1, 48
  %1375 = vst.msk [vmem:[%s1374] sm:$0xff] %vm1373, %v1372
  %s1376 = scalar_lea.vmem %s0, 394
  %s1377 = smov 3
  %v1378 = vld [vmem:[%s1376] ss:$16 sm:%s1377]
  %s1379 = scalar_lea.vmem %s0, 394
  %s1380 = smov 12
  %v1381 = vld [vmem:[%s1379] ss:$16 sm:%s1380]
  %vm1382 = vcmask 1043458
  %v1383 = vsel %vm1382, %v1381, %v1378
  %s1384 = scalar_lea.vmem %s0, 394
  %s1385 = smov 48
  %v1386 = vld [vmem:[%s1384] ss:$16 sm:%s1385]
  %vm1387 = vcmask 1045508
  %v1388 = vsel %vm1387, %v1386, %v1383
  %s1389 = scalar_lea.vmem %s0, 394
  %s1390 = smov 192
  %v1391 = vld [vmem:[%s1389] ss:$16 sm:%s1390]
  %vm1392 = vcmask 1047558
  %v1393 = vsel %vm1392, %v1391, %v1388
  %1394 = vrot.lane.b32.xlu0 %v1393, 80
  %v1395 = vpop.permute.xlu0 %1394
  %vm1396 = vcmask 720512
  %s1397 = scalar_lea.vmem %s1, 24
  %1398 = vst.msk [vmem:[%s1397] sm:$0xff] %vm1396, %v1395
  %s1399 = scalar_lea.vmem %s0, 906
  %s1400 = smov 3
  %v1401 = vld [vmem:[%s1399] ss:$16 sm:%s1400]
  %s1402 = scalar_lea.vmem %s0, 906
  %s1403 = smov 12
  %v1404 = vld [vmem:[%s1402] ss:$16 sm:%s1403]
  %vm1405 = vcmask 1043458
  %v1406 = vsel %vm1405, %v1404, %v1401
  %s1407 = scalar_lea.vmem %s0, 906
  %s1408 = smov 48
  %v1409 = vld [vmem:[%s1407] ss:$16 sm:%s1408]
  %vm1410 = vcmask 1045508
  %v1411 = vsel %vm1410, %v1409, %v1406
  %s1412 = scalar_lea.vmem %s0, 906
  %s1413 = smov 192
  %v1414 = vld [vmem:[%s1412] ss:$16 sm:%s1413]
  %vm1415 = vcmask 1047558
  %v1416 = vsel %vm1415, %v1414, %v1411
  %1417 = vrot.lane.b32.xlu0 %v1416, 80
  %v1418 = vpop.permute.xlu0 %1417
  %vm1419 = vcmask 720512
  %s1420 = scalar_lea.vmem %s1, 56
  %1421 = vst.msk [vmem:[%s1420] sm:$0xff] %vm1419, %v1418
  %s1422 = scalar_lea.vmem %s0, 9
  %s1423 = smov 3
  %v1424 = vld [vmem:[%s1422] ss:$16 sm:%s1423]
  %s1425 = scalar_lea.vmem %s0, 9
  %s1426 = smov 12
  %v1427 = vld [vmem:[%s1425] ss:$16 sm:%s1426]
  %vm1428 = vcmask 1043458
  %v1429 = vsel %vm1428, %v1427, %v1424
  %s1430 = scalar_lea.vmem %s0, 9
  %s1431 = smov 48
  %v1432 = vld [vmem:[%s1430] ss:$16 sm:%s1431]
  %vm1433 = vcmask 1045508
  %v1434 = vsel %vm1433, %v1432, %v1429
  %s1435 = scalar_lea.vmem %s0, 9
  %s1436 = smov 192
  %v1437 = vld [vmem:[%s1435] ss:$16 sm:%s1436]
  %vm1438 = vcmask 1047558
  %v1439 = vsel %vm1438, %v1437, %v1434
  %1440 = vrot.lane.b32.xlu0 %v1439, 72
  %v1441 = vpop.permute.xlu0 %1440
  %vm1442 = vcmask 654912
  %1443 = vst.msk [vmem:[%s1] sm:$0xff] %vm1442, %v1441
  %s1444 = scalar_lea.vmem %s0, 521
  %s1445 = smov 3
  %v1446 = vld [vmem:[%s1444] ss:$16 sm:%s1445]
  %s1447 = scalar_lea.vmem %s0, 521
  %s1448 = smov 12
  %v1449 = vld [vmem:[%s1447] ss:$16 sm:%s1448]
  %vm1450 = vcmask 1043458
  %v1451 = vsel %vm1450, %v1449, %v1446
  %s1452 = scalar_lea.vmem %s0, 521
  %s1453 = smov 48
  %v1454 = vld [vmem:[%s1452] ss:$16 sm:%s1453]
  %vm1455 = vcmask 1045508
  %v1456 = vsel %vm1455, %v1454, %v1451
  %s1457 = scalar_lea.vmem %s0, 521
  %s1458 = smov 192
  %v1459 = vld [vmem:[%s1457] ss:$16 sm:%s1458]
  %vm1460 = vcmask 1047558
  %v1461 = vsel %vm1460, %v1459, %v1456
  %1462 = vrot.lane.b32.xlu0 %v1461, 72
  %v1463 = vpop.permute.xlu0 %1462
  %vm1464 = vcmask 654912
  %s1465 = scalar_lea.vmem %s1, 32
  %1466 = vst.msk [vmem:[%s1465] sm:$0xff] %vm1464, %v1463
  %s1467 = scalar_lea.vmem %s0, 1033
  %s1468 = smov 3
  %v1469 = vld [vmem:[%s1467] ss:$16 sm:%s1468]
  %s1470 = scalar_lea.vmem %s0, 1033
  %s1471 = smov 12
  %v1472 = vld [vmem:[%s1470] ss:$16 sm:%s1471]
  %vm1473 = vcmask 1043458
  %v1474 = vsel %vm1473, %v1472, %v1469
  %s1475 = scalar_lea.vmem %s0, 1033
  %s1476 = smov 48
  %v1477 = vld [vmem:[%s1475] ss:$16 sm:%s1476]
  %vm1478 = vcmask 1045508
  %v1479 = vsel %vm1478, %v1477, %v1474
  %s1480 = scalar_lea.vmem %s0, 1033
  %s1481 = smov 192
  %v1482 = vld [vmem:[%s1480] ss:$16 sm:%s1481]
  %vm1483 = vcmask 1047558
  %v1484 = vsel %vm1483, %v1482, %v1479
  %1485 = vrot.lane.b32.xlu0 %v1484, 72
  %v1486 = vpop.permute.xlu0 %1485
  %vm1487 = vcmask 654912
  %s1488 = scalar_lea.vmem %s1, 64
  %1489 = vst.msk [vmem:[%s1488] sm:$0xff] %vm1487, %v1486
  %s1490 = scalar_lea.vmem %s0, 137
  %s1491 = smov 3
  %v1492 = vld [vmem:[%s1490] ss:$16 sm:%s1491]
  %s1493 = scalar_lea.vmem %s0, 137
  %s1494 = smov 12
  %v1495 = vld [vmem:[%s1493] ss:$16 sm:%s1494]
  %vm1496 = vcmask 1043458
  %v1497 = vsel %vm1496, %v1495, %v1492
  %s1498 = scalar_lea.vmem %s0, 137
  %s1499 = smov 48
  %v1500 = vld [vmem:[%s1498] ss:$16 sm:%s1499]
  %vm1501 = vcmask 1045508
  %v1502 = vsel %vm1501, %v1500, %v1497
  %s1503 = scalar_lea.vmem %s0, 137
  %s1504 = smov 192
  %v1505 = vld [vmem:[%s1503] ss:$16 sm:%s1504]
  %vm1506 = vcmask 1047558
  %v1507 = vsel %vm1506, %v1505, %v1502
  %1508 = vrot.lane.b32.xlu0 %v1507, 72
  %v1509 = vpop.permute.xlu0 %1508
  %vm1510 = vcmask 654912
  %s1511 = scalar_lea.vmem %s1, 8
  %1512 = vst.msk [vmem:[%s1511] sm:$0xff] %vm1510, %v1509
  %s1513 = scalar_lea.vmem %s0, 649
  %s1514 = smov 3
  %v1515 = vld [vmem:[%s1513] ss:$16 sm:%s1514]
  %s1516 = scalar_lea.vmem %s0, 649
  %s1517 = smov 12
  %v1518 = vld [vmem:[%s1516] ss:$16 sm:%s1517]
  %vm1519 = vcmask 1043458
  %v1520 = vsel %vm1519, %v1518, %v1515
  %s1521 = scalar_lea.vmem %s0, 649
  %s1522 = smov 48
  %v1523 = vld [vmem:[%s1521] ss:$16 sm:%s1522]
  %vm1524 = vcmask 1045508
  %v1525 = vsel %vm1524, %v1523, %v1520
  %s1526 = scalar_lea.vmem %s0, 649
  %s1527 = smov 192
  %v1528 = vld [vmem:[%s1526] ss:$16 sm:%s1527]
  %vm1529 = vcmask 1047558
  %v1530 = vsel %vm1529, %v1528, %v1525
  %1531 = vrot.lane.b32.xlu0 %v1530, 72
  %v1532 = vpop.permute.xlu0 %1531
  %vm1533 = vcmask 654912
  %s1534 = scalar_lea.vmem %s1, 40
  %1535 = vst.msk [vmem:[%s1534] sm:$0xff] %vm1533, %v1532
  %s1536 = scalar_lea.vmem %s0, 265
  %s1537 = smov 3
  %v1538 = vld [vmem:[%s1536] ss:$16 sm:%s1537]
  %s1539 = scalar_lea.vmem %s0, 265
  %s1540 = smov 12
  %v1541 = vld [vmem:[%s1539] ss:$16 sm:%s1540]
  %vm1542 = vcmask 1043458
  %v1543 = vsel %vm1542, %v1541, %v1538
  %s1544 = scalar_lea.vmem %s0, 265
  %s1545 = smov 48
  %v1546 = vld [vmem:[%s1544] ss:$16 sm:%s1545]
  %vm1547 = vcmask 1045508
  %v1548 = vsel %vm1547, %v1546, %v1543
  %s1549 = scalar_lea.vmem %s0, 265
  %s1550 = smov 192
  %v1551 = vld [vmem:[%s1549] ss:$16 sm:%s1550]
  %vm1552 = vcmask 1047558
  %v1553 = vsel %vm1552, %v1551, %v1548
  %1554 = vrot.lane.b32.xlu0 %v1553, 72
  %v1555 = vpop.permute.xlu0 %1554
  %vm1556 = vcmask 654912
  %s1557 = scalar_lea.vmem %s1, 16
  %1558 = vst.msk [vmem:[%s1557] sm:$0xff] %vm1556, %v1555
  %s1559 = scalar_lea.vmem %s0, 777
  %s1560 = smov 3
  %v1561 = vld [vmem:[%s1559] ss:$16 sm:%s1560]
  %s1562 = scalar_lea.vmem %s0, 777
  %s1563 = smov 12
  %v1564 = vld [vmem:[%s1562] ss:$16 sm:%s1563]
  %vm1565 = vcmask 1043458
  %v1566 = vsel %vm1565, %v1564, %v1561
  %s1567 = scalar_lea.vmem %s0, 777
  %s1568 = smov 48
  %v1569 = vld [vmem:[%s1567] ss:$16 sm:%s1568]
  %vm1570 = vcmask 1045508
  %v1571 = vsel %vm1570, %v1569, %v1566
  %s1572 = scalar_lea.vmem %s0, 777
  %s1573 = smov 192
  %v1574 = vld [vmem:[%s1572] ss:$16 sm:%s1573]
  %vm1575 = vcmask 1047558
  %v1576 = vsel %vm1575, %v1574, %v1571
  %1577 = vrot.lane.b32.xlu0 %v1576, 72
  %v1578 = vpop.permute.xlu0 %1577
  %vm1579 = vcmask 654912
  %s1580 = scalar_lea.vmem %s1, 48
  %1581 = vst.msk [vmem:[%s1580] sm:$0xff] %vm1579, %v1578
  %s1582 = scalar_lea.vmem %s0, 393
  %s1583 = smov 3
  %v1584 = vld [vmem:[%s1582] ss:$16 sm:%s1583]
  %s1585 = scalar_lea.vmem %s0, 393
  %s1586 = smov 12
  %v1587 = vld [vmem:[%s1585] ss:$16 sm:%s1586]
  %vm1588 = vcmask 1043458
  %v1589 = vsel %vm1588, %v1587, %v1584
  %s1590 = scalar_lea.vmem %s0, 393
  %s1591 = smov 48
  %v1592 = vld [vmem:[%s1590] ss:$16 sm:%s1591]
  %vm1593 = vcmask 1045508
  %v1594 = vsel %vm1593, %v1592, %v1589
  %s1595 = scalar_lea.vmem %s0, 393
  %s1596 = smov 192
  %v1597 = vld [vmem:[%s1595] ss:$16 sm:%s1596]
  %vm1598 = vcmask 1047558
  %v1599 = vsel %vm1598, %v1597, %v1594
  %1600 = vrot.lane.b32.xlu0 %v1599, 72
  %v1601 = vpop.permute.xlu0 %1600
  %vm1602 = vcmask 654912
  %s1603 = scalar_lea.vmem %s1, 24
  %1604 = vst.msk [vmem:[%s1603] sm:$0xff] %vm1602, %v1601
  %s1605 = scalar_lea.vmem %s0, 905
  %s1606 = smov 3
  %v1607 = vld [vmem:[%s1605] ss:$16 sm:%s1606]
  %s1608 = scalar_lea.vmem %s0, 905
  %s1609 = smov 12
  %v1610 = vld [vmem:[%s1608] ss:$16 sm:%s1609]
  %vm1611 = vcmask 1043458
  %v1612 = vsel %vm1611, %v1610, %v1607
  %s1613 = scalar_lea.vmem %s0, 905
  %s1614 = smov 48
  %v1615 = vld [vmem:[%s1613] ss:$16 sm:%s1614]
  %vm1616 = vcmask 1045508
  %v1617 = vsel %vm1616, %v1615, %v1612
  %s1618 = scalar_lea.vmem %s0, 905
  %s1619 = smov 192
  %v1620 = vld [vmem:[%s1618] ss:$16 sm:%s1619]
  %vm1621 = vcmask 1047558
  %v1622 = vsel %vm1621, %v1620, %v1617
  %1623 = vrot.lane.b32.xlu0 %v1622, 72
  %v1624 = vpop.permute.xlu0 %1623
  %vm1625 = vcmask 654912
  %s1626 = scalar_lea.vmem %s1, 56
  %1627 = vst.msk [vmem:[%s1626] sm:$0xff] %vm1625, %v1624
  %s1628 = scalar_lea.vmem %s0, 8
  %s1629 = smov 3
  %v1630 = vld [vmem:[%s1628] ss:$16 sm:%s1629]
  %s1631 = scalar_lea.vmem %s0, 8
  %s1632 = smov 12
  %v1633 = vld [vmem:[%s1631] ss:$16 sm:%s1632]
  %vm1634 = vcmask 1043458
  %v1635 = vsel %vm1634, %v1633, %v1630
  %s1636 = scalar_lea.vmem %s0, 8
  %s1637 = smov 48
  %v1638 = vld [vmem:[%s1636] ss:$16 sm:%s1637]
  %vm1639 = vcmask 1045508
  %v1640 = vsel %vm1639, %v1638, %v1635
  %s1641 = scalar_lea.vmem %s0, 8
  %s1642 = smov 192
  %v1643 = vld [vmem:[%s1641] ss:$16 sm:%s1642]
  %vm1644 = vcmask 1047558
  %v1645 = vsel %vm1644, %v1643, %v1640
  %1646 = vrot.lane.b32.xlu0 %v1645, 64
  %v1647 = vpop.permute.xlu0 %1646
  %vm1648 = vcmask 589312
  %1649 = vst.msk [vmem:[%s1] sm:$0xff] %vm1648, %v1647
  %s1650 = scalar_lea.vmem %s0, 520
  %s1651 = smov 3
  %v1652 = vld [vmem:[%s1650] ss:$16 sm:%s1651]
  %s1653 = scalar_lea.vmem %s0, 520
  %s1654 = smov 12
  %v1655 = vld [vmem:[%s1653] ss:$16 sm:%s1654]
  %vm1656 = vcmask 1043458
  %v1657 = vsel %vm1656, %v1655, %v1652
  %s1658 = scalar_lea.vmem %s0, 520
  %s1659 = smov 48
  %v1660 = vld [vmem:[%s1658] ss:$16 sm:%s1659]
  %vm1661 = vcmask 1045508
  %v1662 = vsel %vm1661, %v1660, %v1657
  %s1663 = scalar_lea.vmem %s0, 520
  %s1664 = smov 192
  %v1665 = vld [vmem:[%s1663] ss:$16 sm:%s1664]
  %vm1666 = vcmask 1047558
  %v1667 = vsel %vm1666, %v1665, %v1662
  %1668 = vrot.lane.b32.xlu0 %v1667, 64
  %v1669 = vpop.permute.xlu0 %1668
  %vm1670 = vcmask 589312
  %s1671 = scalar_lea.vmem %s1, 32
  %1672 = vst.msk [vmem:[%s1671] sm:$0xff] %vm1670, %v1669
  %s1673 = scalar_lea.vmem %s0, 1032
  %s1674 = smov 3
  %v1675 = vld [vmem:[%s1673] ss:$16 sm:%s1674]
  %s1676 = scalar_lea.vmem %s0, 1032
  %s1677 = smov 12
  %v1678 = vld [vmem:[%s1676] ss:$16 sm:%s1677]
  %vm1679 = vcmask 1043458
  %v1680 = vsel %vm1679, %v1678, %v1675
  %s1681 = scalar_lea.vmem %s0, 1032
  %s1682 = smov 48
  %v1683 = vld [vmem:[%s1681] ss:$16 sm:%s1682]
  %vm1684 = vcmask 1045508
  %v1685 = vsel %vm1684, %v1683, %v1680
  %s1686 = scalar_lea.vmem %s0, 1032
  %s1687 = smov 192
  %v1688 = vld [vmem:[%s1686] ss:$16 sm:%s1687]
  %vm1689 = vcmask 1047558
  %v1690 = vsel %vm1689, %v1688, %v1685
  %1691 = vrot.lane.b32.xlu0 %v1690, 64
  %v1692 = vpop.permute.xlu0 %1691
  %vm1693 = vcmask 589312
  %s1694 = scalar_lea.vmem %s1, 64
  %1695 = vst.msk [vmem:[%s1694] sm:$0xff] %vm1693, %v1692
  %s1696 = scalar_lea.vmem %s0, 136
  %s1697 = smov 3
  %v1698 = vld [vmem:[%s1696] ss:$16 sm:%s1697]
  %s1699 = scalar_lea.vmem %s0, 136
  %s1700 = smov 12
  %v1701 = vld [vmem:[%s1699] ss:$16 sm:%s1700]
  %vm1702 = vcmask 1043458
  %v1703 = vsel %vm1702, %v1701, %v1698
  %s1704 = scalar_lea.vmem %s0, 136
  %s1705 = smov 48
  %v1706 = vld [vmem:[%s1704] ss:$16 sm:%s1705]
  %vm1707 = vcmask 1045508
  %v1708 = vsel %vm1707, %v1706, %v1703
  %s1709 = scalar_lea.vmem %s0, 136
  %s1710 = smov 192
  %v1711 = vld [vmem:[%s1709] ss:$16 sm:%s1710]
  %vm1712 = vcmask 1047558
  %v1713 = vsel %vm1712, %v1711, %v1708
  %1714 = vrot.lane.b32.xlu0 %v1713, 64
  %v1715 = vpop.permute.xlu0 %1714
  %vm1716 = vcmask 589312
  %s1717 = scalar_lea.vmem %s1, 8
  %1718 = vst.msk [vmem:[%s1717] sm:$0xff] %vm1716, %v1715
  %s1719 = scalar_lea.vmem %s0, 648
  %s1720 = smov 3
  %v1721 = vld [vmem:[%s1719] ss:$16 sm:%s1720]
  %s1722 = scalar_lea.vmem %s0, 648
  %s1723 = smov 12
  %v1724 = vld [vmem:[%s1722] ss:$16 sm:%s1723]
  %vm1725 = vcmask 1043458
  %v1726 = vsel %vm1725, %v1724, %v1721
  %s1727 = scalar_lea.vmem %s0, 648
  %s1728 = smov 48
  %v1729 = vld [vmem:[%s1727] ss:$16 sm:%s1728]
  %vm1730 = vcmask 1045508
  %v1731 = vsel %vm1730, %v1729, %v1726
  %s1732 = scalar_lea.vmem %s0, 648
  %s1733 = smov 192
  %v1734 = vld [vmem:[%s1732] ss:$16 sm:%s1733]
  %vm1735 = vcmask 1047558
  %v1736 = vsel %vm1735, %v1734, %v1731
  %1737 = vrot.lane.b32.xlu0 %v1736, 64
  %v1738 = vpop.permute.xlu0 %1737
  %vm1739 = vcmask 589312
  %s1740 = scalar_lea.vmem %s1, 40
  %1741 = vst.msk [vmem:[%s1740] sm:$0xff] %vm1739, %v1738
  %s1742 = scalar_lea.vmem %s0, 264
  %s1743 = smov 3
  %v1744 = vld [vmem:[%s1742] ss:$16 sm:%s1743]
  %s1745 = scalar_lea.vmem %s0, 264
  %s1746 = smov 12
  %v1747 = vld [vmem:[%s1745] ss:$16 sm:%s1746]
  %vm1748 = vcmask 1043458
  %v1749 = vsel %vm1748, %v1747, %v1744
  %s1750 = scalar_lea.vmem %s0, 264
  %s1751 = smov 48
  %v1752 = vld [vmem:[%s1750] ss:$16 sm:%s1751]
  %vm1753 = vcmask 1045508
  %v1754 = vsel %vm1753, %v1752, %v1749
  %s1755 = scalar_lea.vmem %s0, 264
  %s1756 = smov 192
  %v1757 = vld [vmem:[%s1755] ss:$16 sm:%s1756]
  %vm1758 = vcmask 1047558
  %v1759 = vsel %vm1758, %v1757, %v1754
  %1760 = vrot.lane.b32.xlu0 %v1759, 64
  %v1761 = vpop.permute.xlu0 %1760
  %vm1762 = vcmask 589312
  %s1763 = scalar_lea.vmem %s1, 16
  %1764 = vst.msk [vmem:[%s1763] sm:$0xff] %vm1762, %v1761
  %s1765 = scalar_lea.vmem %s0, 776
  %s1766 = smov 3
  %v1767 = vld [vmem:[%s1765] ss:$16 sm:%s1766]
  %s1768 = scalar_lea.vmem %s0, 776
  %s1769 = smov 12
  %v1770 = vld [vmem:[%s1768] ss:$16 sm:%s1769]
  %vm1771 = vcmask 1043458
  %v1772 = vsel %vm1771, %v1770, %v1767
  %s1773 = scalar_lea.vmem %s0, 776
  %s1774 = smov 48
  %v1775 = vld [vmem:[%s1773] ss:$16 sm:%s1774]
  %vm1776 = vcmask 1045508
  %v1777 = vsel %vm1776, %v1775, %v1772
  %s1778 = scalar_lea.vmem %s0, 776
  %s1779 = smov 192
  %v1780 = vld [vmem:[%s1778] ss:$16 sm:%s1779]
  %vm1781 = vcmask 1047558
  %v1782 = vsel %vm1781, %v1780, %v1777
  %1783 = vrot.lane.b32.xlu0 %v1782, 64
  %v1784 = vpop.permute.xlu0 %1783
  %vm1785 = vcmask 589312
  %s1786 = scalar_lea.vmem %s1, 48
  %1787 = vst.msk [vmem:[%s1786] sm:$0xff] %vm1785, %v1784
  %s1788 = scalar_lea.vmem %s0, 392
  %s1789 = smov 3
  %v1790 = vld [vmem:[%s1788] ss:$16 sm:%s1789]
  %s1791 = scalar_lea.vmem %s0, 392
  %s1792 = smov 12
  %v1793 = vld [vmem:[%s1791] ss:$16 sm:%s1792]
  %vm1794 = vcmask 1043458
  %v1795 = vsel %vm1794, %v1793, %v1790
  %s1796 = scalar_lea.vmem %s0, 392
  %s1797 = smov 48
  %v1798 = vld [vmem:[%s1796] ss:$16 sm:%s1797]
  %vm1799 = vcmask 1045508
  %v1800 = vsel %vm1799, %v1798, %v1795
  %s1801 = scalar_lea.vmem %s0, 392
  %s1802 = smov 192
  %v1803 = vld [vmem:[%s1801] ss:$16 sm:%s1802]
  %vm1804 = vcmask 1047558
  %v1805 = vsel %vm1804, %v1803, %v1800
  %1806 = vrot.lane.b32.xlu0 %v1805, 64
  %v1807 = vpop.permute.xlu0 %1806
  %vm1808 = vcmask 589312
  %s1809 = scalar_lea.vmem %s1, 24
  %1810 = vst.msk [vmem:[%s1809] sm:$0xff] %vm1808, %v1807
  %s1811 = scalar_lea.vmem %s0, 904
  %s1812 = smov 3
  %v1813 = vld [vmem:[%s1811] ss:$16 sm:%s1812]
  %s1814 = scalar_lea.vmem %s0, 904
  %s1815 = smov 12
  %v1816 = vld [vmem:[%s1814] ss:$16 sm:%s1815]
  %vm1817 = vcmask 1043458
  %v1818 = vsel %vm1817, %v1816, %v1813
  %s1819 = scalar_lea.vmem %s0, 904
  %s1820 = smov 48
  %v1821 = vld [vmem:[%s1819] ss:$16 sm:%s1820]
  %vm1822 = vcmask 1045508
  %v1823 = vsel %vm1822, %v1821, %v1818
  %s1824 = scalar_lea.vmem %s0, 904
  %s1825 = smov 192
  %v1826 = vld [vmem:[%s1824] ss:$16 sm:%s1825]
  %vm1827 = vcmask 1047558
  %v1828 = vsel %vm1827, %v1826, %v1823
  %1829 = vrot.lane.b32.xlu0 %v1828, 64
  %v1830 = vpop.permute.xlu0 %1829
  %vm1831 = vcmask 589312
  %s1832 = scalar_lea.vmem %s1, 56
  %1833 = vst.msk [vmem:[%s1832] sm:$0xff] %vm1831, %v1830
  %s1834 = scalar_lea.vmem %s0, 7
  %s1835 = smov 3
  %v1836 = vld [vmem:[%s1834] ss:$16 sm:%s1835]
  %s1837 = scalar_lea.vmem %s0, 7
  %s1838 = smov 12
  %v1839 = vld [vmem:[%s1837] ss:$16 sm:%s1838]
  %vm1840 = vcmask 1043458
  %v1841 = vsel %vm1840, %v1839, %v1836
  %s1842 = scalar_lea.vmem %s0, 7
  %s1843 = smov 48
  %v1844 = vld [vmem:[%s1842] ss:$16 sm:%s1843]
  %vm1845 = vcmask 1045508
  %v1846 = vsel %vm1845, %v1844, %v1841
  %s1847 = scalar_lea.vmem %s0, 7
  %s1848 = smov 192
  %v1849 = vld [vmem:[%s1847] ss:$16 sm:%s1848]
  %vm1850 = vcmask 1047558
  %v1851 = vsel %vm1850, %v1849, %v1846
  %1852 = vrot.lane.b32.xlu0 %v1851, 56
  %v1853 = vpop.permute.xlu0 %1852
  %vm1854 = vcmask 523712
  %1855 = vst.msk [vmem:[%s1] sm:$0xff] %vm1854, %v1853
  %s1856 = scalar_lea.vmem %s0, 519
  %s1857 = smov 3
  %v1858 = vld [vmem:[%s1856] ss:$16 sm:%s1857]
  %s1859 = scalar_lea.vmem %s0, 519
  %s1860 = smov 12
  %v1861 = vld [vmem:[%s1859] ss:$16 sm:%s1860]
  %vm1862 = vcmask 1043458
  %v1863 = vsel %vm1862, %v1861, %v1858
  %s1864 = scalar_lea.vmem %s0, 519
  %s1865 = smov 48
  %v1866 = vld [vmem:[%s1864] ss:$16 sm:%s1865]
  %vm1867 = vcmask 1045508
  %v1868 = vsel %vm1867, %v1866, %v1863
  %s1869 = scalar_lea.vmem %s0, 519
  %s1870 = smov 192
  %v1871 = vld [vmem:[%s1869] ss:$16 sm:%s1870]
  %vm1872 = vcmask 1047558
  %v1873 = vsel %vm1872, %v1871, %v1868
  %1874 = vrot.lane.b32.xlu0 %v1873, 56
  %v1875 = vpop.permute.xlu0 %1874
  %vm1876 = vcmask 523712
  %s1877 = scalar_lea.vmem %s1, 32
  %1878 = vst.msk [vmem:[%s1877] sm:$0xff] %vm1876, %v1875
  %s1879 = scalar_lea.vmem %s0, 1031
  %s1880 = smov 3
  %v1881 = vld [vmem:[%s1879] ss:$16 sm:%s1880]
  %s1882 = scalar_lea.vmem %s0, 1031
  %s1883 = smov 12
  %v1884 = vld [vmem:[%s1882] ss:$16 sm:%s1883]
  %vm1885 = vcmask 1043458
  %v1886 = vsel %vm1885, %v1884, %v1881
  %s1887 = scalar_lea.vmem %s0, 1031
  %s1888 = smov 48
  %v1889 = vld [vmem:[%s1887] ss:$16 sm:%s1888]
  %vm1890 = vcmask 1045508
  %v1891 = vsel %vm1890, %v1889, %v1886
  %s1892 = scalar_lea.vmem %s0, 1031
  %s1893 = smov 192
  %v1894 = vld [vmem:[%s1892] ss:$16 sm:%s1893]
  %vm1895 = vcmask 1047558
  %v1896 = vsel %vm1895, %v1894, %v1891
  %1897 = vrot.lane.b32.xlu0 %v1896, 56
  %v1898 = vpop.permute.xlu0 %1897
  %vm1899 = vcmask 523712
  %s1900 = scalar_lea.vmem %s1, 64
  %1901 = vst.msk [vmem:[%s1900] sm:$0xff] %vm1899, %v1898
  %s1902 = scalar_lea.vmem %s0, 135
  %s1903 = smov 3
  %v1904 = vld [vmem:[%s1902] ss:$16 sm:%s1903]
  %s1905 = scalar_lea.vmem %s0, 135
  %s1906 = smov 12
  %v1907 = vld [vmem:[%s1905] ss:$16 sm:%s1906]
  %vm1908 = vcmask 1043458
  %v1909 = vsel %vm1908, %v1907, %v1904
  %s1910 = scalar_lea.vmem %s0, 135
  %s1911 = smov 48
  %v1912 = vld [vmem:[%s1910] ss:$16 sm:%s1911]
  %vm1913 = vcmask 1045508
  %v1914 = vsel %vm1913, %v1912, %v1909
  %s1915 = scalar_lea.vmem %s0, 135
  %s1916 = smov 192
  %v1917 = vld [vmem:[%s1915] ss:$16 sm:%s1916]
  %vm1918 = vcmask 1047558
  %v1919 = vsel %vm1918, %v1917, %v1914
  %1920 = vrot.lane.b32.xlu0 %v1919, 56
  %v1921 = vpop.permute.xlu0 %1920
  %vm1922 = vcmask 523712
  %s1923 = scalar_lea.vmem %s1, 8
  %1924 = vst.msk [vmem:[%s1923] sm:$0xff] %vm1922, %v1921
  %s1925 = scalar_lea.vmem %s0, 647
  %s1926 = smov 3
  %v1927 = vld [vmem:[%s1925] ss:$16 sm:%s1926]
  %s1928 = scalar_lea.vmem %s0, 647
  %s1929 = smov 12
  %v1930 = vld [vmem:[%s1928] ss:$16 sm:%s1929]
  %vm1931 = vcmask 1043458
  %v1932 = vsel %vm1931, %v1930, %v1927
  %s1933 = scalar_lea.vmem %s0, 647
  %s1934 = smov 48
  %v1935 = vld [vmem:[%s1933] ss:$16 sm:%s1934]
  %vm1936 = vcmask 1045508
  %v1937 = vsel %vm1936, %v1935, %v1932
  %s1938 = scalar_lea.vmem %s0, 647
  %s1939 = smov 192
  %v1940 = vld [vmem:[%s1938] ss:$16 sm:%s1939]
  %vm1941 = vcmask 1047558
  %v1942 = vsel %vm1941, %v1940, %v1937
  %1943 = vrot.lane.b32.xlu0 %v1942, 56
  %v1944 = vpop.permute.xlu0 %1943
  %vm1945 = vcmask 523712
  %s1946 = scalar_lea.vmem %s1, 40
  %1947 = vst.msk [vmem:[%s1946] sm:$0xff] %vm1945, %v1944
  %s1948 = scalar_lea.vmem %s0, 263
  %s1949 = smov 3
  %v1950 = vld [vmem:[%s1948] ss:$16 sm:%s1949]
  %s1951 = scalar_lea.vmem %s0, 263
  %s1952 = smov 12
  %v1953 = vld [vmem:[%s1951] ss:$16 sm:%s1952]
  %vm1954 = vcmask 1043458
  %v1955 = vsel %vm1954, %v1953, %v1950
  %s1956 = scalar_lea.vmem %s0, 263
  %s1957 = smov 48
  %v1958 = vld [vmem:[%s1956] ss:$16 sm:%s1957]
  %vm1959 = vcmask 1045508
  %v1960 = vsel %vm1959, %v1958, %v1955
  %s1961 = scalar_lea.vmem %s0, 263
  %s1962 = smov 192
  %v1963 = vld [vmem:[%s1961] ss:$16 sm:%s1962]
  %vm1964 = vcmask 1047558
  %v1965 = vsel %vm1964, %v1963, %v1960
  %1966 = vrot.lane.b32.xlu0 %v1965, 56
  %v1967 = vpop.permute.xlu0 %1966
  %vm1968 = vcmask 523712
  %s1969 = scalar_lea.vmem %s1, 16
  %1970 = vst.msk [vmem:[%s1969] sm:$0xff] %vm1968, %v1967
  %s1971 = scalar_lea.vmem %s0, 775
  %s1972 = smov 3
  %v1973 = vld [vmem:[%s1971] ss:$16 sm:%s1972]
  %s1974 = scalar_lea.vmem %s0, 775
  %s1975 = smov 12
  %v1976 = vld [vmem:[%s1974] ss:$16 sm:%s1975]
  %vm1977 = vcmask 1043458
  %v1978 = vsel %vm1977, %v1976, %v1973
  %s1979 = scalar_lea.vmem %s0, 775
  %s1980 = smov 48
  %v1981 = vld [vmem:[%s1979] ss:$16 sm:%s1980]
  %vm1982 = vcmask 1045508
  %v1983 = vsel %vm1982, %v1981, %v1978
  %s1984 = scalar_lea.vmem %s0, 775
  %s1985 = smov 192
  %v1986 = vld [vmem:[%s1984] ss:$16 sm:%s1985]
  %vm1987 = vcmask 1047558
  %v1988 = vsel %vm1987, %v1986, %v1983
  %1989 = vrot.lane.b32.xlu0 %v1988, 56
  %v1990 = vpop.permute.xlu0 %1989
  %vm1991 = vcmask 523712
  %s1992 = scalar_lea.vmem %s1, 48
  %1993 = vst.msk [vmem:[%s1992] sm:$0xff] %vm1991, %v1990
  %s1994 = scalar_lea.vmem %s0, 391
  %s1995 = smov 3
  %v1996 = vld [vmem:[%s1994] ss:$16 sm:%s1995]
  %s1997 = scalar_lea.vmem %s0, 391
  %s1998 = smov 12
  %v1999 = vld [vmem:[%s1997] ss:$16 sm:%s1998]
  %vm2000 = vcmask 1043458
  %v2001 = vsel %vm2000, %v1999, %v1996
  %s2002 = scalar_lea.vmem %s0, 391
  %s2003 = smov 48
  %v2004 = vld [vmem:[%s2002] ss:$16 sm:%s2003]
  %vm2005 = vcmask 1045508
  %v2006 = vsel %vm2005, %v2004, %v2001
  %s2007 = scalar_lea.vmem %s0, 391
  %s2008 = smov 192
  %v2009 = vld [vmem:[%s2007] ss:$16 sm:%s2008]
  %vm2010 = vcmask 1047558
  %v2011 = vsel %vm2010, %v2009, %v2006
  %2012 = vrot.lane.b32.xlu0 %v2011, 56
  %v2013 = vpop.permute.xlu0 %2012
  %vm2014 = vcmask 523712
  %s2015 = scalar_lea.vmem %s1, 24
  %2016 = vst.msk [vmem:[%s2015] sm:$0xff] %vm2014, %v2013
  %s2017 = scalar_lea.vmem %s0, 903
  %s2018 = smov 3
  %v2019 = vld [vmem:[%s2017] ss:$16 sm:%s2018]
  %s2020 = scalar_lea.vmem %s0, 903
  %s2021 = smov 12
  %v2022 = vld [vmem:[%s2020] ss:$16 sm:%s2021]
  %vm2023 = vcmask 1043458
  %v2024 = vsel %vm2023, %v2022, %v2019
  %s2025 = scalar_lea.vmem %s0, 903
  %s2026 = smov 48
  %v2027 = vld [vmem:[%s2025] ss:$16 sm:%s2026]
  %vm2028 = vcmask 1045508
  %v2029 = vsel %vm2028, %v2027, %v2024
  %s2030 = scalar_lea.vmem %s0, 903
  %s2031 = smov 192
  %v2032 = vld [vmem:[%s2030] ss:$16 sm:%s2031]
  %vm2033 = vcmask 1047558
  %v2034 = vsel %vm2033, %v2032, %v2029
  %2035 = vrot.lane.b32.xlu0 %v2034, 56
  %v2036 = vpop.permute.xlu0 %2035
  %vm2037 = vcmask 523712
  %s2038 = scalar_lea.vmem %s1, 56
  %2039 = vst.msk [vmem:[%s2038] sm:$0xff] %vm2037, %v2036
  %s2040 = scalar_lea.vmem %s0, 6
  %s2041 = smov 3
  %v2042 = vld [vmem:[%s2040] ss:$16 sm:%s2041]
  %s2043 = scalar_lea.vmem %s0, 6
  %s2044 = smov 12
  %v2045 = vld [vmem:[%s2043] ss:$16 sm:%s2044]
  %vm2046 = vcmask 1043458
  %v2047 = vsel %vm2046, %v2045, %v2042
  %s2048 = scalar_lea.vmem %s0, 6
  %s2049 = smov 48
  %v2050 = vld [vmem:[%s2048] ss:$16 sm:%s2049]
  %vm2051 = vcmask 1045508
  %v2052 = vsel %vm2051, %v2050, %v2047
  %s2053 = scalar_lea.vmem %s0, 6
  %s2054 = smov 192
  %v2055 = vld [vmem:[%s2053] ss:$16 sm:%s2054]
  %vm2056 = vcmask 1047558
  %v2057 = vsel %vm2056, %v2055, %v2052
  %2058 = vrot.lane.b32.xlu0 %v2057, 48
  %v2059 = vpop.permute.xlu0 %2058
  %vm2060 = vcmask 458112
  %2061 = vst.msk [vmem:[%s1] sm:$0xff] %vm2060, %v2059
  %s2062 = scalar_lea.vmem %s0, 518
  %s2063 = smov 3
  %v2064 = vld [vmem:[%s2062] ss:$16 sm:%s2063]
  %s2065 = scalar_lea.vmem %s0, 518
  %s2066 = smov 12
  %v2067 = vld [vmem:[%s2065] ss:$16 sm:%s2066]
  %vm2068 = vcmask 1043458
  %v2069 = vsel %vm2068, %v2067, %v2064
  %s2070 = scalar_lea.vmem %s0, 518
  %s2071 = smov 48
  %v2072 = vld [vmem:[%s2070] ss:$16 sm:%s2071]
  %vm2073 = vcmask 1045508
  %v2074 = vsel %vm2073, %v2072, %v2069
  %s2075 = scalar_lea.vmem %s0, 518
  %s2076 = smov 192
  %v2077 = vld [vmem:[%s2075] ss:$16 sm:%s2076]
  %vm2078 = vcmask 1047558
  %v2079 = vsel %vm2078, %v2077, %v2074
  %2080 = vrot.lane.b32.xlu0 %v2079, 48
  %v2081 = vpop.permute.xlu0 %2080
  %vm2082 = vcmask 458112
  %s2083 = scalar_lea.vmem %s1, 32
  %2084 = vst.msk [vmem:[%s2083] sm:$0xff] %vm2082, %v2081
  %s2085 = scalar_lea.vmem %s0, 1030
  %s2086 = smov 3
  %v2087 = vld [vmem:[%s2085] ss:$16 sm:%s2086]
  %s2088 = scalar_lea.vmem %s0, 1030
  %s2089 = smov 12
  %v2090 = vld [vmem:[%s2088] ss:$16 sm:%s2089]
  %vm2091 = vcmask 1043458
  %v2092 = vsel %vm2091, %v2090, %v2087
  %s2093 = scalar_lea.vmem %s0, 1030
  %s2094 = smov 48
  %v2095 = vld [vmem:[%s2093] ss:$16 sm:%s2094]
  %vm2096 = vcmask 1045508
  %v2097 = vsel %vm2096, %v2095, %v2092
  %s2098 = scalar_lea.vmem %s0, 1030
  %s2099 = smov 192
  %v2100 = vld [vmem:[%s2098] ss:$16 sm:%s2099]
  %vm2101 = vcmask 1047558
  %v2102 = vsel %vm2101, %v2100, %v2097
  %2103 = vrot.lane.b32.xlu0 %v2102, 48
  %v2104 = vpop.permute.xlu0 %2103
  %vm2105 = vcmask 458112
  %s2106 = scalar_lea.vmem %s1, 64
  %2107 = vst.msk [vmem:[%s2106] sm:$0xff] %vm2105, %v2104
  %s2108 = scalar_lea.vmem %s0, 134
  %s2109 = smov 3
  %v2110 = vld [vmem:[%s2108] ss:$16 sm:%s2109]
  %s2111 = scalar_lea.vmem %s0, 134
  %s2112 = smov 12
  %v2113 = vld [vmem:[%s2111] ss:$16 sm:%s2112]
  %vm2114 = vcmask 1043458
  %v2115 = vsel %vm2114, %v2113, %v2110
  %s2116 = scalar_lea.vmem %s0, 134
  %s2117 = smov 48
  %v2118 = vld [vmem:[%s2116] ss:$16 sm:%s2117]
  %vm2119 = vcmask 1045508
  %v2120 = vsel %vm2119, %v2118, %v2115
  %s2121 = scalar_lea.vmem %s0, 134
  %s2122 = smov 192
  %v2123 = vld [vmem:[%s2121] ss:$16 sm:%s2122]
  %vm2124 = vcmask 1047558
  %v2125 = vsel %vm2124, %v2123, %v2120
  %2126 = vrot.lane.b32.xlu0 %v2125, 48
  %v2127 = vpop.permute.xlu0 %2126
  %vm2128 = vcmask 458112
  %s2129 = scalar_lea.vmem %s1, 8
  %2130 = vst.msk [vmem:[%s2129] sm:$0xff] %vm2128, %v2127
  %s2131 = scalar_lea.vmem %s0, 646
  %s2132 = smov 3
  %v2133 = vld [vmem:[%s2131] ss:$16 sm:%s2132]
  %s2134 = scalar_lea.vmem %s0, 646
  %s2135 = smov 12
  %v2136 = vld [vmem:[%s2134] ss:$16 sm:%s2135]
  %vm2137 = vcmask 1043458
  %v2138 = vsel %vm2137, %v2136, %v2133
  %s2139 = scalar_lea.vmem %s0, 646
  %s2140 = smov 48
  %v2141 = vld [vmem:[%s2139] ss:$16 sm:%s2140]
  %vm2142 = vcmask 1045508
  %v2143 = vsel %vm2142, %v2141, %v2138
  %s2144 = scalar_lea.vmem %s0, 646
  %s2145 = smov 192
  %v2146 = vld [vmem:[%s2144] ss:$16 sm:%s2145]
  %vm2147 = vcmask 1047558
  %v2148 = vsel %vm2147, %v2146, %v2143
  %2149 = vrot.lane.b32.xlu0 %v2148, 48
  %v2150 = vpop.permute.xlu0 %2149
  %vm2151 = vcmask 458112
  %s2152 = scalar_lea.vmem %s1, 40
  %2153 = vst.msk [vmem:[%s2152] sm:$0xff] %vm2151, %v2150
  %s2154 = scalar_lea.vmem %s0, 262
  %s2155 = smov 3
  %v2156 = vld [vmem:[%s2154] ss:$16 sm:%s2155]
  %s2157 = scalar_lea.vmem %s0, 262
  %s2158 = smov 12
  %v2159 = vld [vmem:[%s2157] ss:$16 sm:%s2158]
  %vm2160 = vcmask 1043458
  %v2161 = vsel %vm2160, %v2159, %v2156
  %s2162 = scalar_lea.vmem %s0, 262
  %s2163 = smov 48
  %v2164 = vld [vmem:[%s2162] ss:$16 sm:%s2163]
  %vm2165 = vcmask 1045508
  %v2166 = vsel %vm2165, %v2164, %v2161
  %s2167 = scalar_lea.vmem %s0, 262
  %s2168 = smov 192
  %v2169 = vld [vmem:[%s2167] ss:$16 sm:%s2168]
  %vm2170 = vcmask 1047558
  %v2171 = vsel %vm2170, %v2169, %v2166
  %2172 = vrot.lane.b32.xlu0 %v2171, 48
  %v2173 = vpop.permute.xlu0 %2172
  %vm2174 = vcmask 458112
  %s2175 = scalar_lea.vmem %s1, 16
  %2176 = vst.msk [vmem:[%s2175] sm:$0xff] %vm2174, %v2173
  %s2177 = scalar_lea.vmem %s0, 774
  %s2178 = smov 3
  %v2179 = vld [vmem:[%s2177] ss:$16 sm:%s2178]
  %s2180 = scalar_lea.vmem %s0, 774
  %s2181 = smov 12
  %v2182 = vld [vmem:[%s2180] ss:$16 sm:%s2181]
  %vm2183 = vcmask 1043458
  %v2184 = vsel %vm2183, %v2182, %v2179
  %s2185 = scalar_lea.vmem %s0, 774
  %s2186 = smov 48
  %v2187 = vld [vmem:[%s2185] ss:$16 sm:%s2186]
  %vm2188 = vcmask 1045508
  %v2189 = vsel %vm2188, %v2187, %v2184
  %s2190 = scalar_lea.vmem %s0, 774
  %s2191 = smov 192
  %v2192 = vld [vmem:[%s2190] ss:$16 sm:%s2191]
  %vm2193 = vcmask 1047558
  %v2194 = vsel %vm2193, %v2192, %v2189
  %2195 = vrot.lane.b32.xlu0 %v2194, 48
  %v2196 = vpop.permute.xlu0 %2195
  %vm2197 = vcmask 458112
  %s2198 = scalar_lea.vmem %s1, 48
  %2199 = vst.msk [vmem:[%s2198] sm:$0xff] %vm2197, %v2196
  %s2200 = scalar_lea.vmem %s0, 390
  %s2201 = smov 3
  %v2202 = vld [vmem:[%s2200] ss:$16 sm:%s2201]
  %s2203 = scalar_lea.vmem %s0, 390
  %s2204 = smov 12
  %v2205 = vld [vmem:[%s2203] ss:$16 sm:%s2204]
  %vm2206 = vcmask 1043458
  %v2207 = vsel %vm2206, %v2205, %v2202
  %s2208 = scalar_lea.vmem %s0, 390
  %s2209 = smov 48
  %v2210 = vld [vmem:[%s2208] ss:$16 sm:%s2209]
  %vm2211 = vcmask 1045508
  %v2212 = vsel %vm2211, %v2210, %v2207
  %s2213 = scalar_lea.vmem %s0, 390
  %s2214 = smov 192
  %v2215 = vld [vmem:[%s2213] ss:$16 sm:%s2214]
  %vm2216 = vcmask 1047558
  %v2217 = vsel %vm2216, %v2215, %v2212
  %2218 = vrot.lane.b32.xlu0 %v2217, 48
  %v2219 = vpop.permute.xlu0 %2218
  %vm2220 = vcmask 458112
  %s2221 = scalar_lea.vmem %s1, 24
  %2222 = vst.msk [vmem:[%s2221] sm:$0xff] %vm2220, %v2219
  %s2223 = scalar_lea.vmem %s0, 902
  %s2224 = smov 3
  %v2225 = vld [vmem:[%s2223] ss:$16 sm:%s2224]
  %s2226 = scalar_lea.vmem %s0, 902
  %s2227 = smov 12
  %v2228 = vld [vmem:[%s2226] ss:$16 sm:%s2227]
  %vm2229 = vcmask 1043458
  %v2230 = vsel %vm2229, %v2228, %v2225
  %s2231 = scalar_lea.vmem %s0, 902
  %s2232 = smov 48
  %v2233 = vld [vmem:[%s2231] ss:$16 sm:%s2232]
  %vm2234 = vcmask 1045508
  %v2235 = vsel %vm2234, %v2233, %v2230
  %s2236 = scalar_lea.vmem %s0, 902
  %s2237 = smov 192
  %v2238 = vld [vmem:[%s2236] ss:$16 sm:%s2237]
  %vm2239 = vcmask 1047558
  %v2240 = vsel %vm2239, %v2238, %v2235
  %2241 = vrot.lane.b32.xlu0 %v2240, 48
  %v2242 = vpop.permute.xlu0 %2241
  %vm2243 = vcmask 458112
  %s2244 = scalar_lea.vmem %s1, 56
  %2245 = vst.msk [vmem:[%s2244] sm:$0xff] %vm2243, %v2242
  %s2246 = scalar_lea.vmem %s0, 5
  %s2247 = smov 3
  %v2248 = vld [vmem:[%s2246] ss:$16 sm:%s2247]
  %s2249 = scalar_lea.vmem %s0, 5
  %s2250 = smov 12
  %v2251 = vld [vmem:[%s2249] ss:$16 sm:%s2250]
  %vm2252 = vcmask 1043458
  %v2253 = vsel %vm2252, %v2251, %v2248
  %s2254 = scalar_lea.vmem %s0, 5
  %s2255 = smov 48
  %v2256 = vld [vmem:[%s2254] ss:$16 sm:%s2255]
  %vm2257 = vcmask 1045508
  %v2258 = vsel %vm2257, %v2256, %v2253
  %s2259 = scalar_lea.vmem %s0, 5
  %s2260 = smov 192
  %v2261 = vld [vmem:[%s2259] ss:$16 sm:%s2260]
  %vm2262 = vcmask 1047558
  %v2263 = vsel %vm2262, %v2261, %v2258
  %2264 = vrot.lane.b32.xlu0 %v2263, 40
  %v2265 = vpop.permute.xlu0 %2264
  %vm2266 = vcmask 392512
  %2267 = vst.msk [vmem:[%s1] sm:$0xff] %vm2266, %v2265
  %s2268 = scalar_lea.vmem %s0, 517
  %s2269 = smov 3
  %v2270 = vld [vmem:[%s2268] ss:$16 sm:%s2269]
  %s2271 = scalar_lea.vmem %s0, 517
  %s2272 = smov 12
  %v2273 = vld [vmem:[%s2271] ss:$16 sm:%s2272]
  %vm2274 = vcmask 1043458
  %v2275 = vsel %vm2274, %v2273, %v2270
  %s2276 = scalar_lea.vmem %s0, 517
  %s2277 = smov 48
  %v2278 = vld [vmem:[%s2276] ss:$16 sm:%s2277]
  %vm2279 = vcmask 1045508
  %v2280 = vsel %vm2279, %v2278, %v2275
  %s2281 = scalar_lea.vmem %s0, 517
  %s2282 = smov 192
  %v2283 = vld [vmem:[%s2281] ss:$16 sm:%s2282]
  %vm2284 = vcmask 1047558
  %v2285 = vsel %vm2284, %v2283, %v2280
  %2286 = vrot.lane.b32.xlu0 %v2285, 40
  %v2287 = vpop.permute.xlu0 %2286
  %vm2288 = vcmask 392512
  %s2289 = scalar_lea.vmem %s1, 32
  %2290 = vst.msk [vmem:[%s2289] sm:$0xff] %vm2288, %v2287
  %s2291 = scalar_lea.vmem %s0, 1029
  %s2292 = smov 3
  %v2293 = vld [vmem:[%s2291] ss:$16 sm:%s2292]
  %s2294 = scalar_lea.vmem %s0, 1029
  %s2295 = smov 12
  %v2296 = vld [vmem:[%s2294] ss:$16 sm:%s2295]
  %vm2297 = vcmask 1043458
  %v2298 = vsel %vm2297, %v2296, %v2293
  %s2299 = scalar_lea.vmem %s0, 1029
  %s2300 = smov 48
  %v2301 = vld [vmem:[%s2299] ss:$16 sm:%s2300]
  %vm2302 = vcmask 1045508
  %v2303 = vsel %vm2302, %v2301, %v2298
  %s2304 = scalar_lea.vmem %s0, 1029
  %s2305 = smov 192
  %v2306 = vld [vmem:[%s2304] ss:$16 sm:%s2305]
  %vm2307 = vcmask 1047558
  %v2308 = vsel %vm2307, %v2306, %v2303
  %2309 = vrot.lane.b32.xlu0 %v2308, 40
  %v2310 = vpop.permute.xlu0 %2309
  %vm2311 = vcmask 392512
  %s2312 = scalar_lea.vmem %s1, 64
  %2313 = vst.msk [vmem:[%s2312] sm:$0xff] %vm2311, %v2310
  %s2314 = scalar_lea.vmem %s0, 133
  %s2315 = smov 3
  %v2316 = vld [vmem:[%s2314] ss:$16 sm:%s2315]
  %s2317 = scalar_lea.vmem %s0, 133
  %s2318 = smov 12
  %v2319 = vld [vmem:[%s2317] ss:$16 sm:%s2318]
  %vm2320 = vcmask 1043458
  %v2321 = vsel %vm2320, %v2319, %v2316
  %s2322 = scalar_lea.vmem %s0, 133
  %s2323 = smov 48
  %v2324 = vld [vmem:[%s2322] ss:$16 sm:%s2323]
  %vm2325 = vcmask 1045508
  %v2326 = vsel %vm2325, %v2324, %v2321
  %s2327 = scalar_lea.vmem %s0, 133
  %s2328 = smov 192
  %v2329 = vld [vmem:[%s2327] ss:$16 sm:%s2328]
  %vm2330 = vcmask 1047558
  %v2331 = vsel %vm2330, %v2329, %v2326
  %2332 = vrot.lane.b32.xlu0 %v2331, 40
  %v2333 = vpop.permute.xlu0 %2332
  %vm2334 = vcmask 392512
  %s2335 = scalar_lea.vmem %s1, 8
  %2336 = vst.msk [vmem:[%s2335] sm:$0xff] %vm2334, %v2333
  %s2337 = scalar_lea.vmem %s0, 645
  %s2338 = smov 3
  %v2339 = vld [vmem:[%s2337] ss:$16 sm:%s2338]
  %s2340 = scalar_lea.vmem %s0, 645
  %s2341 = smov 12
  %v2342 = vld [vmem:[%s2340] ss:$16 sm:%s2341]
  %vm2343 = vcmask 1043458
  %v2344 = vsel %vm2343, %v2342, %v2339
  %s2345 = scalar_lea.vmem %s0, 645
  %s2346 = smov 48
  %v2347 = vld [vmem:[%s2345] ss:$16 sm:%s2346]
  %vm2348 = vcmask 1045508
  %v2349 = vsel %vm2348, %v2347, %v2344
  %s2350 = scalar_lea.vmem %s0, 645
  %s2351 = smov 192
  %v2352 = vld [vmem:[%s2350] ss:$16 sm:%s2351]
  %vm2353 = vcmask 1047558
  %v2354 = vsel %vm2353, %v2352, %v2349
  %2355 = vrot.lane.b32.xlu0 %v2354, 40
  %v2356 = vpop.permute.xlu0 %2355
  %vm2357 = vcmask 392512
  %s2358 = scalar_lea.vmem %s1, 40
  %2359 = vst.msk [vmem:[%s2358] sm:$0xff] %vm2357, %v2356
  %s2360 = scalar_lea.vmem %s0, 261
  %s2361 = smov 3
  %v2362 = vld [vmem:[%s2360] ss:$16 sm:%s2361]
  %s2363 = scalar_lea.vmem %s0, 261
  %s2364 = smov 12
  %v2365 = vld [vmem:[%s2363] ss:$16 sm:%s2364]
  %vm2366 = vcmask 1043458
  %v2367 = vsel %vm2366, %v2365, %v2362
  %s2368 = scalar_lea.vmem %s0, 261
  %s2369 = smov 48
  %v2370 = vld [vmem:[%s2368] ss:$16 sm:%s2369]
  %vm2371 = vcmask 1045508
  %v2372 = vsel %vm2371, %v2370, %v2367
  %s2373 = scalar_lea.vmem %s0, 261
  %s2374 = smov 192
  %v2375 = vld [vmem:[%s2373] ss:$16 sm:%s2374]
  %vm2376 = vcmask 1047558
  %v2377 = vsel %vm2376, %v2375, %v2372
  %2378 = vrot.lane.b32.xlu0 %v2377, 40
  %v2379 = vpop.permute.xlu0 %2378
  %vm2380 = vcmask 392512
  %s2381 = scalar_lea.vmem %s1, 16
  %2382 = vst.msk [vmem:[%s2381] sm:$0xff] %vm2380, %v2379
  %s2383 = scalar_lea.vmem %s0, 773
  %s2384 = smov 3
  %v2385 = vld [vmem:[%s2383] ss:$16 sm:%s2384]
  %s2386 = scalar_lea.vmem %s0, 773
  %s2387 = smov 12
  %v2388 = vld [vmem:[%s2386] ss:$16 sm:%s2387]
  %vm2389 = vcmask 1043458
  %v2390 = vsel %vm2389, %v2388, %v2385
  %s2391 = scalar_lea.vmem %s0, 773
  %s2392 = smov 48
  %v2393 = vld [vmem:[%s2391] ss:$16 sm:%s2392]
  %vm2394 = vcmask 1045508
  %v2395 = vsel %vm2394, %v2393, %v2390
  %s2396 = scalar_lea.vmem %s0, 773
  %s2397 = smov 192
  %v2398 = vld [vmem:[%s2396] ss:$16 sm:%s2397]
  %vm2399 = vcmask 1047558
  %v2400 = vsel %vm2399, %v2398, %v2395
  %2401 = vrot.lane.b32.xlu0 %v2400, 40
  %v2402 = vpop.permute.xlu0 %2401
  %vm2403 = vcmask 392512
  %s2404 = scalar_lea.vmem %s1, 48
  %2405 = vst.msk [vmem:[%s2404] sm:$0xff] %vm2403, %v2402
  %s2406 = scalar_lea.vmem %s0, 389
  %s2407 = smov 3
  %v2408 = vld [vmem:[%s2406] ss:$16 sm:%s2407]
  %s2409 = scalar_lea.vmem %s0, 389
  %s2410 = smov 12
  %v2411 = vld [vmem:[%s2409] ss:$16 sm:%s2410]
  %vm2412 = vcmask 1043458
  %v2413 = vsel %vm2412, %v2411, %v2408
  %s2414 = scalar_lea.vmem %s0, 389
  %s2415 = smov 48
  %v2416 = vld [vmem:[%s2414] ss:$16 sm:%s2415]
  %vm2417 = vcmask 1045508
  %v2418 = vsel %vm2417, %v2416, %v2413
  %s2419 = scalar_lea.vmem %s0, 389
  %s2420 = smov 192
  %v2421 = vld [vmem:[%s2419] ss:$16 sm:%s2420]
  %vm2422 = vcmask 1047558
  %v2423 = vsel %vm2422, %v2421, %v2418
  %2424 = vrot.lane.b32.xlu0 %v2423, 40
  %v2425 = vpop.permute.xlu0 %2424
  %vm2426 = vcmask 392512
  %s2427 = scalar_lea.vmem %s1, 24
  %2428 = vst.msk [vmem:[%s2427] sm:$0xff] %vm2426, %v2425
  %s2429 = scalar_lea.vmem %s0, 901
  %s2430 = smov 3
  %v2431 = vld [vmem:[%s2429] ss:$16 sm:%s2430]
  %s2432 = scalar_lea.vmem %s0, 901
  %s2433 = smov 12
  %v2434 = vld [vmem:[%s2432] ss:$16 sm:%s2433]
  %vm2435 = vcmask 1043458
  %v2436 = vsel %vm2435, %v2434, %v2431
  %s2437 = scalar_lea.vmem %s0, 901
  %s2438 = smov 48
  %v2439 = vld [vmem:[%s2437] ss:$16 sm:%s2438]
  %vm2440 = vcmask 1045508
  %v2441 = vsel %vm2440, %v2439, %v2436
  %s2442 = scalar_lea.vmem %s0, 901
  %s2443 = smov 192
  %v2444 = vld [vmem:[%s2442] ss:$16 sm:%s2443]
  %vm2445 = vcmask 1047558
  %v2446 = vsel %vm2445, %v2444, %v2441
  %2447 = vrot.lane.b32.xlu0 %v2446, 40
  %v2448 = vpop.permute.xlu0 %2447
  %vm2449 = vcmask 392512
  %s2450 = scalar_lea.vmem %s1, 56
  %2451 = vst.msk [vmem:[%s2450] sm:$0xff] %vm2449, %v2448
  %s2452 = scalar_lea.vmem %s0, 4
  %s2453 = smov 3
  %v2454 = vld [vmem:[%s2452] ss:$16 sm:%s2453]
  %s2455 = scalar_lea.vmem %s0, 4
  %s2456 = smov 12
  %v2457 = vld [vmem:[%s2455] ss:$16 sm:%s2456]
  %vm2458 = vcmask 1043458
  %v2459 = vsel %vm2458, %v2457, %v2454
  %s2460 = scalar_lea.vmem %s0, 4
  %s2461 = smov 48
  %v2462 = vld [vmem:[%s2460] ss:$16 sm:%s2461]
  %vm2463 = vcmask 1045508
  %v2464 = vsel %vm2463, %v2462, %v2459
  %s2465 = scalar_lea.vmem %s0, 4
  %s2466 = smov 192
  %v2467 = vld [vmem:[%s2465] ss:$16 sm:%s2466]
  %vm2468 = vcmask 1047558
  %v2469 = vsel %vm2468, %v2467, %v2464
  %2470 = vrot.lane.b32.xlu0 %v2469, 32
  %v2471 = vpop.permute.xlu0 %2470
  %vm2472 = vcmask 326912
  %2473 = vst.msk [vmem:[%s1] sm:$0xff] %vm2472, %v2471
  %s2474 = scalar_lea.vmem %s0, 516
  %s2475 = smov 3
  %v2476 = vld [vmem:[%s2474] ss:$16 sm:%s2475]
  %s2477 = scalar_lea.vmem %s0, 516
  %s2478 = smov 12
  %v2479 = vld [vmem:[%s2477] ss:$16 sm:%s2478]
  %vm2480 = vcmask 1043458
  %v2481 = vsel %vm2480, %v2479, %v2476
  %s2482 = scalar_lea.vmem %s0, 516
  %s2483 = smov 48
  %v2484 = vld [vmem:[%s2482] ss:$16 sm:%s2483]
  %vm2485 = vcmask 1045508
  %v2486 = vsel %vm2485, %v2484, %v2481
  %s2487 = scalar_lea.vmem %s0, 516
  %s2488 = smov 192
  %v2489 = vld [vmem:[%s2487] ss:$16 sm:%s2488]
  %vm2490 = vcmask 1047558
  %v2491 = vsel %vm2490, %v2489, %v2486
  %2492 = vrot.lane.b32.xlu0 %v2491, 32
  %v2493 = vpop.permute.xlu0 %2492
  %vm2494 = vcmask 326912
  %s2495 = scalar_lea.vmem %s1, 32
  %2496 = vst.msk [vmem:[%s2495] sm:$0xff] %vm2494, %v2493
  %s2497 = scalar_lea.vmem %s0, 1028
  %s2498 = smov 3
  %v2499 = vld [vmem:[%s2497] ss:$16 sm:%s2498]
  %s2500 = scalar_lea.vmem %s0, 1028
  %s2501 = smov 12
  %v2502 = vld [vmem:[%s2500] ss:$16 sm:%s2501]
  %vm2503 = vcmask 1043458
  %v2504 = vsel %vm2503, %v2502, %v2499
  %s2505 = scalar_lea.vmem %s0, 1028
  %s2506 = smov 48
  %v2507 = vld [vmem:[%s2505] ss:$16 sm:%s2506]
  %vm2508 = vcmask 1045508
  %v2509 = vsel %vm2508, %v2507, %v2504
  %s2510 = scalar_lea.vmem %s0, 1028
  %s2511 = smov 192
  %v2512 = vld [vmem:[%s2510] ss:$16 sm:%s2511]
  %vm2513 = vcmask 1047558
  %v2514 = vsel %vm2513, %v2512, %v2509
  %2515 = vrot.lane.b32.xlu0 %v2514, 32
  %v2516 = vpop.permute.xlu0 %2515
  %vm2517 = vcmask 326912
  %s2518 = scalar_lea.vmem %s1, 64
  %2519 = vst.msk [vmem:[%s2518] sm:$0xff] %vm2517, %v2516
  %s2520 = scalar_lea.vmem %s0, 132
  %s2521 = smov 3
  %v2522 = vld [vmem:[%s2520] ss:$16 sm:%s2521]
  %s2523 = scalar_lea.vmem %s0, 132
  %s2524 = smov 12
  %v2525 = vld [vmem:[%s2523] ss:$16 sm:%s2524]
  %vm2526 = vcmask 1043458
  %v2527 = vsel %vm2526, %v2525, %v2522
  %s2528 = scalar_lea.vmem %s0, 132
  %s2529 = smov 48
  %v2530 = vld [vmem:[%s2528] ss:$16 sm:%s2529]
  %vm2531 = vcmask 1045508
  %v2532 = vsel %vm2531, %v2530, %v2527
  %s2533 = scalar_lea.vmem %s0, 132
  %s2534 = smov 192
  %v2535 = vld [vmem:[%s2533] ss:$16 sm:%s2534]
  %vm2536 = vcmask 1047558
  %v2537 = vsel %vm2536, %v2535, %v2532
  %2538 = vrot.lane.b32.xlu0 %v2537, 32
  %v2539 = vpop.permute.xlu0 %2538
  %vm2540 = vcmask 326912
  %s2541 = scalar_lea.vmem %s1, 8
  %2542 = vst.msk [vmem:[%s2541] sm:$0xff] %vm2540, %v2539
  %s2543 = scalar_lea.vmem %s0, 644
  %s2544 = smov 3
  %v2545 = vld [vmem:[%s2543] ss:$16 sm:%s2544]
  %s2546 = scalar_lea.vmem %s0, 644
  %s2547 = smov 12
  %v2548 = vld [vmem:[%s2546] ss:$16 sm:%s2547]
  %vm2549 = vcmask 1043458
  %v2550 = vsel %vm2549, %v2548, %v2545
  %s2551 = scalar_lea.vmem %s0, 644
  %s2552 = smov 48
  %v2553 = vld [vmem:[%s2551] ss:$16 sm:%s2552]
  %vm2554 = vcmask 1045508
  %v2555 = vsel %vm2554, %v2553, %v2550
  %s2556 = scalar_lea.vmem %s0, 644
  %s2557 = smov 192
  %v2558 = vld [vmem:[%s2556] ss:$16 sm:%s2557]
  %vm2559 = vcmask 1047558
  %v2560 = vsel %vm2559, %v2558, %v2555
  %2561 = vrot.lane.b32.xlu0 %v2560, 32
  %v2562 = vpop.permute.xlu0 %2561
  %vm2563 = vcmask 326912
  %s2564 = scalar_lea.vmem %s1, 40
  %2565 = vst.msk [vmem:[%s2564] sm:$0xff] %vm2563, %v2562
  %s2566 = scalar_lea.vmem %s0, 260
  %s2567 = smov 3
  %v2568 = vld [vmem:[%s2566] ss:$16 sm:%s2567]
  %s2569 = scalar_lea.vmem %s0, 260
  %s2570 = smov 12
  %v2571 = vld [vmem:[%s2569] ss:$16 sm:%s2570]
  %vm2572 = vcmask 1043458
  %v2573 = vsel %vm2572, %v2571, %v2568
  %s2574 = scalar_lea.vmem %s0, 260
  %s2575 = smov 48
  %v2576 = vld [vmem:[%s2574] ss:$16 sm:%s2575]
  %vm2577 = vcmask 1045508
  %v2578 = vsel %vm2577, %v2576, %v2573
  %s2579 = scalar_lea.vmem %s0, 260
  %s2580 = smov 192
  %v2581 = vld [vmem:[%s2579] ss:$16 sm:%s2580]
  %vm2582 = vcmask 1047558
  %v2583 = vsel %vm2582, %v2581, %v2578
  %2584 = vrot.lane.b32.xlu0 %v2583, 32
  %v2585 = vpop.permute.xlu0 %2584
  %vm2586 = vcmask 326912
  %s2587 = scalar_lea.vmem %s1, 16
  %2588 = vst.msk [vmem:[%s2587] sm:$0xff] %vm2586, %v2585
  %s2589 = scalar_lea.vmem %s0, 772
  %s2590 = smov 3
  %v2591 = vld [vmem:[%s2589] ss:$16 sm:%s2590]
  %s2592 = scalar_lea.vmem %s0, 772
  %s2593 = smov 12
  %v2594 = vld [vmem:[%s2592] ss:$16 sm:%s2593]
  %vm2595 = vcmask 1043458
  %v2596 = vsel %vm2595, %v2594, %v2591
  %s2597 = scalar_lea.vmem %s0, 772
  %s2598 = smov 48
  %v2599 = vld [vmem:[%s2597] ss:$16 sm:%s2598]
  %vm2600 = vcmask 1045508
  %v2601 = vsel %vm2600, %v2599, %v2596
  %s2602 = scalar_lea.vmem %s0, 772
  %s2603 = smov 192
  %v2604 = vld [vmem:[%s2602] ss:$16 sm:%s2603]
  %vm2605 = vcmask 1047558
  %v2606 = vsel %vm2605, %v2604, %v2601
  %2607 = vrot.lane.b32.xlu0 %v2606, 32
  %v2608 = vpop.permute.xlu0 %2607
  %vm2609 = vcmask 326912
  %s2610 = scalar_lea.vmem %s1, 48
  %2611 = vst.msk [vmem:[%s2610] sm:$0xff] %vm2609, %v2608
  %s2612 = scalar_lea.vmem %s0, 388
  %s2613 = smov 3
  %v2614 = vld [vmem:[%s2612] ss:$16 sm:%s2613]
  %s2615 = scalar_lea.vmem %s0, 388
  %s2616 = smov 12
  %v2617 = vld [vmem:[%s2615] ss:$16 sm:%s2616]
  %vm2618 = vcmask 1043458
  %v2619 = vsel %vm2618, %v2617, %v2614
  %s2620 = scalar_lea.vmem %s0, 388
  %s2621 = smov 48
  %v2622 = vld [vmem:[%s2620] ss:$16 sm:%s2621]
  %vm2623 = vcmask 1045508
  %v2624 = vsel %vm2623, %v2622, %v2619
  %s2625 = scalar_lea.vmem %s0, 388
  %s2626 = smov 192
  %v2627 = vld [vmem:[%s2625] ss:$16 sm:%s2626]
  %vm2628 = vcmask 1047558
  %v2629 = vsel %vm2628, %v2627, %v2624
  %2630 = vrot.lane.b32.xlu0 %v2629, 32
  %v2631 = vpop.permute.xlu0 %2630
  %vm2632 = vcmask 326912
  %s2633 = scalar_lea.vmem %s1, 24
  %2634 = vst.msk [vmem:[%s2633] sm:$0xff] %vm2632, %v2631
  %s2635 = scalar_lea.vmem %s0, 900
  %s2636 = smov 3
  %v2637 = vld [vmem:[%s2635] ss:$16 sm:%s2636]
  %s2638 = scalar_lea.vmem %s0, 900
  %s2639 = smov 12
  %v2640 = vld [vmem:[%s2638] ss:$16 sm:%s2639]
  %vm2641 = vcmask 1043458
  %v2642 = vsel %vm2641, %v2640, %v2637
  %s2643 = scalar_lea.vmem %s0, 900
  %s2644 = smov 48
  %v2645 = vld [vmem:[%s2643] ss:$16 sm:%s2644]
  %vm2646 = vcmask 1045508
  %v2647 = vsel %vm2646, %v2645, %v2642
  %s2648 = scalar_lea.vmem %s0, 900
  %s2649 = smov 192
  %v2650 = vld [vmem:[%s2648] ss:$16 sm:%s2649]
  %vm2651 = vcmask 1047558
  %v2652 = vsel %vm2651, %v2650, %v2647
  %2653 = vrot.lane.b32.xlu0 %v2652, 32
  %v2654 = vpop.permute.xlu0 %2653
  %vm2655 = vcmask 326912
  %s2656 = scalar_lea.vmem %s1, 56
  %2657 = vst.msk [vmem:[%s2656] sm:$0xff] %vm2655, %v2654
  %s2658 = scalar_lea.vmem %s0, 3
  %s2659 = smov 3
  %v2660 = vld [vmem:[%s2658] ss:$16 sm:%s2659]
  %s2661 = scalar_lea.vmem %s0, 3
  %s2662 = smov 12
  %v2663 = vld [vmem:[%s2661] ss:$16 sm:%s2662]
  %vm2664 = vcmask 1043458
  %v2665 = vsel %vm2664, %v2663, %v2660
  %s2666 = scalar_lea.vmem %s0, 3
  %s2667 = smov 48
  %v2668 = vld [vmem:[%s2666] ss:$16 sm:%s2667]
  %vm2669 = vcmask 1045508
  %v2670 = vsel %vm2669, %v2668, %v2665
  %s2671 = scalar_lea.vmem %s0, 3
  %s2672 = smov 192
  %v2673 = vld [vmem:[%s2671] ss:$16 sm:%s2672]
  %vm2674 = vcmask 1047558
  %v2675 = vsel %vm2674, %v2673, %v2670
  %2676 = vrot.lane.b32.xlu0 %v2675, 24
  %v2677 = vpop.permute.xlu0 %2676
  %vm2678 = vcmask 261312
  %2679 = vst.msk [vmem:[%s1] sm:$0xff] %vm2678, %v2677
  %s2680 = scalar_lea.vmem %s0, 515
  %s2681 = smov 3
  %v2682 = vld [vmem:[%s2680] ss:$16 sm:%s2681]
  %s2683 = scalar_lea.vmem %s0, 515
  %s2684 = smov 12
  %v2685 = vld [vmem:[%s2683] ss:$16 sm:%s2684]
  %vm2686 = vcmask 1043458
  %v2687 = vsel %vm2686, %v2685, %v2682
  %s2688 = scalar_lea.vmem %s0, 515
  %s2689 = smov 48
  %v2690 = vld [vmem:[%s2688] ss:$16 sm:%s2689]
  %vm2691 = vcmask 1045508
  %v2692 = vsel %vm2691, %v2690, %v2687
  %s2693 = scalar_lea.vmem %s0, 515
  %s2694 = smov 192
  %v2695 = vld [vmem:[%s2693] ss:$16 sm:%s2694]
  %vm2696 = vcmask 1047558
  %v2697 = vsel %vm2696, %v2695, %v2692
  %2698 = vrot.lane.b32.xlu0 %v2697, 24
  %v2699 = vpop.permute.xlu0 %2698
  %vm2700 = vcmask 261312
  %s2701 = scalar_lea.vmem %s1, 32
  %2702 = vst.msk [vmem:[%s2701] sm:$0xff] %vm2700, %v2699
  %s2703 = scalar_lea.vmem %s0, 1027
  %s2704 = smov 3
  %v2705 = vld [vmem:[%s2703] ss:$16 sm:%s2704]
  %s2706 = scalar_lea.vmem %s0, 1027
  %s2707 = smov 12
  %v2708 = vld [vmem:[%s2706] ss:$16 sm:%s2707]
  %vm2709 = vcmask 1043458
  %v2710 = vsel %vm2709, %v2708, %v2705
  %s2711 = scalar_lea.vmem %s0, 1027
  %s2712 = smov 48
  %v2713 = vld [vmem:[%s2711] ss:$16 sm:%s2712]
  %vm2714 = vcmask 1045508
  %v2715 = vsel %vm2714, %v2713, %v2710
  %s2716 = scalar_lea.vmem %s0, 1027
  %s2717 = smov 192
  %v2718 = vld [vmem:[%s2716] ss:$16 sm:%s2717]
  %vm2719 = vcmask 1047558
  %v2720 = vsel %vm2719, %v2718, %v2715
  %2721 = vrot.lane.b32.xlu0 %v2720, 24
  %v2722 = vpop.permute.xlu0 %2721
  %vm2723 = vcmask 261312
  %s2724 = scalar_lea.vmem %s1, 64
  %2725 = vst.msk [vmem:[%s2724] sm:$0xff] %vm2723, %v2722
  %s2726 = scalar_lea.vmem %s0, 131
  %s2727 = smov 3
  %v2728 = vld [vmem:[%s2726] ss:$16 sm:%s2727]
  %s2729 = scalar_lea.vmem %s0, 131
  %s2730 = smov 12
  %v2731 = vld [vmem:[%s2729] ss:$16 sm:%s2730]
  %vm2732 = vcmask 1043458
  %v2733 = vsel %vm2732, %v2731, %v2728
  %s2734 = scalar_lea.vmem %s0, 131
  %s2735 = smov 48
  %v2736 = vld [vmem:[%s2734] ss:$16 sm:%s2735]
  %vm2737 = vcmask 1045508
  %v2738 = vsel %vm2737, %v2736, %v2733
  %s2739 = scalar_lea.vmem %s0, 131
  %s2740 = smov 192
  %v2741 = vld [vmem:[%s2739] ss:$16 sm:%s2740]
  %vm2742 = vcmask 1047558
  %v2743 = vsel %vm2742, %v2741, %v2738
  %2744 = vrot.lane.b32.xlu0 %v2743, 24
  %v2745 = vpop.permute.xlu0 %2744
  %vm2746 = vcmask 261312
  %s2747 = scalar_lea.vmem %s1, 8
  %2748 = vst.msk [vmem:[%s2747] sm:$0xff] %vm2746, %v2745
  %s2749 = scalar_lea.vmem %s0, 643
  %s2750 = smov 3
  %v2751 = vld [vmem:[%s2749] ss:$16 sm:%s2750]
  %s2752 = scalar_lea.vmem %s0, 643
  %s2753 = smov 12
  %v2754 = vld [vmem:[%s2752] ss:$16 sm:%s2753]
  %vm2755 = vcmask 1043458
  %v2756 = vsel %vm2755, %v2754, %v2751
  %s2757 = scalar_lea.vmem %s0, 643
  %s2758 = smov 48
  %v2759 = vld [vmem:[%s2757] ss:$16 sm:%s2758]
  %vm2760 = vcmask 1045508
  %v2761 = vsel %vm2760, %v2759, %v2756
  %s2762 = scalar_lea.vmem %s0, 643
  %s2763 = smov 192
  %v2764 = vld [vmem:[%s2762] ss:$16 sm:%s2763]
  %vm2765 = vcmask 1047558
  %v2766 = vsel %vm2765, %v2764, %v2761
  %2767 = vrot.lane.b32.xlu0 %v2766, 24
  %v2768 = vpop.permute.xlu0 %2767
  %vm2769 = vcmask 261312
  %s2770 = scalar_lea.vmem %s1, 40
  %2771 = vst.msk [vmem:[%s2770] sm:$0xff] %vm2769, %v2768
  %s2772 = scalar_lea.vmem %s0, 259
  %s2773 = smov 3
  %v2774 = vld [vmem:[%s2772] ss:$16 sm:%s2773]
  %s2775 = scalar_lea.vmem %s0, 259
  %s2776 = smov 12
  %v2777 = vld [vmem:[%s2775] ss:$16 sm:%s2776]
  %vm2778 = vcmask 1043458
  %v2779 = vsel %vm2778, %v2777, %v2774
  %s2780 = scalar_lea.vmem %s0, 259
  %s2781 = smov 48
  %v2782 = vld [vmem:[%s2780] ss:$16 sm:%s2781]
  %vm2783 = vcmask 1045508
  %v2784 = vsel %vm2783, %v2782, %v2779
  %s2785 = scalar_lea.vmem %s0, 259
  %s2786 = smov 192
  %v2787 = vld [vmem:[%s2785] ss:$16 sm:%s2786]
  %vm2788 = vcmask 1047558
  %v2789 = vsel %vm2788, %v2787, %v2784
  %2790 = vrot.lane.b32.xlu0 %v2789, 24
  %v2791 = vpop.permute.xlu0 %2790
  %vm2792 = vcmask 261312
  %s2793 = scalar_lea.vmem %s1, 16
  %2794 = vst.msk [vmem:[%s2793] sm:$0xff] %vm2792, %v2791
  %s2795 = scalar_lea.vmem %s0, 771
  %s2796 = smov 3
  %v2797 = vld [vmem:[%s2795] ss:$16 sm:%s2796]
  %s2798 = scalar_lea.vmem %s0, 771
  %s2799 = smov 12
  %v2800 = vld [vmem:[%s2798] ss:$16 sm:%s2799]
  %vm2801 = vcmask 1043458
  %v2802 = vsel %vm2801, %v2800, %v2797
  %s2803 = scalar_lea.vmem %s0, 771
  %s2804 = smov 48
  %v2805 = vld [vmem:[%s2803] ss:$16 sm:%s2804]
  %vm2806 = vcmask 1045508
  %v2807 = vsel %vm2806, %v2805, %v2802
  %s2808 = scalar_lea.vmem %s0, 771
  %s2809 = smov 192
  %v2810 = vld [vmem:[%s2808] ss:$16 sm:%s2809]
  %vm2811 = vcmask 1047558
  %v2812 = vsel %vm2811, %v2810, %v2807
  %2813 = vrot.lane.b32.xlu0 %v2812, 24
  %v2814 = vpop.permute.xlu0 %2813
  %vm2815 = vcmask 261312
  %s2816 = scalar_lea.vmem %s1, 48
  %2817 = vst.msk [vmem:[%s2816] sm:$0xff] %vm2815, %v2814
  %s2818 = scalar_lea.vmem %s0, 387
  %s2819 = smov 3
  %v2820 = vld [vmem:[%s2818] ss:$16 sm:%s2819]
  %s2821 = scalar_lea.vmem %s0, 387
  %s2822 = smov 12
  %v2823 = vld [vmem:[%s2821] ss:$16 sm:%s2822]
  %vm2824 = vcmask 1043458
  %v2825 = vsel %vm2824, %v2823, %v2820
  %s2826 = scalar_lea.vmem %s0, 387
  %s2827 = smov 48
  %v2828 = vld [vmem:[%s2826] ss:$16 sm:%s2827]
  %vm2829 = vcmask 1045508
  %v2830 = vsel %vm2829, %v2828, %v2825
  %s2831 = scalar_lea.vmem %s0, 387
  %s2832 = smov 192
  %v2833 = vld [vmem:[%s2831] ss:$16 sm:%s2832]
  %vm2834 = vcmask 1047558
  %v2835 = vsel %vm2834, %v2833, %v2830
  %2836 = vrot.lane.b32.xlu0 %v2835, 24
  %v2837 = vpop.permute.xlu0 %2836
  %vm2838 = vcmask 261312
  %s2839 = scalar_lea.vmem %s1, 24
  %2840 = vst.msk [vmem:[%s2839] sm:$0xff] %vm2838, %v2837
  %s2841 = scalar_lea.vmem %s0, 899
  %s2842 = smov 3
  %v2843 = vld [vmem:[%s2841] ss:$16 sm:%s2842]
  %s2844 = scalar_lea.vmem %s0, 899
  %s2845 = smov 12
  %v2846 = vld [vmem:[%s2844] ss:$16 sm:%s2845]
  %vm2847 = vcmask 1043458
  %v2848 = vsel %vm2847, %v2846, %v2843
  %s2849 = scalar_lea.vmem %s0, 899
  %s2850 = smov 48
  %v2851 = vld [vmem:[%s2849] ss:$16 sm:%s2850]
  %vm2852 = vcmask 1045508
  %v2853 = vsel %vm2852, %v2851, %v2848
  %s2854 = scalar_lea.vmem %s0, 899
  %s2855 = smov 192
  %v2856 = vld [vmem:[%s2854] ss:$16 sm:%s2855]
  %vm2857 = vcmask 1047558
  %v2858 = vsel %vm2857, %v2856, %v2853
  %2859 = vrot.lane.b32.xlu0 %v2858, 24
  %v2860 = vpop.permute.xlu0 %2859
  %vm2861 = vcmask 261312
  %s2862 = scalar_lea.vmem %s1, 56
  %2863 = vst.msk [vmem:[%s2862] sm:$0xff] %vm2861, %v2860
  %s2864 = scalar_lea.vmem %s0, 2
  %s2865 = smov 3
  %v2866 = vld [vmem:[%s2864] ss:$16 sm:%s2865]
  %s2867 = scalar_lea.vmem %s0, 2
  %s2868 = smov 12
  %v2869 = vld [vmem:[%s2867] ss:$16 sm:%s2868]
  %vm2870 = vcmask 1043458
  %v2871 = vsel %vm2870, %v2869, %v2866
  %s2872 = scalar_lea.vmem %s0, 2
  %s2873 = smov 48
  %v2874 = vld [vmem:[%s2872] ss:$16 sm:%s2873]
  %vm2875 = vcmask 1045508
  %v2876 = vsel %vm2875, %v2874, %v2871
  %s2877 = scalar_lea.vmem %s0, 2
  %s2878 = smov 192
  %v2879 = vld [vmem:[%s2877] ss:$16 sm:%s2878]
  %vm2880 = vcmask 1047558
  %v2881 = vsel %vm2880, %v2879, %v2876
  %2882 = vrot.lane.b32.xlu0 %v2881, 16
  %v2883 = vpop.permute.xlu0 %2882
  %vm2884 = vcmask 195712
  %2885 = vst.msk [vmem:[%s1] sm:$0xff] %vm2884, %v2883
  %s2886 = scalar_lea.vmem %s0, 514
  %s2887 = smov 3
  %v2888 = vld [vmem:[%s2886] ss:$16 sm:%s2887]
  %s2889 = scalar_lea.vmem %s0, 514
  %s2890 = smov 12
  %v2891 = vld [vmem:[%s2889] ss:$16 sm:%s2890]
  %vm2892 = vcmask 1043458
  %v2893 = vsel %vm2892, %v2891, %v2888
  %s2894 = scalar_lea.vmem %s0, 514
  %s2895 = smov 48
  %v2896 = vld [vmem:[%s2894] ss:$16 sm:%s2895]
  %vm2897 = vcmask 1045508
  %v2898 = vsel %vm2897, %v2896, %v2893
  %s2899 = scalar_lea.vmem %s0, 514
  %s2900 = smov 192
  %v2901 = vld [vmem:[%s2899] ss:$16 sm:%s2900]
  %vm2902 = vcmask 1047558
  %v2903 = vsel %vm2902, %v2901, %v2898
  %2904 = vrot.lane.b32.xlu0 %v2903, 16
  %v2905 = vpop.permute.xlu0 %2904
  %vm2906 = vcmask 195712
  %s2907 = scalar_lea.vmem %s1, 32
  %2908 = vst.msk [vmem:[%s2907] sm:$0xff] %vm2906, %v2905
  %s2909 = scalar_lea.vmem %s0, 1026
  %s2910 = smov 3
  %v2911 = vld [vmem:[%s2909] ss:$16 sm:%s2910]
  %s2912 = scalar_lea.vmem %s0, 1026
  %s2913 = smov 12
  %v2914 = vld [vmem:[%s2912] ss:$16 sm:%s2913]
  %vm2915 = vcmask 1043458
  %v2916 = vsel %vm2915, %v2914, %v2911
  %s2917 = scalar_lea.vmem %s0, 1026
  %s2918 = smov 48
  %v2919 = vld [vmem:[%s2917] ss:$16 sm:%s2918]
  %vm2920 = vcmask 1045508
  %v2921 = vsel %vm2920, %v2919, %v2916
  %s2922 = scalar_lea.vmem %s0, 1026
  %s2923 = smov 192
  %v2924 = vld [vmem:[%s2922] ss:$16 sm:%s2923]
  %vm2925 = vcmask 1047558
  %v2926 = vsel %vm2925, %v2924, %v2921
  %2927 = vrot.lane.b32.xlu0 %v2926, 16
  %v2928 = vpop.permute.xlu0 %2927
  %vm2929 = vcmask 195712
  %s2930 = scalar_lea.vmem %s1, 64
  %2931 = vst.msk [vmem:[%s2930] sm:$0xff] %vm2929, %v2928
  %s2932 = scalar_lea.vmem %s0, 130
  %s2933 = smov 3
  %v2934 = vld [vmem:[%s2932] ss:$16 sm:%s2933]
  %s2935 = scalar_lea.vmem %s0, 130
  %s2936 = smov 12
  %v2937 = vld [vmem:[%s2935] ss:$16 sm:%s2936]
  %vm2938 = vcmask 1043458
  %v2939 = vsel %vm2938, %v2937, %v2934
  %s2940 = scalar_lea.vmem %s0, 130
  %s2941 = smov 48
  %v2942 = vld [vmem:[%s2940] ss:$16 sm:%s2941]
  %vm2943 = vcmask 1045508
  %v2944 = vsel %vm2943, %v2942, %v2939
  %s2945 = scalar_lea.vmem %s0, 130
  %s2946 = smov 192
  %v2947 = vld [vmem:[%s2945] ss:$16 sm:%s2946]
  %vm2948 = vcmask 1047558
  %v2949 = vsel %vm2948, %v2947, %v2944
  %2950 = vrot.lane.b32.xlu0 %v2949, 16
  %v2951 = vpop.permute.xlu0 %2950
  %vm2952 = vcmask 195712
  %s2953 = scalar_lea.vmem %s1, 8
  %2954 = vst.msk [vmem:[%s2953] sm:$0xff] %vm2952, %v2951
  %s2955 = scalar_lea.vmem %s0, 642
  %s2956 = smov 3
  %v2957 = vld [vmem:[%s2955] ss:$16 sm:%s2956]
  %s2958 = scalar_lea.vmem %s0, 642
  %s2959 = smov 12
  %v2960 = vld [vmem:[%s2958] ss:$16 sm:%s2959]
  %vm2961 = vcmask 1043458
  %v2962 = vsel %vm2961, %v2960, %v2957
  %s2963 = scalar_lea.vmem %s0, 642
  %s2964 = smov 48
  %v2965 = vld [vmem:[%s2963] ss:$16 sm:%s2964]
  %vm2966 = vcmask 1045508
  %v2967 = vsel %vm2966, %v2965, %v2962
  %s2968 = scalar_lea.vmem %s0, 642
  %s2969 = smov 192
  %v2970 = vld [vmem:[%s2968] ss:$16 sm:%s2969]
  %vm2971 = vcmask 1047558
  %v2972 = vsel %vm2971, %v2970, %v2967
  %2973 = vrot.lane.b32.xlu0 %v2972, 16
  %v2974 = vpop.permute.xlu0 %2973
  %vm2975 = vcmask 195712
  %s2976 = scalar_lea.vmem %s1, 40
  %2977 = vst.msk [vmem:[%s2976] sm:$0xff] %vm2975, %v2974
  %s2978 = scalar_lea.vmem %s0, 258
  %s2979 = smov 3
  %v2980 = vld [vmem:[%s2978] ss:$16 sm:%s2979]
  %s2981 = scalar_lea.vmem %s0, 258
  %s2982 = smov 12
  %v2983 = vld [vmem:[%s2981] ss:$16 sm:%s2982]
  %vm2984 = vcmask 1043458
  %v2985 = vsel %vm2984, %v2983, %v2980
  %s2986 = scalar_lea.vmem %s0, 258
  %s2987 = smov 48
  %v2988 = vld [vmem:[%s2986] ss:$16 sm:%s2987]
  %vm2989 = vcmask 1045508
  %v2990 = vsel %vm2989, %v2988, %v2985
  %s2991 = scalar_lea.vmem %s0, 258
  %s2992 = smov 192
  %v2993 = vld [vmem:[%s2991] ss:$16 sm:%s2992]
  %vm2994 = vcmask 1047558
  %v2995 = vsel %vm2994, %v2993, %v2990
  %2996 = vrot.lane.b32.xlu0 %v2995, 16
  %v2997 = vpop.permute.xlu0 %2996
  %vm2998 = vcmask 195712
  %s2999 = scalar_lea.vmem %s1, 16
  %3000 = vst.msk [vmem:[%s2999] sm:$0xff] %vm2998, %v2997
  %s3001 = scalar_lea.vmem %s0, 770
  %s3002 = smov 3
  %v3003 = vld [vmem:[%s3001] ss:$16 sm:%s3002]
  %s3004 = scalar_lea.vmem %s0, 770
  %s3005 = smov 12
  %v3006 = vld [vmem:[%s3004] ss:$16 sm:%s3005]
  %vm3007 = vcmask 1043458
  %v3008 = vsel %vm3007, %v3006, %v3003
  %s3009 = scalar_lea.vmem %s0, 770
  %s3010 = smov 48
  %v3011 = vld [vmem:[%s3009] ss:$16 sm:%s3010]
  %vm3012 = vcmask 1045508
  %v3013 = vsel %vm3012, %v3011, %v3008
  %s3014 = scalar_lea.vmem %s0, 770
  %s3015 = smov 192
  %v3016 = vld [vmem:[%s3014] ss:$16 sm:%s3015]
  %vm3017 = vcmask 1047558
  %v3018 = vsel %vm3017, %v3016, %v3013
  %3019 = vrot.lane.b32.xlu0 %v3018, 16
  %v3020 = vpop.permute.xlu0 %3019
  %vm3021 = vcmask 195712
  %s3022 = scalar_lea.vmem %s1, 48
  %3023 = vst.msk [vmem:[%s3022] sm:$0xff] %vm3021, %v3020
  %s3024 = scalar_lea.vmem %s0, 386
  %s3025 = smov 3
  %v3026 = vld [vmem:[%s3024] ss:$16 sm:%s3025]
  %s3027 = scalar_lea.vmem %s0, 386
  %s3028 = smov 12
  %v3029 = vld [vmem:[%s3027] ss:$16 sm:%s3028]
  %vm3030 = vcmask 1043458
  %v3031 = vsel %vm3030, %v3029, %v3026
  %s3032 = scalar_lea.vmem %s0, 386
  %s3033 = smov 48
  %v3034 = vld [vmem:[%s3032] ss:$16 sm:%s3033]
  %vm3035 = vcmask 1045508
  %v3036 = vsel %vm3035, %v3034, %v3031
  %s3037 = scalar_lea.vmem %s0, 386
  %s3038 = smov 192
  %v3039 = vld [vmem:[%s3037] ss:$16 sm:%s3038]
  %vm3040 = vcmask 1047558
  %v3041 = vsel %vm3040, %v3039, %v3036
  %3042 = vrot.lane.b32.xlu0 %v3041, 16
  %v3043 = vpop.permute.xlu0 %3042
  %vm3044 = vcmask 195712
  %s3045 = scalar_lea.vmem %s1, 24
  %3046 = vst.msk [vmem:[%s3045] sm:$0xff] %vm3044, %v3043
  %s3047 = scalar_lea.vmem %s0, 898
  %s3048 = smov 3
  %v3049 = vld [vmem:[%s3047] ss:$16 sm:%s3048]
  %s3050 = scalar_lea.vmem %s0, 898
  %s3051 = smov 12
  %v3052 = vld [vmem:[%s3050] ss:$16 sm:%s3051]
  %vm3053 = vcmask 1043458
  %v3054 = vsel %vm3053, %v3052, %v3049
  %s3055 = scalar_lea.vmem %s0, 898
  %s3056 = smov 48
  %v3057 = vld [vmem:[%s3055] ss:$16 sm:%s3056]
  %vm3058 = vcmask 1045508
  %v3059 = vsel %vm3058, %v3057, %v3054
  %s3060 = scalar_lea.vmem %s0, 898
  %s3061 = smov 192
  %v3062 = vld [vmem:[%s3060] ss:$16 sm:%s3061]
  %vm3063 = vcmask 1047558
  %v3064 = vsel %vm3063, %v3062, %v3059
  %3065 = vrot.lane.b32.xlu0 %v3064, 16
  %v3066 = vpop.permute.xlu0 %3065
  %vm3067 = vcmask 195712
  %s3068 = scalar_lea.vmem %s1, 56
  %3069 = vst.msk [vmem:[%s3068] sm:$0xff] %vm3067, %v3066
  %s3070 = scalar_lea.vmem %s0, 1
  %s3071 = smov 3
  %v3072 = vld [vmem:[%s3070] ss:$16 sm:%s3071]
  %s3073 = scalar_lea.vmem %s0, 1
  %s3074 = smov 12
  %v3075 = vld [vmem:[%s3073] ss:$16 sm:%s3074]
  %vm3076 = vcmask 1043458
  %v3077 = vsel %vm3076, %v3075, %v3072
  %s3078 = scalar_lea.vmem %s0, 1
  %s3079 = smov 48
  %v3080 = vld [vmem:[%s3078] ss:$16 sm:%s3079]
  %vm3081 = vcmask 1045508
  %v3082 = vsel %vm3081, %v3080, %v3077
  %s3083 = scalar_lea.vmem %s0, 1
  %s3084 = smov 192
  %v3085 = vld [vmem:[%s3083] ss:$16 sm:%s3084]
  %vm3086 = vcmask 1047558
  %v3087 = vsel %vm3086, %v3085, %v3082
  %3088 = vrot.lane.b32.xlu0 %v3087, 8
  %v3089 = vpop.permute.xlu0 %3088
  %vm3090 = vcmask 130112
  %3091 = vst.msk [vmem:[%s1] sm:$0xff] %vm3090, %v3089
  %s3092 = scalar_lea.vmem %s0, 513
  %s3093 = smov 3
  %v3094 = vld [vmem:[%s3092] ss:$16 sm:%s3093]
  %s3095 = scalar_lea.vmem %s0, 513
  %s3096 = smov 12
  %v3097 = vld [vmem:[%s3095] ss:$16 sm:%s3096]
  %vm3098 = vcmask 1043458
  %v3099 = vsel %vm3098, %v3097, %v3094
  %s3100 = scalar_lea.vmem %s0, 513
  %s3101 = smov 48
  %v3102 = vld [vmem:[%s3100] ss:$16 sm:%s3101]
  %vm3103 = vcmask 1045508
  %v3104 = vsel %vm3103, %v3102, %v3099
  %s3105 = scalar_lea.vmem %s0, 513
  %s3106 = smov 192
  %v3107 = vld [vmem:[%s3105] ss:$16 sm:%s3106]
  %vm3108 = vcmask 1047558
  %v3109 = vsel %vm3108, %v3107, %v3104
  %3110 = vrot.lane.b32.xlu0 %v3109, 8
  %v3111 = vpop.permute.xlu0 %3110
  %vm3112 = vcmask 130112
  %s3113 = scalar_lea.vmem %s1, 32
  %3114 = vst.msk [vmem:[%s3113] sm:$0xff] %vm3112, %v3111
  %s3115 = scalar_lea.vmem %s0, 1025
  %s3116 = smov 3
  %v3117 = vld [vmem:[%s3115] ss:$16 sm:%s3116]
  %s3118 = scalar_lea.vmem %s0, 1025
  %s3119 = smov 12
  %v3120 = vld [vmem:[%s3118] ss:$16 sm:%s3119]
  %vm3121 = vcmask 1043458
  %v3122 = vsel %vm3121, %v3120, %v3117
  %s3123 = scalar_lea.vmem %s0, 1025
  %s3124 = smov 48
  %v3125 = vld [vmem:[%s3123] ss:$16 sm:%s3124]
  %vm3126 = vcmask 1045508
  %v3127 = vsel %vm3126, %v3125, %v3122
  %s3128 = scalar_lea.vmem %s0, 1025
  %s3129 = smov 192
  %v3130 = vld [vmem:[%s3128] ss:$16 sm:%s3129]
  %vm3131 = vcmask 1047558
  %v3132 = vsel %vm3131, %v3130, %v3127
  %3133 = vrot.lane.b32.xlu0 %v3132, 8
  %v3134 = vpop.permute.xlu0 %3133
  %vm3135 = vcmask 130112
  %s3136 = scalar_lea.vmem %s1, 64
  %3137 = vst.msk [vmem:[%s3136] sm:$0xff] %vm3135, %v3134
  %s3138 = scalar_lea.vmem %s0, 129
  %s3139 = smov 3
  %v3140 = vld [vmem:[%s3138] ss:$16 sm:%s3139]
  %s3141 = scalar_lea.vmem %s0, 129
  %s3142 = smov 12
  %v3143 = vld [vmem:[%s3141] ss:$16 sm:%s3142]
  %vm3144 = vcmask 1043458
  %v3145 = vsel %vm3144, %v3143, %v3140
  %s3146 = scalar_lea.vmem %s0, 129
  %s3147 = smov 48
  %v3148 = vld [vmem:[%s3146] ss:$16 sm:%s3147]
  %vm3149 = vcmask 1045508
  %v3150 = vsel %vm3149, %v3148, %v3145
  %s3151 = scalar_lea.vmem %s0, 129
  %s3152 = smov 192
  %v3153 = vld [vmem:[%s3151] ss:$16 sm:%s3152]
  %vm3154 = vcmask 1047558
  %v3155 = vsel %vm3154, %v3153, %v3150
  %3156 = vrot.lane.b32.xlu0 %v3155, 8
  %v3157 = vpop.permute.xlu0 %3156
  %vm3158 = vcmask 130112
  %s3159 = scalar_lea.vmem %s1, 8
  %3160 = vst.msk [vmem:[%s3159] sm:$0xff] %vm3158, %v3157
  %s3161 = scalar_lea.vmem %s0, 641
  %s3162 = smov 3
  %v3163 = vld [vmem:[%s3161] ss:$16 sm:%s3162]
  %s3164 = scalar_lea.vmem %s0, 641
  %s3165 = smov 12
  %v3166 = vld [vmem:[%s3164] ss:$16 sm:%s3165]
  %vm3167 = vcmask 1043458
  %v3168 = vsel %vm3167, %v3166, %v3163
  %s3169 = scalar_lea.vmem %s0, 641
  %s3170 = smov 48
  %v3171 = vld [vmem:[%s3169] ss:$16 sm:%s3170]
  %vm3172 = vcmask 1045508
  %v3173 = vsel %vm3172, %v3171, %v3168
  %s3174 = scalar_lea.vmem %s0, 641
  %s3175 = smov 192
  %v3176 = vld [vmem:[%s3174] ss:$16 sm:%s3175]
  %vm3177 = vcmask 1047558
  %v3178 = vsel %vm3177, %v3176, %v3173
  %3179 = vrot.lane.b32.xlu0 %v3178, 8
  %v3180 = vpop.permute.xlu0 %3179
  %vm3181 = vcmask 130112
  %s3182 = scalar_lea.vmem %s1, 40
  %3183 = vst.msk [vmem:[%s3182] sm:$0xff] %vm3181, %v3180
  %s3184 = scalar_lea.vmem %s0, 257
  %s3185 = smov 3
  %v3186 = vld [vmem:[%s3184] ss:$16 sm:%s3185]
  %s3187 = scalar_lea.vmem %s0, 257
  %s3188 = smov 12
  %v3189 = vld [vmem:[%s3187] ss:$16 sm:%s3188]
  %vm3190 = vcmask 1043458
  %v3191 = vsel %vm3190, %v3189, %v3186
  %s3192 = scalar_lea.vmem %s0, 257
  %s3193 = smov 48
  %v3194 = vld [vmem:[%s3192] ss:$16 sm:%s3193]
  %vm3195 = vcmask 1045508
  %v3196 = vsel %vm3195, %v3194, %v3191
  %s3197 = scalar_lea.vmem %s0, 257
  %s3198 = smov 192
  %v3199 = vld [vmem:[%s3197] ss:$16 sm:%s3198]
  %vm3200 = vcmask 1047558
  %v3201 = vsel %vm3200, %v3199, %v3196
  %3202 = vrot.lane.b32.xlu0 %v3201, 8
  %v3203 = vpop.permute.xlu0 %3202
  %vm3204 = vcmask 130112
  %s3205 = scalar_lea.vmem %s1, 16
  %3206 = vst.msk [vmem:[%s3205] sm:$0xff] %vm3204, %v3203
  %s3207 = scalar_lea.vmem %s0, 769
  %s3208 = smov 3
  %v3209 = vld [vmem:[%s3207] ss:$16 sm:%s3208]
  %s3210 = scalar_lea.vmem %s0, 769
  %s3211 = smov 12
  %v3212 = vld [vmem:[%s3210] ss:$16 sm:%s3211]
  %vm3213 = vcmask 1043458
  %v3214 = vsel %vm3213, %v3212, %v3209
  %s3215 = scalar_lea.vmem %s0, 769
  %s3216 = smov 48
  %v3217 = vld [vmem:[%s3215] ss:$16 sm:%s3216]
  %vm3218 = vcmask 1045508
  %v3219 = vsel %vm3218, %v3217, %v3214
  %s3220 = scalar_lea.vmem %s0, 769
  %s3221 = smov 192
  %v3222 = vld [vmem:[%s3220] ss:$16 sm:%s3221]
  %vm3223 = vcmask 1047558
  %v3224 = vsel %vm3223, %v3222, %v3219
  %3225 = vrot.lane.b32.xlu0 %v3224, 8
  %v3226 = vpop.permute.xlu0 %3225
  %vm3227 = vcmask 130112
  %s3228 = scalar_lea.vmem %s1, 48
  %3229 = vst.msk [vmem:[%s3228] sm:$0xff] %vm3227, %v3226
  %s3230 = scalar_lea.vmem %s0, 385
  %s3231 = smov 3
  %v3232 = vld [vmem:[%s3230] ss:$16 sm:%s3231]
  %s3233 = scalar_lea.vmem %s0, 385
  %s3234 = smov 12
  %v3235 = vld [vmem:[%s3233] ss:$16 sm:%s3234]
  %vm3236 = vcmask 1043458
  %v3237 = vsel %vm3236, %v3235, %v3232
  %s3238 = scalar_lea.vmem %s0, 385
  %s3239 = smov 48
  %v3240 = vld [vmem:[%s3238] ss:$16 sm:%s3239]
  %vm3241 = vcmask 1045508
  %v3242 = vsel %vm3241, %v3240, %v3237
  %s3243 = scalar_lea.vmem %s0, 385
  %s3244 = smov 192
  %v3245 = vld [vmem:[%s3243] ss:$16 sm:%s3244]
  %vm3246 = vcmask 1047558
  %v3247 = vsel %vm3246, %v3245, %v3242
  %3248 = vrot.lane.b32.xlu0 %v3247, 8
  %v3249 = vpop.permute.xlu0 %3248
  %vm3250 = vcmask 130112
  %s3251 = scalar_lea.vmem %s1, 24
  %3252 = vst.msk [vmem:[%s3251] sm:$0xff] %vm3250, %v3249
  %s3253 = scalar_lea.vmem %s0, 897
  %s3254 = smov 3
  %v3255 = vld [vmem:[%s3253] ss:$16 sm:%s3254]
  %s3256 = scalar_lea.vmem %s0, 897
  %s3257 = smov 12
  %v3258 = vld [vmem:[%s3256] ss:$16 sm:%s3257]
  %vm3259 = vcmask 1043458
  %v3260 = vsel %vm3259, %v3258, %v3255
  %s3261 = scalar_lea.vmem %s0, 897
  %s3262 = smov 48
  %v3263 = vld [vmem:[%s3261] ss:$16 sm:%s3262]
  %vm3264 = vcmask 1045508
  %v3265 = vsel %vm3264, %v3263, %v3260
  %s3266 = scalar_lea.vmem %s0, 897
  %s3267 = smov 192
  %v3268 = vld [vmem:[%s3266] ss:$16 sm:%s3267]
  %vm3269 = vcmask 1047558
  %v3270 = vsel %vm3269, %v3268, %v3265
  %3271 = vrot.lane.b32.xlu0 %v3270, 8
  %v3272 = vpop.permute.xlu0 %3271
  %vm3273 = vcmask 130112
  %s3274 = scalar_lea.vmem %s1, 56
  %3275 = vst.msk [vmem:[%s3274] sm:$0xff] %vm3273, %v3272

// kernel: basic_block.1
$region0: #{basic_block.1}
  #allocation0 [shape = 'u32[]', space=smem, size = 0x4, offset = 0x4, fixed_abs, tag = 'smem constant byte address 0x4 - core index']
  #allocation1 [shape = 'u32[144,128]{1,0:T(1,128)}', space=vmem, size = 0x12000, scoped, tag = 'internal scratch']
  #allocation2 [shape = 'f32[384,128]{1,0:T(8,128)}', space=vmem, size = 0x30000, scoped, tag = 'scratch operand']
  #allocation3 [shape = 'f32[384,128]{1,0:T(8,128)}', space=vmem, size = 0x30000, scoped, tag = 'scratch operand']
  %s0 = inlined_call_operand.vmem [shape: f32[32,128], index: 0, kind: input, shape index: {}]
  %s1 = inlined_call_operand.vmem [shape: f32[72,128], index: 1, kind: input, shape index: {}]
  %s2 = inlined_call_operand.vmem [shape: f32[72,128], index: 2, kind: input, shape index: {}]
  %s3 = inlined_call_operand.vmem [shape: f32[1,128], index: 3, kind: input, shape index: {}]
  %s4 = inlined_call_operand.vmem [shape: f32[1,128], index: 4, kind: input, shape index: {}]
  %s5 = inlined_call_operand.vmem [shape: f32[1,128], index: 5, kind: input, shape index: {}]
  %s6 = inlined_call_operand.vmem [shape: f32[1,128], index: 6, kind: input, shape index: {}]
  %s7 = inlined_call_operand.vmem [shape: f32[32,128], index: 7, kind: output, shape index: {}]
  %s8 = sld [smem:[#allocation0]]
  $region38: #{basic_block.1} parent=0
    _
  %s10 = ssub.s32 1, %s8
  %s11 = scalar_select 0, %s10, %s8
  // Predicated region
  $region2: #{basic_block.1} parent=0 // pred_check
    _
  $region3: #{basic_block.1} parent=0 // pred_check_branch
    %13 = sbr.rel (0) target = $region5
  $region4: #{basic_block.1} parent=0 // pred_region
    _
  $region5: #{basic_block.1} parent=0 // pred_fallthru
    _
  // Predicated region
  $region6: #{basic_block.1} parent=0 // pred_check
    _
  $region7: #{basic_block.1} parent=0 // pred_check_branch
    %15 = sbr.rel (0) target = $region9
  $region8: #{basic_block.1} parent=0 // pred_region
    _
  $region9: #{basic_block.1} parent=0 // pred_fallthru
    _
  // Predicated region
  $region10: #{basic_block.1} parent=0 // pred_check
    _
  $region11: #{basic_block.1} parent=0 // pred_check_branch
    %17 = sbr.rel (0) target = $region13
  $region12: #{basic_block.1} parent=0 // pred_region
    _
  $region13: #{basic_block.1} parent=0 // pred_fallthru
    _
  // Predicated region
  $region14: #{basic_block.1} parent=0 // pred_check
    _
  $region15: #{basic_block.1} parent=0 // pred_check_branch
    %19 = sbr.rel (0) target = $region17
  $region16: #{basic_block.1} parent=0 // pred_region
    _
  $region17: #{basic_block.1} parent=0 // pred_fallthru
    _
  // Predicated region
  $region18: #{basic_block.1} parent=0 // pred_check
    _
  $region19: #{basic_block.1} parent=0 // pred_check_branch
    %21 = sbr.rel (0) target = $region21
  $region20: #{basic_block.1} parent=0 // pred_region
    _
  $region21: #{basic_block.1} parent=0 // pred_fallthru
    _
  // Predicated region
  $region22: #{basic_block.1} parent=0 // pred_check
    _
  $region23: #{basic_block.1} parent=0 // pred_check_branch
    %23 = sbr.rel (0) target = $region25
  $region24: #{basic_block.1} parent=0 // pred_region
    _
  $region25: #{basic_block.1} parent=0 // pred_fallthru
    _
  // Predicated region
  $region26: #{basic_block.1} parent=0 // pred_check
    _
  $region27: #{basic_block.1} parent=0 // pred_check_branch
    %25 = sbr.rel (0) target = $region29
  $region28: #{basic_block.1} parent=0 // pred_region
    _
  $region29: #{basic_block.1} parent=0 // pred_fallthru
    _
  %v26 = vlaneseq
  %v27 = vshrl.u32 %v26, 7
  %v28 = vadd.s32 %v27, 8
  %v29 = vrot.slane %v27, 7
  %v30 = vrot.slane %v28, 7
  %vm31 = vcmp.lt.s32.totalorder %v27, 1
  %v32 = vsel %vm31, %v29, %v30
  %v33 = vsel %vm31, %v30, %v29
  %v34 = vrot.slane %v27, 1
  %v35 = vrot.slane %v28, 1
  %vm36 = vcmp.lt.s32.totalorder %v27, 7
  %v37 = vsel %vm36, %v34, %v35
  %v38 = vsel %vm36, %v35, %v34
  %v39 = vadd.s32 %v27, 16
  %v40 = vadd.s32 %v27, 24
  %v41 = vadd.s32 %v27, 32
  %v42 = vadd.s32 %v27, 40
  %v43 = vadd.s32 %v27, 48
  %v44 = vadd.s32 %v27, 56
  %v45 = vadd.s32 %v27, 64
  %v46 = vadd.s32 %v27, 72
  %v47 = vadd.s32 %v27, 80
  %v48 = vadd.s32 %v27, 88
  %v49 = vadd.s32 %v27, 96
  %v50 = vadd.s32 %v27, 104
  %v51 = vadd.s32 %v27, 112
  %v52 = vadd.s32 %v27, 120
  %v53 = vshra.s32 %v27, 3
  %v54 = vshra.s32 %v28, 3
  %v55 = vshra.s32 %v39, 3
  %v56 = vshra.s32 %v40, 3
  %v57 = vshra.s32 %v41, 3
  %v58 = vshra.s32 %v42, 3
  %v59 = vshra.s32 %v43, 3
  %v60 = vshra.s32 %v44, 3
  %v61 = vshra.s32 %v45, 3
  %v62 = vshra.s32 %v46, 3
  %v63 = vshra.s32 %v47, 3
  %v64 = vshra.s32 %v48, 3
  %v65 = vshra.s32 %v49, 3
  %v66 = vshra.s32 %v50, 3
  %v67 = vshra.s32 %v51, 3
  %v68 = vshra.s32 %v52, 3
  %v69 = vlaneseq
  %v70 = vand.u32 %v69, 127
  %v71 = vshra.s32 %v70, 3
  %v72 = vadd.s32 %v71, 4294967295
  %vm73 = vcmp.eq.s32.totalorder %v53, %v72
  %vm74 = vcmp.eq.s32.totalorder %v54, %v72
  %vm75 = vcmp.eq.s32.totalorder %v55, %v72
  %vm76 = vcmp.eq.s32.totalorder %v56, %v72
  %vm77 = vcmp.eq.s32.totalorder %v57, %v72
  %vm78 = vcmp.eq.s32.totalorder %v58, %v72
  %vm79 = vcmp.eq.s32.totalorder %v59, %v72
  %vm80 = vcmp.eq.s32.totalorder %v60, %v72
  %vm81 = vcmp.eq.s32.totalorder %v61, %v72
  %vm82 = vcmp.eq.s32.totalorder %v62, %v72
  %vm83 = vcmp.eq.s32.totalorder %v63, %v72
  %vm84 = vcmp.eq.s32.totalorder %v64, %v72
  %vm85 = vcmp.eq.s32.totalorder %v65, %v72
  %vm86 = vcmp.eq.s32.totalorder %v66, %v72
  %vm87 = vcmp.eq.s32.totalorder %v67, %v72
  %vm88 = vcmp.eq.s32.totalorder %v68, %v72
  %v89 = vsel %vm73, 1, 0
  %v90 = vsel %vm74, 1, 0
  %v91 = vsel %vm75, 1, 0
  %v92 = vsel %vm76, 1, 0
  %v93 = vsel %vm77, 1, 0
  %v94 = vsel %vm78, 1, 0
  %v95 = vsel %vm79, 1, 0
  %v96 = vsel %vm80, 1, 0
  %v97 = vsel %vm81, 1, 0
  %v98 = vsel %vm82, 1, 0
  %v99 = vsel %vm83, 1, 0
  %v100 = vsel %vm84, 1, 0
  %v101 = vsel %vm85, 1, 0
  %v102 = vsel %vm86, 1, 0
  %v103 = vsel %vm87, 1, 0
  %v104 = vsel %vm88, 1, 0
  %v105 = vcvt.s32.f32 %v89
  %v106 = vcvt.s32.f32 %v90
  %v107 = vcvt.s32.f32 %v91
  %v108 = vcvt.s32.f32 %v92
  %v109 = vcvt.s32.f32 %v93
  %v110 = vcvt.s32.f32 %v94
  %v111 = vcvt.s32.f32 %v95
  %v112 = vcvt.s32.f32 %v96
  %v113 = vcvt.s32.f32 %v97
  %v114 = vcvt.s32.f32 %v98
  %v115 = vcvt.s32.f32 %v99
  %v116 = vcvt.s32.f32 %v100
  %v117 = vcvt.s32.f32 %v101
  %v118 = vcvt.s32.f32 %v102
  %v119 = vcvt.s32.f32 %v103
  %v120 = vcvt.s32.f32 %v104
  %vm121 = vcmp.eq.s32.totalorder %v53, %v71
  %vm122 = vcmp.eq.s32.totalorder %v54, %v71
  %vm123 = vcmp.eq.s32.totalorder %v55, %v71
  %vm124 = vcmp.eq.s32.totalorder %v56, %v71
  %vm125 = vcmp.eq.s32.totalorder %v57, %v71
  %vm126 = vcmp.eq.s32.totalorder %v58, %v71
  %vm127 = vcmp.eq.s32.totalorder %v59, %v71
  %vm128 = vcmp.eq.s32.totalorder %v60, %v71
  %vm129 = vcmp.eq.s32.totalorder %v61, %v71
  %vm130 = vcmp.eq.s32.totalorder %v62, %v71
  %vm131 = vcmp.eq.s32.totalorder %v63, %v71
  %vm132 = vcmp.eq.s32.totalorder %v64, %v71
  %vm133 = vcmp.eq.s32.totalorder %v65, %v71
  %vm134 = vcmp.eq.s32.totalorder %v66, %v71
  %vm135 = vcmp.eq.s32.totalorder %v67, %v71
  %vm136 = vcmp.eq.s32.totalorder %v68, %v71
  %v137 = vsel %vm121, 1, 0
  %v138 = vsel %vm122, 1, 0
  %v139 = vsel %vm123, 1, 0
  %v140 = vsel %vm124, 1, 0
  %v141 = vsel %vm125, 1, 0
  %v142 = vsel %vm126, 1, 0
  %v143 = vsel %vm127, 1, 0
  %v144 = vsel %vm128, 1, 0
  %v145 = vsel %vm129, 1, 0
  %v146 = vsel %vm130, 1, 0
  %v147 = vsel %vm131, 1, 0
  %v148 = vsel %vm132, 1, 0
  %v149 = vsel %vm133, 1, 0
  %v150 = vsel %vm134, 1, 0
  %v151 = vsel %vm135, 1, 0
  %v152 = vsel %vm136, 1, 0
  %v153 = vcvt.s32.f32 %v137
  %v154 = vcvt.s32.f32 %v138
  %v155 = vcvt.s32.f32 %v139
  %v156 = vcvt.s32.f32 %v140
  %v157 = vcvt.s32.f32 %v141
  %v158 = vcvt.s32.f32 %v142
  %v159 = vcvt.s32.f32 %v143
  %v160 = vcvt.s32.f32 %v144
  %v161 = vcvt.s32.f32 %v145
  %v162 = vcvt.s32.f32 %v146
  %v163 = vcvt.s32.f32 %v147
  %v164 = vcvt.s32.f32 %v148
  %v165 = vcvt.s32.f32 %v149
  %v166 = vcvt.s32.f32 %v150
  %v167 = vcvt.s32.f32 %v151
  %v168 = vcvt.s32.f32 %v152
  %v169 = vadd.s32 %v71, 1
  %vm170 = vcmp.eq.s32.totalorder %v53, %v169
  %vm171 = vcmp.eq.s32.totalorder %v54, %v169
  %vm172 = vcmp.eq.s32.totalorder %v55, %v169
  %vm173 = vcmp.eq.s32.totalorder %v56, %v169
  %vm174 = vcmp.eq.s32.totalorder %v57, %v169
  %vm175 = vcmp.eq.s32.totalorder %v58, %v169
  %vm176 = vcmp.eq.s32.totalorder %v59, %v169
  %vm177 = vcmp.eq.s32.totalorder %v60, %v169
  %vm178 = vcmp.eq.s32.totalorder %v61, %v169
  %vm179 = vcmp.eq.s32.totalorder %v62, %v169
  %vm180 = vcmp.eq.s32.totalorder %v63, %v169
  %vm181 = vcmp.eq.s32.totalorder %v64, %v169
  %vm182 = vcmp.eq.s32.totalorder %v65, %v169
  %vm183 = vcmp.eq.s32.totalorder %v66, %v169
  %vm184 = vcmp.eq.s32.totalorder %v67, %v169
  %vm185 = vcmp.eq.s32.totalorder %v68, %v169
  %v186 = vsel %vm170, 1, 0
  %v187 = vsel %vm171, 1, 0
  %v188 = vsel %vm172, 1, 0
  %v189 = vsel %vm173, 1, 0
  %v190 = vsel %vm174, 1, 0
  %v191 = vsel %vm175, 1, 0
  %v192 = vsel %vm176, 1, 0
  %v193 = vsel %vm177, 1, 0
  %v194 = vsel %vm178, 1, 0
  %v195 = vsel %vm179, 1, 0
  %v196 = vsel %vm180, 1, 0
  %v197 = vsel %vm181, 1, 0
  %v198 = vsel %vm182, 1, 0
  %v199 = vsel %vm183, 1, 0
  %v200 = vsel %vm184, 1, 0
  %v201 = vsel %vm185, 1, 0
  %v202 = vcvt.s32.f32 %v186
  %v203 = vcvt.s32.f32 %v187
  %v204 = vcvt.s32.f32 %v188
  %v205 = vcvt.s32.f32 %v189
  %v206 = vcvt.s32.f32 %v190
  %v207 = vcvt.s32.f32 %v191
  %v208 = vcvt.s32.f32 %v192
  %v209 = vcvt.s32.f32 %v193
  %v210 = vcvt.s32.f32 %v194
  %v211 = vcvt.s32.f32 %v195
  %v212 = vcvt.s32.f32 %v196
  %v213 = vcvt.s32.f32 %v197
  %v214 = vcvt.s32.f32 %v198
  %v215 = vcvt.s32.f32 %v199
  %v216 = vcvt.s32.f32 %v200
  %v217 = vcvt.s32.f32 %v201
  %v218 = vld [vmem:[%s1] sm:$0xff]
  %v219 = vmul.f32 %v105, %v218
  %v220 = vmul.f32 %v106, %v218
  %v221 = vmul.f32 %v107, %v218
  %v222 = vmul.f32 %v108, %v218
  %v223 = vmul.f32 %v109, %v218
  %v224 = vmul.f32 %v110, %v218
  %v225 = vmul.f32 %v111, %v218
  %v226 = vmul.f32 %v112, %v218
  %v227 = vmul.f32 %v113, %v218
  %v228 = vmul.f32 %v114, %v218
  %v229 = vmul.f32 %v115, %v218
  %v230 = vmul.f32 %v116, %v218
  %v231 = vmul.f32 %v117, %v218
  %v232 = vmul.f32 %v118, %v218
  %v233 = vmul.f32 %v119, %v218
  %v234 = vmul.f32 %v120, %v218
  %v235 = vld [vmem:[%s1 + $0x8] sm:$0xff]
  %v236 = vmul.f32 %v153, %v235
  %v237 = vmul.f32 %v154, %v235
  %v238 = vmul.f32 %v155, %v235
  %v239 = vmul.f32 %v156, %v235
  %v240 = vmul.f32 %v157, %v235
  %v241 = vmul.f32 %v158, %v235
  %v242 = vmul.f32 %v159, %v235
  %v243 = vmul.f32 %v160, %v235
  %v244 = vmul.f32 %v161, %v235
  %v245 = vmul.f32 %v162, %v235
  %v246 = vmul.f32 %v163, %v235
  %v247 = vmul.f32 %v164, %v235
  %v248 = vmul.f32 %v165, %v235
  %v249 = vmul.f32 %v166, %v235
  %v250 = vmul.f32 %v167, %v235
  %v251 = vmul.f32 %v168, %v235
  %v252 = vadd.f32 %v219, %v236
  %v253 = vadd.f32 %v220, %v237
  %v254 = vadd.f32 %v221, %v238
  %v255 = vadd.f32 %v222, %v239
  %v256 = vadd.f32 %v223, %v240
  %v257 = vadd.f32 %v224, %v241
  %v258 = vadd.f32 %v225, %v242
  %v259 = vadd.f32 %v226, %v243
  %v260 = vadd.f32 %v227, %v244
  %v261 = vadd.f32 %v228, %v245
  %v262 = vadd.f32 %v229, %v246
  %v263 = vadd.f32 %v230, %v247
  %v264 = vadd.f32 %v231, %v248
  %v265 = vadd.f32 %v232, %v249
  %v266 = vadd.f32 %v233, %v250
  %v267 = vadd.f32 %v234, %v251
  %v268 = vld [vmem:[%s1 + $0x10] sm:$0xff]
  %v269 = vmul.f32 %v202, %v268
  %v270 = vmul.f32 %v203, %v268
  %v271 = vmul.f32 %v204, %v268
  %v272 = vmul.f32 %v205, %v268
  %v273 = vmul.f32 %v206, %v268
  %v274 = vmul.f32 %v207, %v268
  %v275 = vmul.f32 %v208, %v268
  %v276 = vmul.f32 %v209, %v268
  %v277 = vmul.f32 %v210, %v268
  %v278 = vmul.f32 %v211, %v268
  %v279 = vmul.f32 %v212, %v268
  %v280 = vmul.f32 %v213, %v268
  %v281 = vmul.f32 %v214, %v268
  %v282 = vmul.f32 %v215, %v268
  %v283 = vmul.f32 %v216, %v268
  %v284 = vmul.f32 %v217, %v268
  %v285 = vadd.f32 %v252, %v269
  %v286 = vadd.f32 %v253, %v270
  %v287 = vadd.f32 %v254, %v271
  %v288 = vadd.f32 %v255, %v272
  %v289 = vadd.f32 %v256, %v273
  %v290 = vadd.f32 %v257, %v274
  %v291 = vadd.f32 %v258, %v275
  %v292 = vadd.f32 %v259, %v276
  %v293 = vadd.f32 %v260, %v277
  %v294 = vadd.f32 %v261, %v278
  %v295 = vadd.f32 %v262, %v279
  %v296 = vadd.f32 %v263, %v280
  %v297 = vadd.f32 %v264, %v281
  %v298 = vadd.f32 %v265, %v282
  %v299 = vadd.f32 %v266, %v283
  %v300 = vadd.f32 %v267, %v284
  %301 = vst [vmem:[#allocation2] sm:$0xff] %v285
  %302 = vst [vmem:[#allocation2 + $0x8] sm:$0xff] %v286
  %303 = vst [vmem:[#allocation2 + $0x10] sm:$0xff] %v287
  %304 = vst [vmem:[#allocation2 + $0x18] sm:$0xff] %v288
  %305 = vst [vmem:[#allocation2 + $0x20] sm:$0xff] %v289
  %306 = vst [vmem:[#allocation2 + $0x28] sm:$0xff] %v290
  %307 = vst [vmem:[#allocation2 + $0x30] sm:$0xff] %v291
  %308 = vst [vmem:[#allocation2 + $0x38] sm:$0xff] %v292
  %309 = vst [vmem:[#allocation2 + $0x40] sm:$0xff] %v293
  %310 = vst [vmem:[#allocation2 + $0x48] sm:$0xff] %v294
  %311 = vst [vmem:[#allocation2 + $0x50] sm:$0xff] %v295
  %312 = vst [vmem:[#allocation2 + $0x58] sm:$0xff] %v296
  %313 = vst [vmem:[#allocation2 + $0x60] sm:$0xff] %v297
  %314 = vst [vmem:[#allocation2 + $0x68] sm:$0xff] %v298
  %315 = vst [vmem:[#allocation2 + $0x70] sm:$0xff] %v299
  %316 = vst [vmem:[#allocation2 + $0x78] sm:$0xff] %v300
  %v317 = vld [vmem:[%s1 + $0x18] sm:$0xff]
  %v318 = vmul.f32 %v105, %v317
  %v319 = vmul.f32 %v106, %v317
  %v320 = vmul.f32 %v107, %v317
  %v321 = vmul.f32 %v108, %v317
  %v322 = vmul.f32 %v109, %v317
  %v323 = vmul.f32 %v110, %v317
  %v324 = vmul.f32 %v111, %v317
  %v325 = vmul.f32 %v112, %v317
  %v326 = vmul.f32 %v113, %v317
  %v327 = vmul.f32 %v114, %v317
  %v328 = vmul.f32 %v115, %v317
  %v329 = vmul.f32 %v116, %v317
  %v330 = vmul.f32 %v117, %v317
  %v331 = vmul.f32 %v118, %v317
  %v332 = vmul.f32 %v119, %v317
  %v333 = vmul.f32 %v120, %v317
  %v334 = vld [vmem:[%s1 + $0x20] sm:$0xff]
  %v335 = vmul.f32 %v153, %v334
  %v336 = vmul.f32 %v154, %v334
  %v337 = vmul.f32 %v155, %v334
  %v338 = vmul.f32 %v156, %v334
  %v339 = vmul.f32 %v157, %v334
  %v340 = vmul.f32 %v158, %v334
  %v341 = vmul.f32 %v159, %v334
  %v342 = vmul.f32 %v160, %v334
  %v343 = vmul.f32 %v161, %v334
  %v344 = vmul.f32 %v162, %v334
  %v345 = vmul.f32 %v163, %v334
  %v346 = vmul.f32 %v164, %v334
  %v347 = vmul.f32 %v165, %v334
  %v348 = vmul.f32 %v166, %v334
  %v349 = vmul.f32 %v167, %v334
  %v350 = vmul.f32 %v168, %v334
  %v351 = vadd.f32 %v318, %v335
  %v352 = vadd.f32 %v319, %v336
  %v353 = vadd.f32 %v320, %v337
  %v354 = vadd.f32 %v321, %v338
  %v355 = vadd.f32 %v322, %v339
  %v356 = vadd.f32 %v323, %v340
  %v357 = vadd.f32 %v324, %v341
  %v358 = vadd.f32 %v325, %v342
  %v359 = vadd.f32 %v326, %v343
  %v360 = vadd.f32 %v327, %v344
  %v361 = vadd.f32 %v328, %v345
  %v362 = vadd.f32 %v329, %v346
  %v363 = vadd.f32 %v330, %v347
  %v364 = vadd.f32 %v331, %v348
  %v365 = vadd.f32 %v332, %v349
  %v366 = vadd.f32 %v333, %v350
  %v367 = vld [vmem:[%s1 + $0x28] sm:$0xff]
  %v368 = vmul.f32 %v202, %v367
  %v369 = vmul.f32 %v203, %v367
  %v370 = vmul.f32 %v204, %v367
  %v371 = vmul.f32 %v205, %v367
  %v372 = vmul.f32 %v206, %v367
  %v373 = vmul.f32 %v207, %v367
  %v374 = vmul.f32 %v208, %v367
  %v375 = vmul.f32 %v209, %v367
  %v376 = vmul.f32 %v210, %v367
  %v377 = vmul.f32 %v211, %v367
  %v378 = vmul.f32 %v212, %v367
  %v379 = vmul.f32 %v213, %v367
  %v380 = vmul.f32 %v214, %v367
  %v381 = vmul.f32 %v215, %v367
  %v382 = vmul.f32 %v216, %v367
  %v383 = vmul.f32 %v217, %v367
  %v384 = vadd.f32 %v351, %v368
  %v385 = vadd.f32 %v352, %v369
  %v386 = vadd.f32 %v353, %v370
  %v387 = vadd.f32 %v354, %v371
  %v388 = vadd.f32 %v355, %v372
  %v389 = vadd.f32 %v356, %v373
  %v390 = vadd.f32 %v357, %v374
  %v391 = vadd.f32 %v358, %v375
  %v392 = vadd.f32 %v359, %v376
  %v393 = vadd.f32 %v360, %v377
  %v394 = vadd.f32 %v361, %v378
  %v395 = vadd.f32 %v362, %v379
  %v396 = vadd.f32 %v363, %v380
  %v397 = vadd.f32 %v364, %v381
  %v398 = vadd.f32 %v365, %v382
  %v399 = vadd.f32 %v366, %v383
  %400 = vst [vmem:[#allocation2 + $0x80] sm:$0xff] %v384
  %401 = vst [vmem:[#allocation2 + $0x88] sm:$0xff] %v385
  %402 = vst [vmem:[#allocation2 + $0x90] sm:$0xff] %v386
  %403 = vst [vmem:[#allocation2 + $0x98] sm:$0xff] %v387
  %404 = vst [vmem:[#allocation2 + $0xa0] sm:$0xff] %v388
  %405 = vst [vmem:[#allocation2 + $0xa8] sm:$0xff] %v389
  %406 = vst [vmem:[#allocation2 + $0xb0] sm:$0xff] %v390
  %407 = vst [vmem:[#allocation2 + $0xb8] sm:$0xff] %v391
  %408 = vst [vmem:[#allocation2 + $0xc0] sm:$0xff] %v392
  %409 = vst [vmem:[#allocation2 + $0xc8] sm:$0xff] %v393
  %410 = vst [vmem:[#allocation2 + $0xd0] sm:$0xff] %v394
  %411 = vst [vmem:[#allocation2 + $0xd8] sm:$0xff] %v395
  %412 = vst [vmem:[#allocation2 + $0xe0] sm:$0xff] %v396
  %413 = vst [vmem:[#allocation2 + $0xe8] sm:$0xff] %v397
  %414 = vst [vmem:[#allocation2 + $0xf0] sm:$0xff] %v398
  %415 = vst [vmem:[#allocation2 + $0xf8] sm:$0xff] %v399
  %v416 = vld [vmem:[%s1 + $0x30] sm:$0xff]
  %v417 = vmul.f32 %v105, %v416
  %v418 = vmul.f32 %v106, %v416
  %v419 = vmul.f32 %v107, %v416
  %v420 = vmul.f32 %v108, %v416
  %v421 = vmul.f32 %v109, %v416
  %v422 = vmul.f32 %v110, %v416
  %v423 = vmul.f32 %v111, %v416
  %v424 = vmul.f32 %v112, %v416
  %v425 = vmul.f32 %v113, %v416
  %v426 = vmul.f32 %v114, %v416
  %v427 = vmul.f32 %v115, %v416
  %v428 = vmul.f32 %v116, %v416
  %v429 = vmul.f32 %v117, %v416
  %v430 = vmul.f32 %v118, %v416
  %v431 = vmul.f32 %v119, %v416
  %v432 = vmul.f32 %v120, %v416
  %v433 = vld [vmem:[%s1 + $0x38] sm:$0xff]
  %v434 = vmul.f32 %v153, %v433
  %v435 = vmul.f32 %v154, %v433
  %v436 = vmul.f32 %v155, %v433
  %v437 = vmul.f32 %v156, %v433
  %v438 = vmul.f32 %v157, %v433
  %v439 = vmul.f32 %v158, %v433
  %v440 = vmul.f32 %v159, %v433
  %v441 = vmul.f32 %v160, %v433
  %v442 = vmul.f32 %v161, %v433
  %v443 = vmul.f32 %v162, %v433
  %v444 = vmul.f32 %v163, %v433
  %v445 = vmul.f32 %v164, %v433
  %v446 = vmul.f32 %v165, %v433
  %v447 = vmul.f32 %v166, %v433
  %v448 = vmul.f32 %v167, %v433
  %v449 = vmul.f32 %v168, %v433
  %v450 = vadd.f32 %v417, %v434
  %v451 = vadd.f32 %v418, %v435
  %v452 = vadd.f32 %v419, %v436
  %v453 = vadd.f32 %v420, %v437
  %v454 = vadd.f32 %v421, %v438
  %v455 = vadd.f32 %v422, %v439
  %v456 = vadd.f32 %v423, %v440
  %v457 = vadd.f32 %v424, %v441
  %v458 = vadd.f32 %v425, %v442
  %v459 = vadd.f32 %v426, %v443
  %v460 = vadd.f32 %v427, %v444
  %v461 = vadd.f32 %v428, %v445
  %v462 = vadd.f32 %v429, %v446
  %v463 = vadd.f32 %v430, %v447
  %v464 = vadd.f32 %v431, %v448
  %v465 = vadd.f32 %v432, %v449
  %v466 = vld [vmem:[%s1 + $0x40] sm:$0xff]
  %v467 = vmul.f32 %v202, %v466
  %v468 = vmul.f32 %v203, %v466
  %v469 = vmul.f32 %v204, %v466
  %v470 = vmul.f32 %v205, %v466
  %v471 = vmul.f32 %v206, %v466
  %v472 = vmul.f32 %v207, %v466
  %v473 = vmul.f32 %v208, %v466
  %v474 = vmul.f32 %v209, %v466
  %v475 = vmul.f32 %v210, %v466
  %v476 = vmul.f32 %v211, %v466
  %v477 = vmul.f32 %v212, %v466
  %v478 = vmul.f32 %v213, %v466
  %v479 = vmul.f32 %v214, %v466
  %v480 = vmul.f32 %v215, %v466
  %v481 = vmul.f32 %v216, %v466
  %v482 = vmul.f32 %v217, %v466
  %v483 = vadd.f32 %v450, %v467
  %v484 = vadd.f32 %v451, %v468
  %v485 = vadd.f32 %v452, %v469
  %v486 = vadd.f32 %v453, %v470
  %v487 = vadd.f32 %v454, %v471
  %v488 = vadd.f32 %v455, %v472
  %v489 = vadd.f32 %v456, %v473
  %v490 = vadd.f32 %v457, %v474
  %v491 = vadd.f32 %v458, %v475
  %v492 = vadd.f32 %v459, %v476
  %v493 = vadd.f32 %v460, %v477
  %v494 = vadd.f32 %v461, %v478
  %v495 = vadd.f32 %v462, %v479
  %v496 = vadd.f32 %v463, %v480
  %v497 = vadd.f32 %v464, %v481
  %v498 = vadd.f32 %v465, %v482
  %499 = vst [vmem:[#allocation2 + $0x100] sm:$0xff] %v483
  %500 = vst [vmem:[#allocation2 + $0x108] sm:$0xff] %v484
  %501 = vst [vmem:[#allocation2 + $0x110] sm:$0xff] %v485
  %502 = vst [vmem:[#allocation2 + $0x118] sm:$0xff] %v486
  %503 = vst [vmem:[#allocation2 + $0x120] sm:$0xff] %v487
  %504 = vst [vmem:[#allocation2 + $0x128] sm:$0xff] %v488
  %505 = vst [vmem:[#allocation2 + $0x130] sm:$0xff] %v489
  %506 = vst [vmem:[#allocation2 + $0x138] sm:$0xff] %v490
  %507 = vst [vmem:[#allocation2 + $0x140] sm:$0xff] %v491
  %508 = vst [vmem:[#allocation2 + $0x148] sm:$0xff] %v492
  %509 = vst [vmem:[#allocation2 + $0x150] sm:$0xff] %v493
  %510 = vst [vmem:[#allocation2 + $0x158] sm:$0xff] %v494
  %511 = vst [vmem:[#allocation2 + $0x160] sm:$0xff] %v495
  %512 = vst [vmem:[#allocation2 + $0x168] sm:$0xff] %v496
  %513 = vst [vmem:[#allocation2 + $0x170] sm:$0xff] %v497
  %514 = vst [vmem:[#allocation2 + $0x178] sm:$0xff] %v498
  %v515 = vld [vmem:[%s2] sm:$0xff]
  %v516 = vmul.f32 %v105, %v515
  %v517 = vmul.f32 %v106, %v515
  %v518 = vmul.f32 %v107, %v515
  %v519 = vmul.f32 %v108, %v515
  %v520 = vmul.f32 %v109, %v515
  %v521 = vmul.f32 %v110, %v515
  %v522 = vmul.f32 %v111, %v515
  %v523 = vmul.f32 %v112, %v515
  %v524 = vmul.f32 %v113, %v515
  %v525 = vmul.f32 %v114, %v515
  %v526 = vmul.f32 %v115, %v515
  %v527 = vmul.f32 %v116, %v515
  %v528 = vmul.f32 %v117, %v515
  %v529 = vmul.f32 %v118, %v515
  %v530 = vmul.f32 %v119, %v515
  %v531 = vmul.f32 %v120, %v515
  %v532 = vld [vmem:[%s2 + $0x8] sm:$0xff]
  %v533 = vmul.f32 %v153, %v532
  %v534 = vmul.f32 %v154, %v532
  %v535 = vmul.f32 %v155, %v532
  %v536 = vmul.f32 %v156, %v532
  %v537 = vmul.f32 %v157, %v532
  %v538 = vmul.f32 %v158, %v532
  %v539 = vmul.f32 %v159, %v532
  %v540 = vmul.f32 %v160, %v532
  %v541 = vmul.f32 %v161, %v532
  %v542 = vmul.f32 %v162, %v532
  %v543 = vmul.f32 %v163, %v532
  %v544 = vmul.f32 %v164, %v532
  %v545 = vmul.f32 %v165, %v532
  %v546 = vmul.f32 %v166, %v532
  %v547 = vmul.f32 %v167, %v532
  %v548 = vmul.f32 %v168, %v532
  %v549 = vadd.f32 %v516, %v533
  %v550 = vadd.f32 %v517, %v534
  %v551 = vadd.f32 %v518, %v535
  %v552 = vadd.f32 %v519, %v536
  %v553 = vadd.f32 %v520, %v537
  %v554 = vadd.f32 %v521, %v538
  %v555 = vadd.f32 %v522, %v539
  %v556 = vadd.f32 %v523, %v540
  %v557 = vadd.f32 %v524, %v541
  %v558 = vadd.f32 %v525, %v542
  %v559 = vadd.f32 %v526, %v543
  %v560 = vadd.f32 %v527, %v544
  %v561 = vadd.f32 %v528, %v545
  %v562 = vadd.f32 %v529, %v546
  %v563 = vadd.f32 %v530, %v547
  %v564 = vadd.f32 %v531, %v548
  %v565 = vld [vmem:[%s2 + $0x10] sm:$0xff]
  %v566 = vmul.f32 %v202, %v565
  %v567 = vmul.f32 %v203, %v565
  %v568 = vmul.f32 %v204, %v565
  %v569 = vmul.f32 %v205, %v565
  %v570 = vmul.f32 %v206, %v565
  %v571 = vmul.f32 %v207, %v565
  %v572 = vmul.f32 %v208, %v565
  %v573 = vmul.f32 %v209, %v565
  %v574 = vmul.f32 %v210, %v565
  %v575 = vmul.f32 %v211, %v565
  %v576 = vmul.f32 %v212, %v565
  %v577 = vmul.f32 %v213, %v565
  %v578 = vmul.f32 %v214, %v565
  %v579 = vmul.f32 %v215, %v565
  %v580 = vmul.f32 %v216, %v565
  %v581 = vmul.f32 %v217, %v565
  %v582 = vadd.f32 %v549, %v566
  %v583 = vadd.f32 %v550, %v567
  %v584 = vadd.f32 %v551, %v568
  %v585 = vadd.f32 %v552, %v569
  %v586 = vadd.f32 %v553, %v570
  %v587 = vadd.f32 %v554, %v571
  %v588 = vadd.f32 %v555, %v572
  %v589 = vadd.f32 %v556, %v573
  %v590 = vadd.f32 %v557, %v574
  %v591 = vadd.f32 %v558, %v575
  %v592 = vadd.f32 %v559, %v576
  %v593 = vadd.f32 %v560, %v577
  %v594 = vadd.f32 %v561, %v578
  %v595 = vadd.f32 %v562, %v579
  %v596 = vadd.f32 %v563, %v580
  %v597 = vadd.f32 %v564, %v581
  %598 = vst [vmem:[#allocation3] sm:$0xff] %v582
  %599 = vst [vmem:[#allocation3 + $0x8] sm:$0xff] %v583
  %600 = vst [vmem:[#allocation3 + $0x10] sm:$0xff] %v584
  %601 = vst [vmem:[#allocation3 + $0x18] sm:$0xff] %v585
  %602 = vst [vmem:[#allocation3 + $0x20] sm:$0xff] %v586
  %603 = vst [vmem:[#allocation3 + $0x28] sm:$0xff] %v587
  %604 = vst [vmem:[#allocation3 + $0x30] sm:$0xff] %v588
  %605 = vst [vmem:[#allocation3 + $0x38] sm:$0xff] %v589
  %606 = vst [vmem:[#allocation3 + $0x40] sm:$0xff] %v590
  %607 = vst [vmem:[#allocation3 + $0x48] sm:$0xff] %v591
  %608 = vst [vmem:[#allocation3 + $0x50] sm:$0xff] %v592
  %609 = vst [vmem:[#allocation3 + $0x58] sm:$0xff] %v593
  %610 = vst [vmem:[#allocation3 + $0x60] sm:$0xff] %v594
  %611 = vst [vmem:[#allocation3 + $0x68] sm:$0xff] %v595
  %612 = vst [vmem:[#allocation3 + $0x70] sm:$0xff] %v596
  %613 = vst [vmem:[#allocation3 + $0x78] sm:$0xff] %v597
  %v614 = vld [vmem:[%s2 + $0x18] sm:$0xff]
  %v615 = vmul.f32 %v105, %v614
  %v616 = vmul.f32 %v106, %v614
  %v617 = vmul.f32 %v107, %v614
  %v618 = vmul.f32 %v108, %v614
  %v619 = vmul.f32 %v109, %v614
  %v620 = vmul.f32 %v110, %v614
  %v621 = vmul.f32 %v111, %v614
  %v622 = vmul.f32 %v112, %v614
  %v623 = vmul.f32 %v113, %v614
  %v624 = vmul.f32 %v114, %v614
  %v625 = vmul.f32 %v115, %v614
  %v626 = vmul.f32 %v116, %v614
  %v627 = vmul.f32 %v117, %v614
  %v628 = vmul.f32 %v118, %v614
  %v629 = vmul.f32 %v119, %v614
  %v630 = vmul.f32 %v120, %v614
  %v631 = vld [vmem:[%s2 + $0x20] sm:$0xff]
  %v632 = vmul.f32 %v153, %v631
  %v633 = vmul.f32 %v154, %v631
  %v634 = vmul.f32 %v155, %v631
  %v635 = vmul.f32 %v156, %v631
  %v636 = vmul.f32 %v157, %v631
  %v637 = vmul.f32 %v158, %v631
  %v638 = vmul.f32 %v159, %v631
  %v639 = vmul.f32 %v160, %v631
  %v640 = vmul.f32 %v161, %v631
  %v641 = vmul.f32 %v162, %v631
  %v642 = vmul.f32 %v163, %v631
  %v643 = vmul.f32 %v164, %v631
  %v644 = vmul.f32 %v165, %v631
  %v645 = vmul.f32 %v166, %v631
  %v646 = vmul.f32 %v167, %v631
  %v647 = vmul.f32 %v168, %v631
  %v648 = vadd.f32 %v615, %v632
  %v649 = vadd.f32 %v616, %v633
  %v650 = vadd.f32 %v617, %v634
  %v651 = vadd.f32 %v618, %v635
  %v652 = vadd.f32 %v619, %v636
  %v653 = vadd.f32 %v620, %v637
  %v654 = vadd.f32 %v621, %v638
  %v655 = vadd.f32 %v622, %v639
  %v656 = vadd.f32 %v623, %v640
  %v657 = vadd.f32 %v624, %v641
  %v658 = vadd.f32 %v625, %v642
  %v659 = vadd.f32 %v626, %v643
  %v660 = vadd.f32 %v627, %v644
  %v661 = vadd.f32 %v628, %v645
  %v662 = vadd.f32 %v629, %v646
  %v663 = vadd.f32 %v630, %v647
  %v664 = vld [vmem:[%s2 + $0x28] sm:$0xff]
  %v665 = vmul.f32 %v202, %v664
  %v666 = vmul.f32 %v203, %v664
  %v667 = vmul.f32 %v204, %v664
  %v668 = vmul.f32 %v205, %v664
  %v669 = vmul.f32 %v206, %v664
  %v670 = vmul.f32 %v207, %v664
  %v671 = vmul.f32 %v208, %v664
  %v672 = vmul.f32 %v209, %v664
  %v673 = vmul.f32 %v210, %v664
  %v674 = vmul.f32 %v211, %v664
  %v675 = vmul.f32 %v212, %v664
  %v676 = vmul.f32 %v213, %v664
  %v677 = vmul.f32 %v214, %v664
  %v678 = vmul.f32 %v215, %v664
  %v679 = vmul.f32 %v216, %v664
  %v680 = vmul.f32 %v217, %v664
  %v681 = vadd.f32 %v648, %v665
  %v682 = vadd.f32 %v649, %v666
  %v683 = vadd.f32 %v650, %v667
  %v684 = vadd.f32 %v651, %v668
  %v685 = vadd.f32 %v652, %v669
  %v686 = vadd.f32 %v653, %v670
  %v687 = vadd.f32 %v654, %v671
  %v688 = vadd.f32 %v655, %v672
  %v689 = vadd.f32 %v656, %v673
  %v690 = vadd.f32 %v657, %v674
  %v691 = vadd.f32 %v658, %v675
  %v692 = vadd.f32 %v659, %v676
  %v693 = vadd.f32 %v660, %v677
  %v694 = vadd.f32 %v661, %v678
  %v695 = vadd.f32 %v662, %v679
  %v696 = vadd.f32 %v663, %v680
  %697 = vst [vmem:[#allocation3 + $0x80] sm:$0xff] %v681
  %698 = vst [vmem:[#allocation3 + $0x88] sm:$0xff] %v682
  %699 = vst [vmem:[#allocation3 + $0x90] sm:$0xff] %v683
  %700 = vst [vmem:[#allocation3 + $0x98] sm:$0xff] %v684
  %701 = vst [vmem:[#allocation3 + $0xa0] sm:$0xff] %v685
  %702 = vst [vmem:[#allocation3 + $0xa8] sm:$0xff] %v686
  %703 = vst [vmem:[#allocation3 + $0xb0] sm:$0xff] %v687
  %704 = vst [vmem:[#allocation3 + $0xb8] sm:$0xff] %v688
  %705 = vst [vmem:[#allocation3 + $0xc0] sm:$0xff] %v689
  %706 = vst [vmem:[#allocation3 + $0xc8] sm:$0xff] %v690
  %707 = vst [vmem:[#allocation3 + $0xd0] sm:$0xff] %v691
  %708 = vst [vmem:[#allocation3 + $0xd8] sm:$0xff] %v692
  %709 = vst [vmem:[#allocation3 + $0xe0] sm:$0xff] %v693
  %710 = vst [vmem:[#allocation3 + $0xe8] sm:$0xff] %v694
  %711 = vst [vmem:[#allocation3 + $0xf0] sm:$0xff] %v695
  %712 = vst [vmem:[#allocation3 + $0xf8] sm:$0xff] %v696
  %v713 = vld [vmem:[%s2 + $0x30] sm:$0xff]
  %v714 = vmul.f32 %v105, %v713
  %v715 = vmul.f32 %v106, %v713
  %v716 = vmul.f32 %v107, %v713
  %v717 = vmul.f32 %v108, %v713
  %v718 = vmul.f32 %v109, %v713
  %v719 = vmul.f32 %v110, %v713
  %v720 = vmul.f32 %v111, %v713
  %v721 = vmul.f32 %v112, %v713
  %v722 = vmul.f32 %v113, %v713
  %v723 = vmul.f32 %v114, %v713
  %v724 = vmul.f32 %v115, %v713
  %v725 = vmul.f32 %v116, %v713
  %v726 = vmul.f32 %v117, %v713
  %v727 = vmul.f32 %v118, %v713
  %v728 = vmul.f32 %v119, %v713
  %v729 = vmul.f32 %v120, %v713
  %v730 = vld [vmem:[%s2 + $0x38] sm:$0xff]
  %v731 = vmul.f32 %v153, %v730
  %v732 = vmul.f32 %v154, %v730
  %v733 = vmul.f32 %v155, %v730
  %v734 = vmul.f32 %v156, %v730
  %v735 = vmul.f32 %v157, %v730
  %v736 = vmul.f32 %v158, %v730
  %v737 = vmul.f32 %v159, %v730
  %v738 = vmul.f32 %v160, %v730
  %v739 = vmul.f32 %v161, %v730
  %v740 = vmul.f32 %v162, %v730
  %v741 = vmul.f32 %v163, %v730
  %v742 = vmul.f32 %v164, %v730
  %v743 = vmul.f32 %v165, %v730
  %v744 = vmul.f32 %v166, %v730
  %v745 = vmul.f32 %v167, %v730
  %v746 = vmul.f32 %v168, %v730
  %v747 = vadd.f32 %v714, %v731
  %v748 = vadd.f32 %v715, %v732
  %v749 = vadd.f32 %v716, %v733
  %v750 = vadd.f32 %v717, %v734
  %v751 = vadd.f32 %v718, %v735
  %v752 = vadd.f32 %v719, %v736
  %v753 = vadd.f32 %v720, %v737
  %v754 = vadd.f32 %v721, %v738
  %v755 = vadd.f32 %v722, %v739
  %v756 = vadd.f32 %v723, %v740
  %v757 = vadd.f32 %v724, %v741
  %v758 = vadd.f32 %v725, %v742
  %v759 = vadd.f32 %v726, %v743
  %v760 = vadd.f32 %v727, %v744
  %v761 = vadd.f32 %v728, %v745
  %v762 = vadd.f32 %v729, %v746
  %v763 = vld [vmem:[%s2 + $0x40] sm:$0xff]
  %v764 = vmul.f32 %v202, %v763
  %v765 = vmul.f32 %v203, %v763
  %v766 = vmul.f32 %v204, %v763
  %v767 = vmul.f32 %v205, %v763
  %v768 = vmul.f32 %v206, %v763
  %v769 = vmul.f32 %v207, %v763
  %v770 = vmul.f32 %v208, %v763
  %v771 = vmul.f32 %v209, %v763
  %v772 = vmul.f32 %v210, %v763
  %v773 = vmul.f32 %v211, %v763
  %v774 = vmul.f32 %v212, %v763
  %v775 = vmul.f32 %v213, %v763
  %v776 = vmul.f32 %v214, %v763
  %v777 = vmul.f32 %v215, %v763
  %v778 = vmul.f32 %v216, %v763
  %v779 = vmul.f32 %v217, %v763
  %v780 = vadd.f32 %v747, %v764
  %v781 = vadd.f32 %v748, %v765
  %v782 = vadd.f32 %v749, %v766
  %v783 = vadd.f32 %v750, %v767
  %v784 = vadd.f32 %v751, %v768
  %v785 = vadd.f32 %v752, %v769
  %v786 = vadd.f32 %v753, %v770
  %v787 = vadd.f32 %v754, %v771
  %v788 = vadd.f32 %v755, %v772
  %v789 = vadd.f32 %v756, %v773
  %v790 = vadd.f32 %v757, %v774
  %v791 = vadd.f32 %v758, %v775
  %v792 = vadd.f32 %v759, %v776
  %v793 = vadd.f32 %v760, %v777
  %v794 = vadd.f32 %v761, %v778
  %v795 = vadd.f32 %v762, %v779
  %796 = vst [vmem:[#allocation3 + $0x100] sm:$0xff] %v780
  %797 = vst [vmem:[#allocation3 + $0x108] sm:$0xff] %v781
  %798 = vst [vmem:[#allocation3 + $0x110] sm:$0xff] %v782
  %799 = vst [vmem:[#allocation3 + $0x118] sm:$0xff] %v783
  %800 = vst [vmem:[#allocation3 + $0x120] sm:$0xff] %v784
  %801 = vst [vmem:[#allocation3 + $0x128] sm:$0xff] %v785
  %802 = vst [vmem:[#allocation3 + $0x130] sm:$0xff] %v786
  %803 = vst [vmem:[#allocation3 + $0x138] sm:$0xff] %v787
  %804 = vst [vmem:[#allocation3 + $0x140] sm:$0xff] %v788
  %805 = vst [vmem:[#allocation3 + $0x148] sm:$0xff] %v789
  %806 = vst [vmem:[#allocation3 + $0x150] sm:$0xff] %v790
  %807 = vst [vmem:[#allocation3 + $0x158] sm:$0xff] %v791
  %808 = vst [vmem:[#allocation3 + $0x160] sm:$0xff] %v792
  %809 = vst [vmem:[#allocation3 + $0x168] sm:$0xff] %v793
  %810 = vst [vmem:[#allocation3 + $0x170] sm:$0xff] %v794
  %811 = vst [vmem:[#allocation3 + $0x178] sm:$0xff] %v795
  %v812 = vld [vmem:[%s0] sm:$0xff]
  %v813 = vld [vmem:[%s0 + $0x8] sm:$0xff]
  %v814 = vld [vmem:[%s0 + $0x10] sm:$0xff]
  %v815 = vld [vmem:[%s0 + $0x18] sm:$0xff]
  %v816 = vsub.s32 %v27, 1
  %v817 = vsub.s32 %v28, 1
  %v818 = vrot.slane %v812, 7
  %v819 = vrot.slane %v813, 7
  %v820 = vrot.slane %v814, 7
  %v821 = vrot.slane %v815, 7
  %v822 = vsel %vm31, %v820, %v821
  %v823 = vsel %vm31, %v819, %v820
  %v824 = vsel %vm31, %v818, %v819
  %v825 = vsel %vm31, %v821, %v818
  %v826 = vrot.slane %v812, 1
  %v827 = vrot.slane %v813, 1
  %v828 = vrot.slane %v814, 1
  %v829 = vrot.slane %v815, 1
  %v830 = vsel %vm36, %v828, %v829
  %v831 = vsel %vm36, %v827, %v828
  %v832 = vsel %vm36, %v826, %v827
  %v833 = vsel %vm36, %v829, %v826
  %vm834 = vcmp.eq.s32.totalorder %v33, %v816
  %vm835 = vcmp.eq.s32.totalorder %v32, %v817
  %v836 = vsel %vm834, %v825, 0.0
  %v837 = vsel %vm835, %v824, 0.0
  %v838 = vsel %vm834, %v823, 0.0
  %v839 = vsel %vm835, %v822, 0.0
  %vm840 = vcmp.eq.s32.totalorder %v37, %v816
  %vm841 = vcmp.eq.s32.totalorder %v38, %v817
  %v842 = vsel %vm840, %v832, 0.0
  %v843 = vsel %vm841, %v831, 0.0
  %v844 = vsel %vm840, %v830, 0.0
  %v845 = vsel %vm841, %v833, 0.0
  %v846 = vadd.f32 %v836, %v842
  %v847 = vadd.f32 %v837, %v843
  %v848 = vadd.f32 %v838, %v844
  %v849 = vadd.f32 %v839, %v845
  %v850 = vadd.s32 %v27, 1
  %v851 = vadd.s32 %v28, 1
  %vm852 = vcmp.eq.s32.totalorder %v33, %v850
  %vm853 = vcmp.eq.s32.totalorder %v32, %v851
  %v854 = vsel %vm852, %v825, 0.0
  %v855 = vsel %vm853, %v824, 0.0
  %v856 = vsel %vm852, %v823, 0.0
  %v857 = vsel %vm853, %v822, 0.0
  %vm858 = vcmp.eq.s32.totalorder %v37, %v850
  %vm859 = vcmp.eq.s32.totalorder %v38, %v851
  %v860 = vsel %vm858, %v832, 0.0
  %v861 = vsel %vm859, %v831, 0.0
  %v862 = vsel %vm858, %v830, 0.0
  %v863 = vsel %vm859, %v833, 0.0
  %v864 = vadd.f32 %v854, %v860
  %v865 = vadd.f32 %v855, %v861
  %v866 = vadd.f32 %v856, %v862
  %v867 = vadd.f32 %v857, %v863
  %v868 = vld [vmem:[#allocation2] sm:$0xff]
  %v869 = vld [vmem:[#allocation2 + $0x8] sm:$0xff]
  %v870 = vld [vmem:[#allocation2 + $0x10] sm:$0xff]
  %v871 = vld [vmem:[#allocation2 + $0x18] sm:$0xff]
  %v872 = vld [vmem:[#allocation2 + $0x20] sm:$0xff]
  %v873 = vld [vmem:[#allocation2 + $0x28] sm:$0xff]
  %v874 = vld [vmem:[#allocation2 + $0x30] sm:$0xff]
  %v875 = vld [vmem:[#allocation2 + $0x38] sm:$0xff]
  %v876 = vld [vmem:[#allocation2 + $0x40] sm:$0xff]
  %v877 = vld [vmem:[#allocation2 + $0x48] sm:$0xff]
  %v878 = vld [vmem:[#allocation2 + $0x50] sm:$0xff]
  %v879 = vld [vmem:[#allocation2 + $0x58] sm:$0xff]
  %v880 = vld [vmem:[#allocation2 + $0x60] sm:$0xff]
  %v881 = vld [vmem:[#allocation2 + $0x68] sm:$0xff]
  %v882 = vld [vmem:[#allocation2 + $0x70] sm:$0xff]
  %v883 = vld [vmem:[#allocation2 + $0x78] sm:$0xff]
  %v884 = vld [vmem:[#allocation2 + $0x80] sm:$0xff]
  %v885 = vld [vmem:[#allocation2 + $0x88] sm:$0xff]
  %v886 = vld [vmem:[#allocation2 + $0x90] sm:$0xff]
  %v887 = vld [vmem:[#allocation2 + $0x98] sm:$0xff]
  %v888 = vld [vmem:[#allocation2 + $0xa0] sm:$0xff]
  %v889 = vld [vmem:[#allocation2 + $0xa8] sm:$0xff]
  %v890 = vld [vmem:[#allocation2 + $0xb0] sm:$0xff]
  %v891 = vld [vmem:[#allocation2 + $0xb8] sm:$0xff]
  %v892 = vld [vmem:[#allocation2 + $0xc0] sm:$0xff]
  %v893 = vld [vmem:[#allocation2 + $0xc8] sm:$0xff]
  %v894 = vld [vmem:[#allocation2 + $0xd0] sm:$0xff]
  %v895 = vld [vmem:[#allocation2 + $0xd8] sm:$0xff]
  %v896 = vld [vmem:[#allocation2 + $0xe0] sm:$0xff]
  %v897 = vld [vmem:[#allocation2 + $0xe8] sm:$0xff]
  %v898 = vld [vmem:[#allocation2 + $0xf0] sm:$0xff]
  %v899 = vld [vmem:[#allocation2 + $0xf8] sm:$0xff]
  %v900 = vld [vmem:[#allocation2 + $0x100] sm:$0xff]
  %v901 = vld [vmem:[#allocation2 + $0x108] sm:$0xff]
  %v902 = vld [vmem:[#allocation2 + $0x110] sm:$0xff]
  %v903 = vld [vmem:[#allocation2 + $0x118] sm:$0xff]
  %v904 = vld [vmem:[#allocation2 + $0x120] sm:$0xff]
  %v905 = vld [vmem:[#allocation2 + $0x128] sm:$0xff]
  %v906 = vld [vmem:[#allocation2 + $0x130] sm:$0xff]
  %v907 = vld [vmem:[#allocation2 + $0x138] sm:$0xff]
  %v908 = vld [vmem:[#allocation2 + $0x140] sm:$0xff]
  %v909 = vld [vmem:[#allocation2 + $0x148] sm:$0xff]
  %v910 = vld [vmem:[#allocation2 + $0x150] sm:$0xff]
  %v911 = vld [vmem:[#allocation2 + $0x158] sm:$0xff]
  %v912 = vld [vmem:[#allocation2 + $0x160] sm:$0xff]
  %v913 = vld [vmem:[#allocation2 + $0x168] sm:$0xff]
  %v914 = vld [vmem:[#allocation2 + $0x170] sm:$0xff]
  %v915 = vld [vmem:[#allocation2 + $0x178] sm:$0xff]
  %916 = vmatprep.subr.mxu0 0.0
  %917 = vmatpush1.msra.mxu0 %v883
  %918 = vmatprep.subr.mxu0 0.0
  %919 = vmatpush1.msra.mxu0 %v882
  %920 = vmatprep.subr.mxu0 0.0
  %921 = vmatpush1.msra.mxu0 %v881
  %922 = vmatprep.subr.mxu0 0.0
  %923 = vmatpush1.msra.mxu0 %v880
  %924 = vmatprep.subr.mxu0 0.0
  %925 = vmatpush1.msra.mxu0 %v879
  %926 = vmatprep.subr.mxu0 0.0
  %927 = vmatpush1.msra.mxu0 %v878
  %928 = vmatprep.subr.mxu0 0.0
  %929 = vmatpush1.msra.mxu0 %v877
  %930 = vmatprep.subr.mxu0 0.0
  %931 = vmatpush1.msra.mxu0 %v876
  %932 = vmatprep.subr.mxu0 0.0
  %933 = vmatpush1.msra.mxu0 %v875
  %934 = vmatprep.subr.mxu0 0.0
  %935 = vmatpush1.msra.mxu0 %v874
  %936 = vmatprep.subr.mxu0 0.0
  %937 = vmatpush1.msra.mxu0 %v873
  %938 = vmatprep.subr.mxu0 0.0
  %939 = vmatpush1.msra.mxu0 %v872
  %940 = vmatprep.subr.mxu0 0.0
  %941 = vmatpush1.msra.mxu0 %v871
  %942 = vmatprep.subr.mxu0 0.0
  %943 = vmatpush1.msra.mxu0 %v870
  %944 = vmatprep.subr.mxu0 0.0
  %945 = vmatpush1.msra.mxu0 %v869
  %946 = vmatprep.subr.mxu0 0.0
  %947 = vmatpush1.msra.mxu0 %v868
  %948 = vmatprep.subr.mxu0 0.0
  %949 = vmatpush2.msra.mxu0 %v899
  %950 = vmatprep.subr.mxu0 0.0
  %951 = vmatpush2.msra.mxu0 %v898
  %952 = vmatprep.subr.mxu0 0.0
  %953 = vmatpush2.msra.mxu0 %v897
  %954 = vmatprep.subr.mxu0 0.0
  %955 = vmatpush2.msra.mxu0 %v896
  %956 = vmatprep.subr.mxu0 0.0
  %957 = vmatpush2.msra.mxu0 %v895
  %958 = vmatprep.subr.mxu0 0.0
  %959 = vmatpush2.msra.mxu0 %v894
  %960 = vmatprep.subr.mxu0 0.0
  %961 = vmatpush2.msra.mxu0 %v893
  %962 = vmatprep.subr.mxu0 0.0
  %963 = vmatpush2.msra.mxu0 %v892
  %964 = vmatprep.subr.mxu0 0.0
  %965 = vmatpush2.msra.mxu0 %v891
  %966 = vmatprep.subr.mxu0 0.0
  %967 = vmatpush2.msra.mxu0 %v890
  %968 = vmatprep.subr.mxu0 0.0
  %969 = vmatpush2.msra.mxu0 %v889
  %970 = vmatprep.subr.mxu0 0.0
  %971 = vmatpush2.msra.mxu0 %v888
  %972 = vmatprep.subr.mxu0 0.0
  %973 = vmatpush2.msra.mxu0 %v887
  %974 = vmatprep.subr.mxu0 0.0
  %975 = vmatpush2.msra.mxu0 %v886
  %976 = vmatprep.subr.mxu0 0.0
  %977 = vmatpush2.msra.mxu0 %v885
  %978 = vmatprep.subr.mxu0 0.0
  %979 = vmatpush2.msra.mxu0 %v884
  %980 = vmatprep.mubr.f32.mxu0 %v812
  %981 = vmatmul.mubr.f32.gmra.mxu0 %v846
  %v982 = vpop.f32.mrf.mxu0
  %v983 = vadd.f32 0.0, %v982
  %v984 = vpop.f32.mrf.mxu0
  %985 = vmatprep.mubr.f32.mxu0 %v813
  %986 = vmatmul.mubr.f32.gmra.mxu0 %v847
  %v987 = vpop.f32.mrf.mxu0
  %v988 = vadd.f32 0.0, %v987
  %v989 = vpop.f32.mrf.mxu0
  %990 = vmatprep.mubr.f32.mxu0 %v814
  %991 = vmatmul.mubr.f32.gmra.mxu0 %v848
  %v992 = vpop.f32.mrf.mxu0
  %v993 = vadd.f32 0.0, %v992
  %v994 = vpop.f32.mrf.mxu0
  %995 = vmatprep.mubr.f32.mxu0 %v815
  %996 = vmatmul.mubr.f32.gmra.mxu0 %v849
  %v997 = vpop.f32.mrf.mxu0
  %v998 = vadd.f32 0.0, %v997
  %v999 = vpop.f32.mrf.mxu0
  %1000 = vdwg.mxu0
  %1001 = vmatprep.subr.mxu0 0.0
  %1002 = vmatpush1.msra.mxu0 %v915
  %1003 = vmatprep.subr.mxu0 0.0
  %1004 = vmatpush1.msra.mxu0 %v914
  %1005 = vmatprep.subr.mxu0 0.0
  %1006 = vmatpush1.msra.mxu0 %v913
  %1007 = vmatprep.subr.mxu0 0.0
  %1008 = vmatpush1.msra.mxu0 %v912
  %1009 = vmatprep.subr.mxu0 0.0
  %1010 = vmatpush1.msra.mxu0 %v911
  %1011 = vmatprep.subr.mxu0 0.0
  %1012 = vmatpush1.msra.mxu0 %v910
  %1013 = vmatprep.subr.mxu0 0.0
  %1014 = vmatpush1.msra.mxu0 %v909
  %1015 = vmatprep.subr.mxu0 0.0
  %1016 = vmatpush1.msra.mxu0 %v908
  %1017 = vmatprep.subr.mxu0 0.0
  %1018 = vmatpush1.msra.mxu0 %v907
  %1019 = vmatprep.subr.mxu0 0.0
  %1020 = vmatpush1.msra.mxu0 %v906
  %1021 = vmatprep.subr.mxu0 0.0
  %1022 = vmatpush1.msra.mxu0 %v905
  %1023 = vmatprep.subr.mxu0 0.0
  %1024 = vmatpush1.msra.mxu0 %v904
  %1025 = vmatprep.subr.mxu0 0.0
  %1026 = vmatpush1.msra.mxu0 %v903
  %1027 = vmatprep.subr.mxu0 0.0
  %1028 = vmatpush1.msra.mxu0 %v902
  %1029 = vmatprep.subr.mxu0 0.0
  %1030 = vmatpush1.msra.mxu0 %v901
  %1031 = vmatprep.subr.mxu0 0.0
  %1032 = vmatpush1.msra.mxu0 %v900
  %1033 = vmatprep.subr.mxu0 0.0
  %1034 = vmatpush2.msra.mxu0 0.0
  %1035 = vmatprep.subr.mxu0 0.0
  %1036 = vmatpush2.msra.mxu0 0.0
  %1037 = vmatprep.subr.mxu0 0.0
  %1038 = vmatpush2.msra.mxu0 0.0
  %1039 = vmatprep.subr.mxu0 0.0
  %1040 = vmatpush2.msra.mxu0 0.0
  %1041 = vmatprep.subr.mxu0 0.0
  %1042 = vmatpush2.msra.mxu0 0.0
  %1043 = vmatprep.subr.mxu0 0.0
  %1044 = vmatpush2.msra.mxu0 0.0
  %1045 = vmatprep.subr.mxu0 0.0
  %1046 = vmatpush2.msra.mxu0 0.0
  %1047 = vmatprep.subr.mxu0 0.0
  %1048 = vmatpush2.msra.mxu0 0.0
  %1049 = vmatprep.subr.mxu0 0.0
  %1050 = vmatpush2.msra.mxu0 0.0
  %1051 = vmatprep.subr.mxu0 0.0
  %1052 = vmatpush2.msra.mxu0 0.0
  %1053 = vmatprep.subr.mxu0 0.0
  %1054 = vmatpush2.msra.mxu0 0.0
  %1055 = vmatprep.subr.mxu0 0.0
  %1056 = vmatpush2.msra.mxu0 0.0
  %1057 = vmatprep.subr.mxu0 0.0
  %1058 = vmatpush2.msra.mxu0 0.0
  %1059 = vmatprep.subr.mxu0 0.0
  %1060 = vmatpush2.msra.mxu0 0.0
  %1061 = vmatprep.subr.mxu0 0.0
  %1062 = vmatpush2.msra.mxu0 0.0
  %1063 = vmatprep.subr.mxu0 0.0
  %1064 = vmatpush2.msra.mxu0 0.0
  %1065 = vmatprep.mubr.f32.mxu0 0.0
  %1066 = vmatmul.mubr.f32.gmra.mxu0 %v864
  %v1067 = vpop.f32.mrf.mxu0
  %v1068 = vadd.f32 %v983, %v1067
  %v1069 = vpop.f32.mrf.mxu0
  %1070 = vmatprep.mubr.f32.mxu0 0.0
  %1071 = vmatmul.mubr.f32.gmra.mxu0 %v865
  %v1072 = vpop.f32.mrf.mxu0
  %v1073 = vadd.f32 %v988, %v1072
  %v1074 = vpop.f32.mrf.mxu0
  %1075 = vmatprep.mubr.f32.mxu0 0.0
  %1076 = vmatmul.mubr.f32.gmra.mxu0 %v866
  %v1077 = vpop.f32.mrf.mxu0
  %v1078 = vadd.f32 %v993, %v1077
  %v1079 = vpop.f32.mrf.mxu0
  %1080 = vmatprep.mubr.f32.mxu0 0.0
  %1081 = vmatmul.mubr.f32.gmra.mxu0 %v867
  %v1082 = vpop.f32.mrf.mxu0
  %v1083 = vadd.f32 %v998, %v1082
  %v1084 = vpop.f32.mrf.mxu0
  %1085 = vdwg.mxu0
  %v1086 = vadd.f32 %v1068, %v1073
  %v1087 = vadd.f32 %v1086, %v1078
  %v1088 = vadd.f32 %v1087, %v1083
  %v1089 = vrot.slane %v1088, 4
  %v1090 = vadd.f32 %v1088, %v1089
  %v1091 = vrot.slane %v1090, 2
  %v1092 = vadd.f32 %v1090, %v1091
  %v1093 = vrot.slane %v1092, 1
  %v1094 = vadd.f32 %v1092, %v1093
  %1095 = vrot.lane.b32.xlu0 %v1094, 8
  %v1096 = vpop.permute.xlu0 %1095
  %v1097 = vadd.f32 %v1094, %v1096
  %1098 = vrot.lane.b32.xlu0 %v1097, 16
  %v1099 = vpop.permute.xlu0 %1098
  %v1100 = vadd.f32 %v1097, %v1099
  %1101 = vrot.lane.b32.xlu0 %v1100, 32
  %v1102 = vpop.permute.xlu0 %1101
  %v1103 = vadd.f32 %v1100, %v1102
  %1104 = vrot.lane.b32.xlu0 %v1103, 64
  %v1105 = vpop.permute.xlu0 %1104
  %v1106 = vadd.f32 %v1103, %v1105
  %v1107 = vmul.f32 %v1106, 0.001953125
  %v1108 = vmul.f32 %v1068, %v1068
  %v1109 = vmul.f32 %v1073, %v1073
  %v1110 = vmul.f32 %v1078, %v1078
  %v1111 = vmul.f32 %v1083, %v1083
  %v1112 = vadd.f32 %v1108, %v1109
  %v1113 = vadd.f32 %v1112, %v1110
  %v1114 = vadd.f32 %v1113, %v1111
  %v1115 = vrot.slane %v1114, 4
  %v1116 = vadd.f32 %v1114, %v1115
  %v1117 = vrot.slane %v1116, 2
  %v1118 = vadd.f32 %v1116, %v1117
  %v1119 = vrot.slane %v1118, 1
  %v1120 = vadd.f32 %v1118, %v1119
  %1121 = vrot.lane.b32.xlu0 %v1120, 8
  %v1122 = vpop.permute.xlu0 %1121
  %v1123 = vadd.f32 %v1120, %v1122
  %1124 = vrot.lane.b32.xlu0 %v1123, 16
  %v1125 = vpop.permute.xlu0 %1124
  %v1126 = vadd.f32 %v1123, %v1125
  %1127 = vrot.lane.b32.xlu0 %v1126, 32
  %v1128 = vpop.permute.xlu0 %1127
  %v1129 = vadd.f32 %v1126, %v1128
  %1130 = vrot.lane.b32.xlu0 %v1129, 64
  %v1131 = vpop.permute.xlu0 %1130
  %v1132 = vadd.f32 %v1129, %v1131
  %v1133 = vmul.f32 %v1132, 0.001953125
  %v1134 = vmul.f32 %v1107, %v1107
  %v1135 = vsub.f32 %v1133, %v1134
  %v1136 = vld [vmem:[%s3] sm:$0x1]
  %v1137 = vadd.f32 %v1135, 1e-05
  %v1138 = vrsqrt.pop %v1137
  %v1139 = vmul.f32 %v1136, %v1138
  %v1140 = vlaneseq
  %v1141 = vshrl.u32 %v1140, 7
  %v1142 = vsub.s32 0, %v1141
  %v1143 = vrot.slane %v1107, %v1142
  %v1144 = vsub.f32 %v1068, %v1143
  %v1145 = vsub.f32 %v1073, %v1143
  %v1146 = vsub.f32 %v1078, %v1143
  %v1147 = vsub.f32 %v1083, %v1143
  %v1149 = vlaneseq
  %v1150 = vshrl.u32 %v1149, 7
  %v1151 = vsub.s32 0, %v1150
  %v1152 = vrot.slane %v1139, %v1151
  %v1154 = vmul.f32 %v1144, %v1152
  %v1155 = vmul.f32 %v1145, %v1152
  %v1156 = vmul.f32 %v1146, %v1152
  %v1157 = vmul.f32 %v1147, %v1152
  %v1158 = vld [vmem:[%s4] sm:$0x1]
  %v1160 = vlaneseq
  %v1161 = vshrl.u32 %v1160, 7
  %v1162 = vsub.s32 0, %v1161
  %v1163 = vrot.slane %v1158, %v1162
  %v1165 = vadd.f32 %v1154, %v1163
  %v1166 = vadd.f32 %v1155, %v1163
  %v1167 = vadd.f32 %v1156, %v1163
  %v1168 = vadd.f32 %v1157, %v1163
  %v1169 = vmax.f32 %v1165, 0.0
  %v1170 = vmax.f32 %v1166, 0.0
  %v1171 = vmax.f32 %v1167, 0.0
  %v1172 = vmax.f32 %v1168, 0.0
  %v1173 = vrot.slane %v1169, 7
  %v1174 = vrot.slane %v1170, 7
  %v1175 = vrot.slane %v1171, 7
  %v1176 = vrot.slane %v1172, 7
  %v1177 = vsel %vm31, %v1175, %v1176
  %v1178 = vsel %vm31, %v1174, %v1175
  %v1179 = vsel %vm31, %v1173, %v1174
  %v1180 = vsel %vm31, %v1176, %v1173
  %v1181 = vrot.slane %v1169, 1
  %v1182 = vrot.slane %v1170, 1
  %v1183 = vrot.slane %v1171, 1
  %v1184 = vrot.slane %v1172, 1
  %v1185 = vsel %vm36, %v1183, %v1184
  %v1186 = vsel %vm36, %v1182, %v1183
  %v1187 = vsel %vm36, %v1181, %v1182
  %v1188 = vsel %vm36, %v1184, %v1181
  %v1189 = vsel %vm834, %v1180, 0.0
  %v1190 = vsel %vm835, %v1179, 0.0
  %v1191 = vsel %vm834, %v1178, 0.0
  %v1192 = vsel %vm835, %v1177, 0.0
  %v1193 = vsel %vm840, %v1187, 0.0
  %v1194 = vsel %vm841, %v1186, 0.0
  %v1195 = vsel %vm840, %v1185, 0.0
  %v1196 = vsel %vm841, %v1188, 0.0
  %v1197 = vadd.f32 %v1189, %v1193
  %v1198 = vadd.f32 %v1190, %v1194
  %v1199 = vadd.f32 %v1191, %v1195
  %v1200 = vadd.f32 %v1192, %v1196
  %v1201 = vsel %vm852, %v1180, 0.0
  %v1202 = vsel %vm853, %v1179, 0.0
  %v1203 = vsel %vm852, %v1178, 0.0
  %v1204 = vsel %vm853, %v1177, 0.0
  %v1205 = vsel %vm858, %v1187, 0.0
  %v1206 = vsel %vm859, %v1186, 0.0
  %v1207 = vsel %vm858, %v1185, 0.0
  %v1208 = vsel %vm859, %v1188, 0.0
  %v1209 = vadd.f32 %v1201, %v1205
  %v1210 = vadd.f32 %v1202, %v1206
  %v1211 = vadd.f32 %v1203, %v1207
  %v1212 = vadd.f32 %v1204, %v1208
  %v1213 = vld [vmem:[#allocation3] sm:$0xff]
  %v1214 = vld [vmem:[#allocation3 + $0x8] sm:$0xff]
  %v1215 = vld [vmem:[#allocation3 + $0x10] sm:$0xff]
  %v1216 = vld [vmem:[#allocation3 + $0x18] sm:$0xff]
  %v1217 = vld [vmem:[#allocation3 + $0x20] sm:$0xff]
  %v1218 = vld [vmem:[#allocation3 + $0x28] sm:$0xff]
  %v1219 = vld [vmem:[#allocation3 + $0x30] sm:$0xff]
  %v1220 = vld [vmem:[#allocation3 + $0x38] sm:$0xff]
  %v1221 = vld [vmem:[#allocation3 + $0x40] sm:$0xff]
  %v1222 = vld [vmem:[#allocation3 + $0x48] sm:$0xff]
  %v1223 = vld [vmem:[#allocation3 + $0x50] sm:$0xff]
  %v1224 = vld [vmem:[#allocation3 + $0x58] sm:$0xff]
  %v1225 = vld [vmem:[#allocation3 + $0x60] sm:$0xff]
  %v1226 = vld [vmem:[#allocation3 + $0x68] sm:$0xff]
  %v1227 = vld [vmem:[#allocation3 + $0x70] sm:$0xff]
  %v1228 = vld [vmem:[#allocation3 + $0x78] sm:$0xff]
  %v1229 = vld [vmem:[#allocation3 + $0x80] sm:$0xff]
  %v1230 = vld [vmem:[#allocation3 + $0x88] sm:$0xff]
  %v1231 = vld [vmem:[#allocation3 + $0x90] sm:$0xff]
  %v1232 = vld [vmem:[#allocation3 + $0x98] sm:$0xff]
  %v1233 = vld [vmem:[#allocation3 + $0xa0] sm:$0xff]
  %v1234 = vld [vmem:[#allocation3 + $0xa8] sm:$0xff]
  %v1235 = vld [vmem:[#allocation3 + $0xb0] sm:$0xff]
  %v1236 = vld [vmem:[#allocation3 + $0xb8] sm:$0xff]
  %v1237 = vld [vmem:[#allocation3 + $0xc0] sm:$0xff]
  %v1238 = vld [vmem:[#allocation3 + $0xc8] sm:$0xff]
  %v1239 = vld [vmem:[#allocation3 + $0xd0] sm:$0xff]
  %v1240 = vld [vmem:[#allocation3 + $0xd8] sm:$0xff]
  %v1241 = vld [vmem:[#allocation3 + $0xe0] sm:$0xff]
  %v1242 = vld [vmem:[#allocation3 + $0xe8] sm:$0xff]
  %v1243 = vld [vmem:[#allocation3 + $0xf0] sm:$0xff]
  %v1244 = vld [vmem:[#allocation3 + $0xf8] sm:$0xff]
  %v1245 = vld [vmem:[#allocation3 + $0x100] sm:$0xff]
  %v1246 = vld [vmem:[#allocation3 + $0x108] sm:$0xff]
  %v1247 = vld [vmem:[#allocation3 + $0x110] sm:$0xff]
  %v1248 = vld [vmem:[#allocation3 + $0x118] sm:$0xff]
  %v1249 = vld [vmem:[#allocation3 + $0x120] sm:$0xff]
  %v1250 = vld [vmem:[#allocation3 + $0x128] sm:$0xff]
  %v1251 = vld [vmem:[#allocation3 + $0x130] sm:$0xff]
  %v1252 = vld [vmem:[#allocation3 + $0x138] sm:$0xff]
  %v1253 = vld [vmem:[#allocation3 + $0x140] sm:$0xff]
  %v1254 = vld [vmem:[#allocation3 + $0x148] sm:$0xff]
  %v1255 = vld [vmem:[#allocation3 + $0x150] sm:$0xff]
  %v1256 = vld [vmem:[#allocation3 + $0x158] sm:$0xff]
  %v1257 = vld [vmem:[#allocation3 + $0x160] sm:$0xff]
  %v1258 = vld [vmem:[#allocation3 + $0x168] sm:$0xff]
  %v1259 = vld [vmem:[#allocation3 + $0x170] sm:$0xff]
  %v1260 = vld [vmem:[#allocation3 + $0x178] sm:$0xff]
  %1261 = vmatprep.subr.mxu0 0.0
  %1262 = vmatpush1.msra.mxu0 %v1228
  %1263 = vmatprep.subr.mxu0 0.0
  %1264 = vmatpush1.msra.mxu0 %v1227
  %1265 = vmatprep.subr.mxu0 0.0
  %1266 = vmatpush1.msra.mxu0 %v1226
  %1267 = vmatprep.subr.mxu0 0.0
  %1268 = vmatpush1.msra.mxu0 %v1225
  %1269 = vmatprep.subr.mxu0 0.0
  %1270 = vmatpush1.msra.mxu0 %v1224
  %1271 = vmatprep.subr.mxu0 0.0
  %1272 = vmatpush1.msra.mxu0 %v1223
  %1273 = vmatprep.subr.mxu0 0.0
  %1274 = vmatpush1.msra.mxu0 %v1222
  %1275 = vmatprep.subr.mxu0 0.0
  %1276 = vmatpush1.msra.mxu0 %v1221
  %1277 = vmatprep.subr.mxu0 0.0
  %1278 = vmatpush1.msra.mxu0 %v1220
  %1279 = vmatprep.subr.mxu0 0.0
  %1280 = vmatpush1.msra.mxu0 %v1219
  %1281 = vmatprep.subr.mxu0 0.0
  %1282 = vmatpush1.msra.mxu0 %v1218
  %1283 = vmatprep.subr.mxu0 0.0
  %1284 = vmatpush1.msra.mxu0 %v1217
  %1285 = vmatprep.subr.mxu0 0.0
  %1286 = vmatpush1.msra.mxu0 %v1216
  %1287 = vmatprep.subr.mxu0 0.0
  %1288 = vmatpush1.msra.mxu0 %v1215
  %1289 = vmatprep.subr.mxu0 0.0
  %1290 = vmatpush1.msra.mxu0 %v1214
  %1291 = vmatprep.subr.mxu0 0.0
  %1292 = vmatpush1.msra.mxu0 %v1213
  %1293 = vmatprep.subr.mxu0 0.0
  %1294 = vmatpush2.msra.mxu0 %v1244
  %1295 = vmatprep.subr.mxu0 0.0
  %1296 = vmatpush2.msra.mxu0 %v1243
  %1297 = vmatprep.subr.mxu0 0.0
  %1298 = vmatpush2.msra.mxu0 %v1242
  %1299 = vmatprep.subr.mxu0 0.0
  %1300 = vmatpush2.msra.mxu0 %v1241
  %1301 = vmatprep.subr.mxu0 0.0
  %1302 = vmatpush2.msra.mxu0 %v1240
  %1303 = vmatprep.subr.mxu0 0.0
  %1304 = vmatpush2.msra.mxu0 %v1239
  %1305 = vmatprep.subr.mxu0 0.0
  %1306 = vmatpush2.msra.mxu0 %v1238
  %1307 = vmatprep.subr.mxu0 0.0
  %1308 = vmatpush2.msra.mxu0 %v1237
  %1309 = vmatprep.subr.mxu0 0.0
  %1310 = vmatpush2.msra.mxu0 %v1236
  %1311 = vmatprep.subr.mxu0 0.0
  %1312 = vmatpush2.msra.mxu0 %v1235
  %1313 = vmatprep.subr.mxu0 0.0
  %1314 = vmatpush2.msra.mxu0 %v1234
  %1315 = vmatprep.subr.mxu0 0.0
  %1316 = vmatpush2.msra.mxu0 %v1233
  %1317 = vmatprep.subr.mxu0 0.0
  %1318 = vmatpush2.msra.mxu0 %v1232
  %1319 = vmatprep.subr.mxu0 0.0
  %1320 = vmatpush2.msra.mxu0 %v1231
  %1321 = vmatprep.subr.mxu0 0.0
  %1322 = vmatpush2.msra.mxu0 %v1230
  %1323 = vmatprep.subr.mxu0 0.0
  %1324 = vmatpush2.msra.mxu0 %v1229
  %1325 = vmatprep.mubr.f32.mxu0 %v1169
  %1326 = vmatmul.mubr.f32.gmra.mxu0 %v1197
  %v1327 = vpop.f32.mrf.mxu0
  %v1328 = vadd.f32 0.0, %v1327
  %v1329 = vpop.f32.mrf.mxu0
  %1330 = vmatprep.mubr.f32.mxu0 %v1170
  %1331 = vmatmul.mubr.f32.gmra.mxu0 %v1198
  %v1332 = vpop.f32.mrf.mxu0
  %v1333 = vadd.f32 0.0, %v1332
  %v1334 = vpop.f32.mrf.mxu0
  %1335 = vmatprep.mubr.f32.mxu0 %v1171
  %1336 = vmatmul.mubr.f32.gmra.mxu0 %v1199
  %v1337 = vpop.f32.mrf.mxu0
  %v1338 = vadd.f32 0.0, %v1337
  %v1339 = vpop.f32.mrf.mxu0
  %1340 = vmatprep.mubr.f32.mxu0 %v1172
  %1341 = vmatmul.mubr.f32.gmra.mxu0 %v1200
  %v1342 = vpop.f32.mrf.mxu0
  %v1343 = vadd.f32 0.0, %v1342
  %v1344 = vpop.f32.mrf.mxu0
  %1345 = vdwg.mxu0
  %1346 = vmatprep.subr.mxu0 0.0
  %1347 = vmatpush1.msra.mxu0 %v1260
  %1348 = vmatprep.subr.mxu0 0.0
  %1349 = vmatpush1.msra.mxu0 %v1259
  %1350 = vmatprep.subr.mxu0 0.0
  %1351 = vmatpush1.msra.mxu0 %v1258
  %1352 = vmatprep.subr.mxu0 0.0
  %1353 = vmatpush1.msra.mxu0 %v1257
  %1354 = vmatprep.subr.mxu0 0.0
  %1355 = vmatpush1.msra.mxu0 %v1256
  %1356 = vmatprep.subr.mxu0 0.0
  %1357 = vmatpush1.msra.mxu0 %v1255
  %1358 = vmatprep.subr.mxu0 0.0
  %1359 = vmatpush1.msra.mxu0 %v1254
  %1360 = vmatprep.subr.mxu0 0.0
  %1361 = vmatpush1.msra.mxu0 %v1253
  %1362 = vmatprep.subr.mxu0 0.0
  %1363 = vmatpush1.msra.mxu0 %v1252
  %1364 = vmatprep.subr.mxu0 0.0
  %1365 = vmatpush1.msra.mxu0 %v1251
  %1366 = vmatprep.subr.mxu0 0.0
  %1367 = vmatpush1.msra.mxu0 %v1250
  %1368 = vmatprep.subr.mxu0 0.0
  %1369 = vmatpush1.msra.mxu0 %v1249
  %1370 = vmatprep.subr.mxu0 0.0
  %1371 = vmatpush1.msra.mxu0 %v1248
  %1372 = vmatprep.subr.mxu0 0.0
  %1373 = vmatpush1.msra.mxu0 %v1247
  %1374 = vmatprep.subr.mxu0 0.0
  %1375 = vmatpush1.msra.mxu0 %v1246
  %1376 = vmatprep.subr.mxu0 0.0
  %1377 = vmatpush1.msra.mxu0 %v1245
  %1378 = vmatprep.subr.mxu0 0.0
  %1379 = vmatpush2.msra.mxu0 0.0
  %1380 = vmatprep.subr.mxu0 0.0
  %1381 = vmatpush2.msra.mxu0 0.0
  %1382 = vmatprep.subr.mxu0 0.0
  %1383 = vmatpush2.msra.mxu0 0.0
  %1384 = vmatprep.subr.mxu0 0.0
  %1385 = vmatpush2.msra.mxu0 0.0
  %1386 = vmatprep.subr.mxu0 0.0
  %1387 = vmatpush2.msra.mxu0 0.0
  %1388 = vmatprep.subr.mxu0 0.0
  %1389 = vmatpush2.msra.mxu0 0.0
  %1390 = vmatprep.subr.mxu0 0.0
  %1391 = vmatpush2.msra.mxu0 0.0
  %1392 = vmatprep.subr.mxu0 0.0
  %1393 = vmatpush2.msra.mxu0 0.0
  %1394 = vmatprep.subr.mxu0 0.0
  %1395 = vmatpush2.msra.mxu0 0.0
  %1396 = vmatprep.subr.mxu0 0.0
  %1397 = vmatpush2.msra.mxu0 0.0
  %1398 = vmatprep.subr.mxu0 0.0
  %1399 = vmatpush2.msra.mxu0 0.0
  %1400 = vmatprep.subr.mxu0 0.0
  %1401 = vmatpush2.msra.mxu0 0.0
  %1402 = vmatprep.subr.mxu0 0.0
  %1403 = vmatpush2.msra.mxu0 0.0
  %1404 = vmatprep.subr.mxu0 0.0
  %1405 = vmatpush2.msra.mxu0 0.0
  %1406 = vmatprep.subr.mxu0 0.0
  %1407 = vmatpush2.msra.mxu0 0.0
  %1408 = vmatprep.subr.mxu0 0.0
  %1409 = vmatpush2.msra.mxu0 0.0
  %1410 = vmatprep.mubr.f32.mxu0 0.0
  %1411 = vmatmul.mubr.f32.gmra.mxu0 %v1209
  %v1412 = vpop.f32.mrf.mxu0
  %v1413 = vadd.f32 %v1328, %v1412
  %v1414 = vpop.f32.mrf.mxu0
  %1415 = vmatprep.mubr.f32.mxu0 0.0
  %1416 = vmatmul.mubr.f32.gmra.mxu0 %v1210
  %v1417 = vpop.f32.mrf.mxu0
  %v1418 = vadd.f32 %v1333, %v1417
  %v1419 = vpop.f32.mrf.mxu0
  %1420 = vmatprep.mubr.f32.mxu0 0.0
  %1421 = vmatmul.mubr.f32.gmra.mxu0 %v1211
  %v1422 = vpop.f32.mrf.mxu0
  %v1423 = vadd.f32 %v1338, %v1422
  %v1424 = vpop.f32.mrf.mxu0
  %1425 = vmatprep.mubr.f32.mxu0 0.0
  %1426 = vmatmul.mubr.f32.gmra.mxu0 %v1212
  %v1427 = vpop.f32.mrf.mxu0
  %v1428 = vadd.f32 %v1343, %v1427
  %v1429 = vpop.f32.mrf.mxu0
  %1430 = vdwg.mxu0
  %v1431 = vadd.f32 %v1413, %v1418
  %v1432 = vadd.f32 %v1431, %v1423
  %v1433 = vadd.f32 %v1432, %v1428
  %v1434 = vrot.slane %v1433, 4
  %v1435 = vadd.f32 %v1433, %v1434
  %v1436 = vrot.slane %v1435, 2
  %v1437 = vadd.f32 %v1435, %v1436
  %v1438 = vrot.slane %v1437, 1
  %v1439 = vadd.f32 %v1437, %v1438
  %1440 = vrot.lane.b32.xlu0 %v1439, 8
  %v1441 = vpop.permute.xlu0 %1440
  %v1442 = vadd.f32 %v1439, %v1441
  %1443 = vrot.lane.b32.xlu0 %v1442, 16
  %v1444 = vpop.permute.xlu0 %1443
  %v1445 = vadd.f32 %v1442, %v1444
  %1446 = vrot.lane.b32.xlu0 %v1445, 32
  %v1447 = vpop.permute.xlu0 %1446
  %v1448 = vadd.f32 %v1445, %v1447
  %1449 = vrot.lane.b32.xlu0 %v1448, 64
  %v1450 = vpop.permute.xlu0 %1449
  %v1451 = vadd.f32 %v1448, %v1450
  %v1452 = vmul.f32 %v1451, 0.001953125
  %v1453 = vmul.f32 %v1413, %v1413
  %v1454 = vmul.f32 %v1418, %v1418
  %v1455 = vmul.f32 %v1423, %v1423
  %v1456 = vmul.f32 %v1428, %v1428
  %v1457 = vadd.f32 %v1453, %v1454
  %v1458 = vadd.f32 %v1457, %v1455
  %v1459 = vadd.f32 %v1458, %v1456
  %v1460 = vrot.slane %v1459, 4
  %v1461 = vadd.f32 %v1459, %v1460
  %v1462 = vrot.slane %v1461, 2
  %v1463 = vadd.f32 %v1461, %v1462
  %v1464 = vrot.slane %v1463, 1
  %v1465 = vadd.f32 %v1463, %v1464
  %1466 = vrot.lane.b32.xlu0 %v1465, 8
  %v1467 = vpop.permute.xlu0 %1466
  %v1468 = vadd.f32 %v1465, %v1467
  %1469 = vrot.lane.b32.xlu0 %v1468, 16
  %v1470 = vpop.permute.xlu0 %1469
  %v1471 = vadd.f32 %v1468, %v1470
  %1472 = vrot.lane.b32.xlu0 %v1471, 32
  %v1473 = vpop.permute.xlu0 %1472
  %v1474 = vadd.f32 %v1471, %v1473
  %1475 = vrot.lane.b32.xlu0 %v1474, 64
  %v1476 = vpop.permute.xlu0 %1475
  %v1477 = vadd.f32 %v1474, %v1476
  %v1478 = vmul.f32 %v1477, 0.001953125
  %v1479 = vmul.f32 %v1452, %v1452
  %v1480 = vsub.f32 %v1478, %v1479
  %v1481 = vld [vmem:[%s5] sm:$0x1]
  %v1482 = vadd.f32 %v1480, 1e-05
  %v1483 = vrsqrt.pop %v1482
  %v1484 = vmul.f32 %v1481, %v1483
  %v1485 = vlaneseq
  %v1486 = vshrl.u32 %v1485, 7
  %v1487 = vsub.s32 0, %v1486
  %v1488 = vrot.slane %v1452, %v1487
  %v1489 = vsub.f32 %v1413, %v1488
  %v1490 = vsub.f32 %v1418, %v1488
  %v1491 = vsub.f32 %v1423, %v1488
  %v1492 = vsub.f32 %v1428, %v1488
  %v1494 = vlaneseq
  %v1495 = vshrl.u32 %v1494, 7
  %v1496 = vsub.s32 0, %v1495
  %v1497 = vrot.slane %v1484, %v1496
  %v1499 = vmul.f32 %v1489, %v1497
  %v1500 = vmul.f32 %v1490, %v1497
  %v1501 = vmul.f32 %v1491, %v1497
  %v1502 = vmul.f32 %v1492, %v1497
  %v1503 = vld [vmem:[%s6] sm:$0x1]
  %v1505 = vlaneseq
  %v1506 = vshrl.u32 %v1505, 7
  %v1507 = vsub.s32 0, %v1506
  %v1508 = vrot.slane %v1503, %v1507
  %v1510 = vadd.f32 %v1499, %v1508
  %v1511 = vadd.f32 %v1500, %v1508
  %v1512 = vadd.f32 %v1501, %v1508
  %v1513 = vadd.f32 %v1502, %v1508
  %v1514 = vadd.f32 %v1510, %v812
  %v1515 = vadd.f32 %v1511, %v813
  %v1516 = vadd.f32 %v1512, %v814
  %v1517 = vadd.f32 %v1513, %v815
  %v1518 = vmax.f32 %v1514, 0.0
  %v1519 = vmax.f32 %v1515, 0.0
  %v1520 = vmax.f32 %v1516, 0.0
  %v1521 = vmax.f32 %v1517, 0.0
  %1522 = vst [vmem:[%s7] sm:$0xff] %v1518
  %1523 = vst [vmem:[%s7 + $0x8] sm:$0xff] %v1519
  %1524 = vst [vmem:[%s7 + $0x10] sm:$0xff] %v1520
  %1525 = vst [vmem:[%s7 + $0x18] sm:$0xff] %v1521
  // Predicated region
  $region30: #{basic_block.1} parent=0 // pred_check
    _
  $region31: #{basic_block.1} parent=0 // pred_check_branch
    %1527 = sbr.rel (0) target = $region33
  $region32: #{basic_block.1} parent=0 // pred_region
    _
  $region33: #{basic_block.1} parent=0 // pred_fallthru
    _
  // Predicated region
  $region34: #{basic_block.1} parent=0 // pred_check
    _
  $region35: #{basic_block.1} parent=0 // pred_check_branch
    %1529 = sbr.rel (0) target = $region37
  $region36: #{basic_block.1} parent=0 // pred_region
    _
  $region37: #{basic_block.1} parent=0 // pred_fallthru
    _

</llo_original>
